<compile_context>
chip_gen: v7x
topology: tpu7x:2x2x1
jax: 0.10.0
libtpu: 0.0.40
codegen_flags: <defaults>
</compile_context>

<pallas_src>
import functools
import math

import jax
import jax.numpy as jnp
from jax import lax
from jax.experimental import pallas as pl
from jax.experimental.pallas import tpu as pltpu


# ------------------------------ in-kernel helpers ------------------------------

def _layer_norm(x, gamma, beta, eps):
    mu = jnp.mean(x, axis=-1, keepdims=True)
    var = jnp.mean(jnp.square(x - mu), axis=-1, keepdims=True)
    return (x - mu) * lax.rsqrt(var + eps) * gamma + beta


def _mha_heads(q, k, v, bias, w_out, b_out, num_heads, scale, attn_out_ref=None):
    """Per-head attention on already-projected q [L,D], k/v [S,D].

    The output projection (w_out: [Din,Dout], b_out: [1,Dout]) is folded into
    the head loop:  out = sum_h (p_h @ v_h) @ W_out[h*dh:(h+1)*dh, :] + b_out,
    which avoids any in-kernel head concatenation / relayout.
    """
    L, D = q.shape
    dh = D // num_heads
    acc = None
    for h in range(num_heads):                      # static unrolled loop (H small)
        lo, hi = h * dh, (h + 1) * dh
        qh, kh, vh = q[:, lo:hi], k[:, lo:hi], v[:, lo:hi]
        # q @ k.T without an explicit transpose (contract dim 1 of both).
        s = lax.dot_general(qh, kh, (((1,), (1,)), ((), ())),
                            preferred_element_type=jnp.float32) * scale
        if bias is not None:
            s = s + bias
        m = jnp.max(s, axis=-1, keepdims=True)
        e = jnp.exp(s - m)
        p = e / jnp.sum(e, axis=-1, keepdims=True)
        if attn_out_ref is not None:                # only cross-attn weights go to HBM
            attn_out_ref[0, h] = p.astype(attn_out_ref.dtype)
        ctx_h = jnp.dot(p, vh, preferred_element_type=jnp.float32)          # [L, dh]
        contrib = jnp.dot(ctx_h, w_out[lo:hi, :],
                          preferred_element_type=jnp.float32)               # [L, D]
        acc = contrib if acc is None else acc + contrib
    return acc + b_out                              # [L, D]


# ------------------------------ fused kernel ------------------------------

def _decoder_layer_kernel(dec_ref, enc_ref, bias_ref,
                          w_in_sa_ref, b_in_sa_ref, w_out_sa_ref, b_out_sa_ref,
                          ln1_g_ref, ln1_b_ref,
                          w_q_ca_ref, b_q_ca_ref, w_kv_ca_ref, b_kv_ca_ref,
                          w_out_ca_ref, b_out_ca_ref,
                          ln2_g_ref, ln2_b_ref,
                          w1_ref, b1_ref, w2_ref, b2_ref,
                          ln3_g_ref, ln3_b_ref,
                          out_ref, attn_ref, *, num_heads, eps):
    D = dec_ref.shape[-1]
    scale = 1.0 / math.sqrt(D // num_heads)

    x = dec_ref[0].astype(jnp.float32)        # [L, D]
    enc = enc_ref[0].astype(jnp.float32)      # [S, D]
    bias = bias_ref[0]                        # [L, L] additive (causal + pad)

    # ---- self attention: fused QKV proj -> per-head attn (+fused out proj) -> add & LN
    qkv = jnp.dot(x, w_in_sa_ref[...], preferred_element_type=jnp.float32) + b_in_sa_ref[...]
    q, k, v = qkv[:, :D], qkv[:, D:2 * D], qkv[:, 2 * D:]
    sa = _mha_heads(q, k, v, bias, w_out_sa_ref[...], b_out_sa_ref[...],
                    num_heads, scale)
    x1 = _layer_norm(x + sa, ln1_g_ref[...], ln1_b_ref[...], eps)

    # ---- cross attention: Q proj + fused KV proj -> per-head attn -> add & LN
    q2 = jnp.dot(x1, w_q_ca_ref[...], preferred_element_type=jnp.float32) + b_q_ca_ref[...]
    kv = jnp.dot(enc, w_kv_ca_ref[...], preferred_element_type=jnp.float32) + b_kv_ca_ref[...]
    k2, v2 = kv[:, :D], kv[:, D:]
    ca = _mha_heads(q2, k2, v2, None, w_out_ca_ref[...], b_out_ca_ref[...],
                    num_heads, scale, attn_out_ref=attn_ref)
    x2 = _layer_norm(x1 + ca, ln2_g_ref[...], ln2_b_ref[...], eps)

    # ---- feed forward (Linear -> ReLU -> Linear, dropout = identity) -> add & LN
    h = jnp.maximum(jnp.dot(x2, w1_ref[...], preferred_element_type=jnp.float32) + b1_ref[...], 0.0)
    f = jnp.dot(h, w2_ref[...], preferred_element_type=jnp.float32) + b2_ref[...]
    x3 = _layer_norm(x2 + f, ln3_g_ref[...], ln3_b_ref[...], eps)

    out_ref[0] = x3.astype(out_ref.dtype)


# --------------------------- layer-level wrapper ---------------------------

def decoder_layer_forward(params, dec_inputs, enc_outputs, tgt_mask,
                          tgt_pad_mask, num_heads, eps=1e-5):
    """dec_inputs [L,B,D], enc_outputs [S,B,D], tgt_mask [L,L] (additive f32),
    tgt_pad_mask [B,L] bool (True = pad). Returns ([L,B,D], [B,H,L,S])."""
    L, B, D = dec_inputs.shape
    H = num_heads

    # Combined additive self-attention bias [B, L, L] (causal + key padding),
    # matching how nn.MultiheadAttention merges attn_mask + key_padding_mask.
    pad_bias = jnp.where(tgt_pad_mask, -jnp.inf, 0.0).astype(jnp.float32)   # [B, L]
    bias_self = tgt_mask.astype(jnp.float32)[None, :, :] + pad_bias[:, None, :]

    dec_bld = jnp.transpose(dec_inputs, (1, 0, 2))                          # [B, L, D]
    enc_bsd = jnp.transpose(enc_outputs, (1, 0, 2))                         # [B, S, D]
    S = enc_bsd.shape[1]

    sa, ca, ffp = params["self_attn"], params["cross_attn"], params["ff"]
    # Pre-transpose every weight to [Din, Dout] so the MXU is fed directly.
    w_in_sa = sa["w_in"].T                          # [D, 3D]
    b_in_sa = sa["b_in"].reshape(1, 3 * D)
    w_out_sa = sa["w_out"].T                        # [D, D]
    b_out_sa = sa["b_out"].reshape(1, D)
    w_q_ca = ca["w_in"][:D].T                       # [D, D]
    b_q_ca = ca["b_in"][:D].reshape(1, D)
    w_kv_ca = ca["w_in"][D:].T                      # [D, 2D]
    b_kv_ca = ca["b_in"][D:].reshape(1, 2 * D)
    w_out_ca = ca["w_out"].T                        # [D, D]
    b_out_ca = ca["b_out"].reshape(1, D)
    w1 = ffp["w1"].T                                # [D, F]
    b1 = ffp["b1"].reshape(1, -1)
    w2 = ffp["w2"].T                                # [F, D]
    b2 = ffp["b2"].reshape(1, D)
    F = w1.shape[1]
    ln1_g, ln1_b = (p.reshape(1, D) for p in params["self_attn_norm"])
    ln2_g, ln2_b = (p.reshape(1, D) for p in params["multihead_norm"])
    ln3_g, ln3_b = (p.reshape(1, D) for p in params["ff_norm"])

    kernel = functools.partial(_decoder_layer_kernel, num_heads=H, eps=eps)

    def batch_spec(shape):
        return pl.BlockSpec((1,) + shape, lambda b: (b,) + (0,) * len(shape))

    def full_spec(shape):
        return pl.BlockSpec(shape, lambda b: (0,) * len(shape))

    out_bld, attns = pl.pallas_call(
        kernel,
        out_shape=(jax.ShapeDtypeStruct((B, L, D), dec_inputs.dtype),
                   jax.ShapeDtypeStruct((B, H, L, S), jnp.float32)),
        grid=(B,),
        in_specs=[
            batch_spec((L, D)),                     # dec inputs
            batch_spec((S, D)),                     # encoder outputs
            batch_spec((L, L)),                     # combined self-attn bias
            full_spec((D, 3 * D)), full_spec((1, 3 * D)),
            full_spec((D, D)), full_spec((1, D)),
            full_spec((1, D)), full_spec((1, D)),   # LN1
            full_spec((D, D)), full_spec((1, D)),
            full_spec((D, 2 * D)), full_spec((1, 2 * D)),
            full_spec((D, D)), full_spec((1, D)),
            full_spec((1, D)), full_spec((1, D)),   # LN2
            full_spec((D, F)), full_spec((1, F)),
            full_spec((F, D)), full_spec((1, D)),
            full_spec((1, D)), full_spec((1, D)),   # LN3
        ],
        out_specs=(batch_spec((L, D)),
                   pl.BlockSpec((1, H, L, S), lambda b: (b, 0, 0, 0))),
        compiler_params=pltpu.CompilerParams(dimension_semantics=("parallel",)),
    )(dec_bld, enc_bsd, bias_self,
      w_in_sa, b_in_sa, w_out_sa, b_out_sa, ln1_g, ln1_b,
      w_q_ca, b_q_ca, w_kv_ca, b_kv_ca, w_out_ca, b_out_ca, ln2_g, ln2_b,
      w1, b1, w2, b2, ln3_g, ln3_b)

    return jnp.transpose(out_bld, (1, 0, 2)), attns


# ------------------------ pure-JAX reference (checking) ------------------------

def decoder_layer_reference(params, dec_inputs, enc_outputs, tgt_mask,
                            tgt_pad_mask, num_heads, eps=1e-5):
    L, B, D = dec_inputs.shape
    H, dh = num_heads, D // num_heads
    x = jnp.transpose(dec_inputs, (1, 0, 2))        # [B, L, D]
    enc = jnp.transpose(enc_outputs, (1, 0, 2))     # [B, S, D]
    hi = "highest"

    def layer_norm(y, g, b):
        mu = jnp.mean(y, -1, keepdims=True)
        var = jnp.mean((y - mu) ** 2, -1, keepdims=True)
        return (y - mu) * lax.rsqrt(var + eps) * g + b

    def mha(q_in, kv_in, p, bias):
        w_in, b_in, w_out, b_out = p["w_in"], p["b_in"], p["w_out"], p["b_out"]
        q = jnp.einsum("bld,ed->ble", q_in, w_in[:D], precision=hi) + b_in[:D]
        k = jnp.einsum("bsd,ed->bse", kv_in, w_in[D:2 * D], precision=hi) + b_in[D:2 * D]
        v = jnp.einsum("bsd,ed->bse", kv_in, w_in[2 * D:], precision=hi) + b_in[2 * D:]
        q = q.reshape(B, -1, H, dh).transpose(0, 2, 1, 3)
        k = k.reshape(B, -1, H, dh).transpose(0, 2, 1, 3)
        v = v.reshape(B, -1, H, dh).transpose(0, 2, 1, 3)
        s = jnp.einsum("bhld,bhsd->bhls", q, k, precision=hi) / math.sqrt(dh)
        if bias is not None:
            s = s + bias[:, None, :, :]
        pr = jax.nn.softmax(s, axis=-1)
        ctx = jnp.einsum("bhls,bhsd->bhld", pr, v, precision=hi)
        ctx = ctx.transpose(0, 2, 1, 3).reshape(B, -1, D)
        return jnp.einsum("bld,ed->ble", ctx, w_out, precision=hi) + b_out, pr

    pad_bias = jnp.where(tgt_pad_mask, -jnp.inf, 0.0)
    bias_self = tgt_mask[None] + pad_bias[:, None, :]
    sa_out, _ = mha(x, x, params["self_attn"], bias_self)
    x1 = layer_norm(x + sa_out, *params["self_attn_norm"])
    ca_out, attns = mha(x1, enc, params["cross_attn"], None)
    x2 = layer_norm(x1 + ca_out, *params["multihead_norm"])
    ffp = params["ff"]
    hdn = jax.nn.relu(jnp.einsum("bld,fd->blf", x2, ffp["w1"], precision=hi) + ffp["b1"])
    f = jnp.einsum("blf,df->bld", hdn, ffp["w2"], precision=hi) + ffp["b2"]
    x3 = layer_norm(x2 + f, *params["ff_norm"])
    return jnp.transpose(x3, (1, 0, 2)), attns


# ------------------------------ params / main ------------------------------

def init_params(key, d_model, ff_dim):
    ks = jax.random.split(key, 12)

    def w(k, dout, din):
        return jax.random.normal(k, (dout, din), jnp.float32) / math.sqrt(din)

    def b(k, d):
        return jax.random.normal(k, (d,), jnp.float32) * 0.02

    def mha(k1, k2, k3, k4):
        return dict(w_in=w(k1, 3 * d_model, d_model), b_in=b(k2, 3 * d_model),
                    w_out=w(k3, d_model, d_model), b_out=b(k4, d_model))

    ones = jnp.ones((d_model,), jnp.float32)
    zeros = jnp.zeros((d_model,), jnp.float32)
    return dict(
        self_attn=mha(ks[0], ks[1], ks[2], ks[3]),
        cross_attn=mha(ks[4], ks[5], ks[6], ks[7]),
        self_attn_norm=(ones, zeros),
        multihead_norm=(ones, zeros),
        ff=dict(w1=w(ks[8], ff_dim, d_model), b1=b(ks[9], ff_dim),
                w2=w(ks[10], d_model, ff_dim), b2=b(ks[11], d_model)),
        ff_norm=(ones, zeros),
    )


if __name__ == "__main__":
    d_model, num_heads, ff_dim = 32, 4, 64
    L, B, S = 8, 2, 16   # max_len, batch, enc_len (encode_size^2)

    root = jax.random.PRNGKey(0)
    k_params, k_dec, k_enc = jax.random.split(root, 3)
    params = init_params(k_params, d_model, ff_dim)

    dec_inputs = jax.random.normal(k_dec, (L, B, d_model), jnp.float32)   # [L, B, D]
    enc_outputs = jax.random.normal(k_enc, (S, B, d_model), jnp.float32)  # [S, B, D]

    causal = jnp.triu(jnp.ones((L, L), bool), k=1)
    tgt_mask = jnp.where(causal, -jnp.inf, 0.0).astype(jnp.float32)       # [L, L]
    lens = jnp.array([L, L - 2])
    tgt_pad_mask = jnp.arange(L)[None, :] >= lens[:, None]                # [B, L] bool

    fwd = jax.jit(functools.partial(decoder_layer_forward, num_heads=num_heads))
    out, attns = fwd(params, dec_inputs, enc_outputs, tgt_mask, tgt_pad_mask)
    out = jax.block_until_ready(out)
    attns = jax.block_until_ready(attns)

    assert out.shape == (L, B, d_model)
    assert attns.shape == (B, num_heads, L, S)
    assert bool(jnp.isfinite(out).all()) and bool(jnp.isfinite(attns).all())

    # Self-check against a pure-JAX reference of the same forward pass.
    out_ref, attns_ref = decoder_layer_reference(
        params, dec_inputs, enc_outputs, tgt_mask, tgt_pad_mask, num_heads)
    assert bool(jnp.allclose(out, out_ref, atol=5e-3, rtol=5e-3))
    assert bool(jnp.allclose(attns, attns_ref, atol=5e-3, rtol=5e-3))

    print("KERNEL_OK")
</pallas_src>

<mosaic_0001>
module attributes {stable_mosaic.version = 11 : i64} {
  func.func @_decoder_layer_kernel(%arg0: i32, %arg1: memref<1x8x32xf32, #tpu.memory_space<vmem>>, %arg2: memref<1x16x32xf32, #tpu.memory_space<vmem>>, %arg3: memref<1x8x8xf32, #tpu.memory_space<vmem>>, %arg4: memref<32x96xf32, #tpu.memory_space<vmem>>, %arg5: memref<1x96xf32, #tpu.memory_space<vmem>>, %arg6: memref<32x32xf32, #tpu.memory_space<vmem>>, %arg7: memref<1x32xf32, #tpu.memory_space<vmem>>, %arg8: memref<1x32xf32, #tpu.memory_space<vmem>>, %arg9: memref<1x32xf32, #tpu.memory_space<vmem>>, %arg10: memref<32x32xf32, #tpu.memory_space<vmem>>, %arg11: memref<1x32xf32, #tpu.memory_space<vmem>>, %arg12: memref<32x64xf32, #tpu.memory_space<vmem>>, %arg13: memref<1x64xf32, #tpu.memory_space<vmem>>, %arg14: memref<32x32xf32, #tpu.memory_space<vmem>>, %arg15: memref<1x32xf32, #tpu.memory_space<vmem>>, %arg16: memref<1x32xf32, #tpu.memory_space<vmem>>, %arg17: memref<1x32xf32, #tpu.memory_space<vmem>>, %arg18: memref<32x64xf32, #tpu.memory_space<vmem>>, %arg19: memref<1x64xf32, #tpu.memory_space<vmem>>, %arg20: memref<64x32xf32, #tpu.memory_space<vmem>>, %arg21: memref<1x32xf32, #tpu.memory_space<vmem>>, %arg22: memref<1x32xf32, #tpu.memory_space<vmem>>, %arg23: memref<1x32xf32, #tpu.memory_space<vmem>>, %arg24: memref<1x8x32xf32, #tpu.memory_space<vmem>>, %arg25: memref<1x4x8x16xf32, #tpu.memory_space<vmem>>) attributes {dimension_semantics = [#tpu.dimension_semantics<parallel>], iteration_bounds = array<i64: 2>, scalar_prefetch = 0 : i64, scratch_operands = 0 : i64, tpu.core_type = #tpu.core_type<tc>, window_params = [{transform_indices = @transform_0, window_bounds = array<i64: 1, 8, 32>}, {transform_indices = @transform_1, window_bounds = array<i64: 1, 16, 32>}, {transform_indices = @transform_2, window_bounds = array<i64: 1, 8, 8>}, {pipeline_mode = #tpu.pipeline_mode<synchronous>, transform_indices = @transform_3, window_bounds = array<i64: 32, 96>}, {pipeline_mode = #tpu.pipeline_mode<synchronous>, transform_indices = @transform_4, window_bounds = array<i64: 1, 96>}, {pipeline_mode = #tpu.pipeline_mode<synchronous>, transform_indices = @transform_5, window_bounds = array<i64: 32, 32>}, {pipeline_mode = #tpu.pipeline_mode<synchronous>, transform_indices = @transform_6, window_bounds = array<i64: 1, 32>}, {pipeline_mode = #tpu.pipeline_mode<synchronous>, transform_indices = @transform_7, window_bounds = array<i64: 1, 32>}, {pipeline_mode = #tpu.pipeline_mode<synchronous>, transform_indices = @transform_8, window_bounds = array<i64: 1, 32>}, {pipeline_mode = #tpu.pipeline_mode<synchronous>, transform_indices = @transform_9, window_bounds = array<i64: 32, 32>}, {pipeline_mode = #tpu.pipeline_mode<synchronous>, transform_indices = @transform_10, window_bounds = array<i64: 1, 32>}, {pipeline_mode = #tpu.pipeline_mode<synchronous>, transform_indices = @transform_11, window_bounds = array<i64: 32, 64>}, {pipeline_mode = #tpu.pipeline_mode<synchronous>, transform_indices = @transform_12, window_bounds = array<i64: 1, 64>}, {pipeline_mode = #tpu.pipeline_mode<synchronous>, transform_indices = @transform_13, window_bounds = array<i64: 32, 32>}, {pipeline_mode = #tpu.pipeline_mode<synchronous>, transform_indices = @transform_14, window_bounds = array<i64: 1, 32>}, {pipeline_mode = #tpu.pipeline_mode<synchronous>, transform_indices = @transform_15, window_bounds = array<i64: 1, 32>}, {pipeline_mode = #tpu.pipeline_mode<synchronous>, transform_indices = @transform_16, window_bounds = array<i64: 1, 32>}, {pipeline_mode = #tpu.pipeline_mode<synchronous>, transform_indices = @transform_17, window_bounds = array<i64: 32, 64>}, {pipeline_mode = #tpu.pipeline_mode<synchronous>, transform_indices = @transform_18, window_bounds = array<i64: 1, 64>}, {pipeline_mode = #tpu.pipeline_mode<synchronous>, transform_indices = @transform_19, window_bounds = array<i64: 64, 32>}, {pipeline_mode = #tpu.pipeline_mode<synchronous>, transform_indices = @transform_20, window_bounds = array<i64: 1, 32>}, {pipeline_mode = #tpu.pipeline_mode<synchronous>, transform_indices = @transform_21, window_bounds = array<i64: 1, 32>}, {pipeline_mode = #tpu.pipeline_mode<synchronous>, transform_indices = @transform_22, window_bounds = array<i64: 1, 32>}, {transform_indices = @transform_23, window_bounds = array<i64: 1, 8, 32>}, {transform_indices = @transform_24, window_bounds = array<i64: 1, 4, 8, 16>}]} {
    %c0 = arith.constant 0 : index
    %c0_0 = arith.constant 0 : index
    %c0_1 = arith.constant 0 : index
    %0 = vector.load %arg1[%c0, %c0_0, %c0_1] : memref<1x8x32xf32, #tpu.memory_space<vmem>>, vector<1x8x32xf32>
    %1 = vector.shape_cast %0 : vector<1x8x32xf32> to vector<8x32xf32>
    %c0_2 = arith.constant 0 : index
    %c0_3 = arith.constant 0 : index
    %c0_4 = arith.constant 0 : index
    %2 = vector.load %arg2[%c0_2, %c0_3, %c0_4] : memref<1x16x32xf32, #tpu.memory_space<vmem>>, vector<1x16x32xf32>
    %3 = vector.shape_cast %2 : vector<1x16x32xf32> to vector<16x32xf32>
    %c0_5 = arith.constant 0 : index
    %c0_6 = arith.constant 0 : index
    %c0_7 = arith.constant 0 : index
    %4 = vector.load %arg3[%c0_5, %c0_6, %c0_7] : memref<1x8x8xf32, #tpu.memory_space<vmem>>, vector<1x8x8xf32>
    %5 = vector.shape_cast %4 : vector<1x8x8xf32> to vector<8x8xf32>
    %c0_8 = arith.constant 0 : index
    %c0_9 = arith.constant 0 : index
    %6 = vector.load %arg4[%c0_8, %c0_9] : memref<32x96xf32, #tpu.memory_space<vmem>>, vector<32x96xf32>
    %cst = arith.constant dense<0.000000e+00> : vector<8x96xf32>
    %7 = tpu.matmul %1, %6, %cst {dimension_numbers = #tpu.dot_dimension_numbers<[1], [0], [0], [1], [0, 0, 1, 1], [], []>} : vector<8x32xf32>, vector<32x96xf32>, vector<8x96xf32> -> vector<8x96xf32>
    %c0_10 = arith.constant 0 : index
    %c0_11 = arith.constant 0 : index
    %8 = vector.load %arg5[%c0_10, %c0_11] : memref<1x96xf32, #tpu.memory_space<vmem>>, vector<1x96xf32>
    %9 = vector.broadcast %8 : vector<1x96xf32> to vector<8x96xf32>
    %10 = arith.addf %7, %9 : vector<8x96xf32>
    %11 = vector.extract_strided_slice %10 {offsets = [0, 0], sizes = [8, 32], strides = [1, 1]} : vector<8x96xf32> to vector<8x32xf32>
    %12 = vector.extract_strided_slice %10 {offsets = [0, 32], sizes = [8, 32], strides = [1, 1]} : vector<8x96xf32> to vector<8x32xf32>
    %13 = vector.extract_strided_slice %10 {offsets = [0, 64], sizes = [8, 32], strides = [1, 1]} : vector<8x96xf32> to vector<8x32xf32>
    %c0_12 = arith.constant 0 : index
    %c0_13 = arith.constant 0 : index
    %14 = vector.load %arg6[%c0_12, %c0_13] : memref<32x32xf32, #tpu.memory_space<vmem>>, vector<32x32xf32>
    %c0_14 = arith.constant 0 : index
    %c0_15 = arith.constant 0 : index
    %15 = vector.load %arg7[%c0_14, %c0_15] : memref<1x32xf32, #tpu.memory_space<vmem>>, vector<1x32xf32>
    %16 = vector.extract_strided_slice %11 {offsets = [0, 0], sizes = [8, 8], strides = [1, 1]} : vector<8x32xf32> to vector<8x8xf32>
    %17 = vector.extract_strided_slice %12 {offsets = [0, 0], sizes = [8, 8], strides = [1, 1]} : vector<8x32xf32> to vector<8x8xf32>
    %18 = vector.extract_strided_slice %13 {offsets = [0, 0], sizes = [8, 8], strides = [1, 1]} : vector<8x32xf32> to vector<8x8xf32>
    %cst_16 = arith.constant dense<0.000000e+00> : vector<8x8xf32>
    %19 = tpu.matmul %16, %17, %cst_16 {dimension_numbers = #tpu.dot_dimension_numbers<[1], [1], [0], [0], [0, 0, 1, 0], [], []>} : vector<8x8xf32>, vector<8x8xf32>, vector<8x8xf32> -> vector<8x8xf32>
    %cst_17 = arith.constant 0.353553385 : f32
    %20 = vector.broadcast %cst_17 : f32 to vector<8x8xf32>
    %21 = arith.mulf %19, %20 : vector<8x8xf32>
    %22 = arith.addf %21, %5 : vector<8x8xf32>
    %cst_18 = arith.constant dense<0xFF800000> : vector<8xf32>
    %23 = vector.multi_reduction <maximumf>, %22, %cst_18 [1] : vector<8x8xf32> to vector<8xf32>
    %24 = vector.shape_cast %23 : vector<8xf32> to vector<8x1xf32>
    %25 = vector.broadcast %24 : vector<8x1xf32> to vector<8x8xf32>
    %26 = arith.subf %22, %25 : vector<8x8xf32>
    %27 = math.exp %26 : vector<8x8xf32>
    %cst_19 = arith.constant dense<0.000000e+00> : vector<8xf32>
    %28 = vector.multi_reduction <add>, %27, %cst_19 [1] : vector<8x8xf32> to vector<8xf32>
    %29 = vector.shape_cast %28 : vector<8xf32> to vector<8x1xf32>
    %30 = vector.broadcast %29 : vector<8x1xf32> to vector<8x8xf32>
    %31 = arith.divf %27, %30 : vector<8x8xf32>
    %cst_20 = arith.constant dense<0.000000e+00> : vector<8x8xf32>
    %32 = tpu.matmul %31, %18, %cst_20 {dimension_numbers = #tpu.dot_dimension_numbers<[1], [0], [0], [1], [0, 0, 1, 1], [], []>} : vector<8x8xf32>, vector<8x8xf32>, vector<8x8xf32> -> vector<8x8xf32>
    %33 = vector.extract_strided_slice %14 {offsets = [0, 0], sizes = [8, 32], strides = [1, 1]} : vector<32x32xf32> to vector<8x32xf32>
    %cst_21 = arith.constant dense<0.000000e+00> : vector<8x32xf32>
    %34 = tpu.matmul %32, %33, %cst_21 {dimension_numbers = #tpu.dot_dimension_numbers<[1], [0], [0], [1], [0, 0, 1, 1], [], []>} : vector<8x8xf32>, vector<8x32xf32>, vector<8x32xf32> -> vector<8x32xf32>
    %35 = vector.extract_strided_slice %11 {offsets = [0, 8], sizes = [8, 8], strides = [1, 1]} : vector<8x32xf32> to vector<8x8xf32>
    %36 = vector.extract_strided_slice %12 {offsets = [0, 8], sizes = [8, 8], strides = [1, 1]} : vector<8x32xf32> to vector<8x8xf32>
    %37 = vector.extract_strided_slice %13 {offsets = [0, 8], sizes = [8, 8], strides = [1, 1]} : vector<8x32xf32> to vector<8x8xf32>
    %cst_22 = arith.constant dense<0.000000e+00> : vector<8x8xf32>
    %38 = tpu.matmul %35, %36, %cst_22 {dimension_numbers = #tpu.dot_dimension_numbers<[1], [1], [0], [0], [0, 0, 1, 0], [], []>} : vector<8x8xf32>, vector<8x8xf32>, vector<8x8xf32> -> vector<8x8xf32>
    %cst_23 = arith.constant 0.353553385 : f32
    %39 = vector.broadcast %cst_23 : f32 to vector<8x8xf32>
    %40 = arith.mulf %38, %39 : vector<8x8xf32>
    %41 = arith.addf %40, %5 : vector<8x8xf32>
    %cst_24 = arith.constant dense<0xFF800000> : vector<8xf32>
    %42 = vector.multi_reduction <maximumf>, %41, %cst_24 [1] : vector<8x8xf32> to vector<8xf32>
    %43 = vector.shape_cast %42 : vector<8xf32> to vector<8x1xf32>
    %44 = vector.broadcast %43 : vector<8x1xf32> to vector<8x8xf32>
    %45 = arith.subf %41, %44 : vector<8x8xf32>
    %46 = math.exp %45 : vector<8x8xf32>
    %cst_25 = arith.constant dense<0.000000e+00> : vector<8xf32>
    %47 = vector.multi_reduction <add>, %46, %cst_25 [1] : vector<8x8xf32> to vector<8xf32>
    %48 = vector.shape_cast %47 : vector<8xf32> to vector<8x1xf32>
    %49 = vector.broadcast %48 : vector<8x1xf32> to vector<8x8xf32>
    %50 = arith.divf %46, %49 : vector<8x8xf32>
    %cst_26 = arith.constant dense<0.000000e+00> : vector<8x8xf32>
    %51 = tpu.matmul %50, %37, %cst_26 {dimension_numbers = #tpu.dot_dimension_numbers<[1], [0], [0], [1], [0, 0, 1, 1], [], []>} : vector<8x8xf32>, vector<8x8xf32>, vector<8x8xf32> -> vector<8x8xf32>
    %52 = vector.extract_strided_slice %14 {offsets = [8, 0], sizes = [8, 32], strides = [1, 1]} : vector<32x32xf32> to vector<8x32xf32>
    %cst_27 = arith.constant dense<0.000000e+00> : vector<8x32xf32>
    %53 = tpu.matmul %51, %52, %cst_27 {dimension_numbers = #tpu.dot_dimension_numbers<[1], [0], [0], [1], [0, 0, 1, 1], [], []>} : vector<8x8xf32>, vector<8x32xf32>, vector<8x32xf32> -> vector<8x32xf32>
    %54 = arith.addf %34, %53 : vector<8x32xf32>
    %55 = vector.extract_strided_slice %11 {offsets = [0, 16], sizes = [8, 8], strides = [1, 1]} : vector<8x32xf32> to vector<8x8xf32>
    %56 = vector.extract_strided_slice %12 {offsets = [0, 16], sizes = [8, 8], strides = [1, 1]} : vector<8x32xf32> to vector<8x8xf32>
    %57 = vector.extract_strided_slice %13 {offsets = [0, 16], sizes = [8, 8], strides = [1, 1]} : vector<8x32xf32> to vector<8x8xf32>
    %cst_28 = arith.constant dense<0.000000e+00> : vector<8x8xf32>
    %58 = tpu.matmul %55, %56, %cst_28 {dimension_numbers = #tpu.dot_dimension_numbers<[1], [1], [0], [0], [0, 0, 1, 0], [], []>} : vector<8x8xf32>, vector<8x8xf32>, vector<8x8xf32> -> vector<8x8xf32>
    %cst_29 = arith.constant 0.353553385 : f32
    %59 = vector.broadcast %cst_29 : f32 to vector<8x8xf32>
    %60 = arith.mulf %58, %59 : vector<8x8xf32>
    %61 = arith.addf %60, %5 : vector<8x8xf32>
    %cst_30 = arith.constant dense<0xFF800000> : vector<8xf32>
    %62 = vector.multi_reduction <maximumf>, %61, %cst_30 [1] : vector<8x8xf32> to vector<8xf32>
    %63 = vector.shape_cast %62 : vector<8xf32> to vector<8x1xf32>
    %64 = vector.broadcast %63 : vector<8x1xf32> to vector<8x8xf32>
    %65 = arith.subf %61, %64 : vector<8x8xf32>
    %66 = math.exp %65 : vector<8x8xf32>
    %cst_31 = arith.constant dense<0.000000e+00> : vector<8xf32>
    %67 = vector.multi_reduction <add>, %66, %cst_31 [1] : vector<8x8xf32> to vector<8xf32>
    %68 = vector.shape_cast %67 : vector<8xf32> to vector<8x1xf32>
    %69 = vector.broadcast %68 : vector<8x1xf32> to vector<8x8xf32>
    %70 = arith.divf %66, %69 : vector<8x8xf32>
    %cst_32 = arith.constant dense<0.000000e+00> : vector<8x8xf32>
    %71 = tpu.matmul %70, %57, %cst_32 {dimension_numbers = #tpu.dot_dimension_numbers<[1], [0], [0], [1], [0, 0, 1, 1], [], []>} : vector<8x8xf32>, vector<8x8xf32>, vector<8x8xf32> -> vector<8x8xf32>
    %72 = vector.extract_strided_slice %14 {offsets = [16, 0], sizes = [8, 32], strides = [1, 1]} : vector<32x32xf32> to vector<8x32xf32>
    %cst_33 = arith.constant dense<0.000000e+00> : vector<8x32xf32>
    %73 = tpu.matmul %71, %72, %cst_33 {dimension_numbers = #tpu.dot_dimension_numbers<[1], [0], [0], [1], [0, 0, 1, 1], [], []>} : vector<8x8xf32>, vector<8x32xf32>, vector<8x32xf32> -> vector<8x32xf32>
    %74 = arith.addf %54, %73 : vector<8x32xf32>
    %75 = vector.extract_strided_slice %11 {offsets = [0, 24], sizes = [8, 8], strides = [1, 1]} : vector<8x32xf32> to vector<8x8xf32>
    %76 = vector.extract_strided_slice %12 {offsets = [0, 24], sizes = [8, 8], strides = [1, 1]} : vector<8x32xf32> to vector<8x8xf32>
    %77 = vector.extract_strided_slice %13 {offsets = [0, 24], sizes = [8, 8], strides = [1, 1]} : vector<8x32xf32> to vector<8x8xf32>
    %cst_34 = arith.constant dense<0.000000e+00> : vector<8x8xf32>
    %78 = tpu.matmul %75, %76, %cst_34 {dimension_numbers = #tpu.dot_dimension_numbers<[1], [1], [0], [0], [0, 0, 1, 0], [], []>} : vector<8x8xf32>, vector<8x8xf32>, vector<8x8xf32> -> vector<8x8xf32>
    %cst_35 = arith.constant 0.353553385 : f32
    %79 = vector.broadcast %cst_35 : f32 to vector<8x8xf32>
    %80 = arith.mulf %78, %79 : vector<8x8xf32>
    %81 = arith.addf %80, %5 : vector<8x8xf32>
    %cst_36 = arith.constant dense<0xFF800000> : vector<8xf32>
    %82 = vector.multi_reduction <maximumf>, %81, %cst_36 [1] : vector<8x8xf32> to vector<8xf32>
    %83 = vector.shape_cast %82 : vector<8xf32> to vector<8x1xf32>
    %84 = vector.broadcast %83 : vector<8x1xf32> to vector<8x8xf32>
    %85 = arith.subf %81, %84 : vector<8x8xf32>
    %86 = math.exp %85 : vector<8x8xf32>
    %cst_37 = arith.constant dense<0.000000e+00> : vector<8xf32>
    %87 = vector.multi_reduction <add>, %86, %cst_37 [1] : vector<8x8xf32> to vector<8xf32>
    %88 = vector.shape_cast %87 : vector<8xf32> to vector<8x1xf32>
    %89 = vector.broadcast %88 : vector<8x1xf32> to vector<8x8xf32>
    %90 = arith.divf %86, %89 : vector<8x8xf32>
    %cst_38 = arith.constant dense<0.000000e+00> : vector<8x8xf32>
    %91 = tpu.matmul %90, %77, %cst_38 {dimension_numbers = #tpu.dot_dimension_numbers<[1], [0], [0], [1], [0, 0, 1, 1], [], []>} : vector<8x8xf32>, vector<8x8xf32>, vector<8x8xf32> -> vector<8x8xf32>
    %92 = vector.extract_strided_slice %14 {offsets = [24, 0], sizes = [8, 32], strides = [1, 1]} : vector<32x32xf32> to vector<8x32xf32>
    %cst_39 = arith.constant dense<0.000000e+00> : vector<8x32xf32>
    %93 = tpu.matmul %91, %92, %cst_39 {dimension_numbers = #tpu.dot_dimension_numbers<[1], [0], [0], [1], [0, 0, 1, 1], [], []>} : vector<8x8xf32>, vector<8x32xf32>, vector<8x32xf32> -> vector<8x32xf32>
    %94 = arith.addf %74, %93 : vector<8x32xf32>
    %95 = vector.broadcast %15 : vector<1x32xf32> to vector<8x32xf32>
    %96 = arith.addf %94, %95 : vector<8x32xf32>
    %97 = arith.addf %1, %96 : vector<8x32xf32>
    %c0_40 = arith.constant 0 : index
    %c0_41 = arith.constant 0 : index
    %98 = vector.load %arg8[%c0_40, %c0_41] : memref<1x32xf32, #tpu.memory_space<vmem>>, vector<1x32xf32>
    %c0_42 = arith.constant 0 : index
    %c0_43 = arith.constant 0 : index
    %99 = vector.load %arg9[%c0_42, %c0_43] : memref<1x32xf32, #tpu.memory_space<vmem>>, vector<1x32xf32>
    %cst_44 = arith.constant dense<0.000000e+00> : vector<8xf32>
    %100 = vector.multi_reduction <add>, %97, %cst_44 [1] : vector<8x32xf32> to vector<8xf32>
    %101 = vector.shape_cast %100 : vector<8xf32> to vector<8x1xf32>
    %cst_45 = arith.constant 3.200000e+01 : f32
    %102 = vector.broadcast %cst_45 : f32 to vector<8x1xf32>
    %103 = arith.divf %101, %102 : vector<8x1xf32>
    %104 = vector.broadcast %103 : vector<8x1xf32> to vector<8x32xf32>
    %105 = arith.subf %97, %104 : vector<8x32xf32>
    %106 = arith.mulf %105, %105 : vector<8x32xf32>
    %cst_46 = arith.constant dense<0.000000e+00> : vector<8xf32>
    %107 = vector.multi_reduction <add>, %106, %cst_46 [1] : vector<8x32xf32> to vector<8xf32>
    %108 = vector.shape_cast %107 : vector<8xf32> to vector<8x1xf32>
    %cst_47 = arith.constant 3.200000e+01 : f32
    %109 = vector.broadcast %cst_47 : f32 to vector<8x1xf32>
    %110 = arith.divf %108, %109 : vector<8x1xf32>
    %111 = vector.broadcast %103 : vector<8x1xf32> to vector<8x32xf32>
    %112 = arith.subf %97, %111 : vector<8x32xf32>
    %cst_48 = arith.constant 9.99999974E-6 : f32
    %113 = vector.broadcast %cst_48 : f32 to vector<8x1xf32>
    %114 = arith.addf %110, %113 : vector<8x1xf32>
    %115 = math.rsqrt %114 : vector<8x1xf32>
    %116 = vector.broadcast %115 : vector<8x1xf32> to vector<8x32xf32>
    %117 = arith.mulf %112, %116 : vector<8x32xf32>
    %118 = vector.broadcast %98 : vector<1x32xf32> to vector<8x32xf32>
    %119 = arith.mulf %117, %118 : vector<8x32xf32>
    %120 = vector.broadcast %99 : vector<1x32xf32> to vector<8x32xf32>
    %121 = arith.addf %119, %120 : vector<8x32xf32>
    %c0_49 = arith.constant 0 : index
    %c0_50 = arith.constant 0 : index
    %122 = vector.load %arg10[%c0_49, %c0_50] : memref<32x32xf32, #tpu.memory_space<vmem>>, vector<32x32xf32>
    %cst_51 = arith.constant dense<0.000000e+00> : vector<8x32xf32>
    %123 = tpu.matmul %121, %122, %cst_51 {dimension_numbers = #tpu.dot_dimension_numbers<[1], [0], [0], [1], [0, 0, 1, 1], [], []>} : vector<8x32xf32>, vector<32x32xf32>, vector<8x32xf32> -> vector<8x32xf32>
    %c0_52 = arith.constant 0 : index
    %c0_53 = arith.constant 0 : index
    %124 = vector.load %arg11[%c0_52, %c0_53] : memref<1x32xf32, #tpu.memory_space<vmem>>, vector<1x32xf32>
    %125 = vector.broadcast %124 : vector<1x32xf32> to vector<8x32xf32>
    %126 = arith.addf %123, %125 : vector<8x32xf32>
    %c0_54 = arith.constant 0 : index
    %c0_55 = arith.constant 0 : index
    %127 = vector.load %arg12[%c0_54, %c0_55] : memref<32x64xf32, #tpu.memory_space<vmem>>, vector<32x64xf32>
    %cst_56 = arith.constant dense<0.000000e+00> : vector<16x64xf32>
    %128 = tpu.matmul %3, %127, %cst_56 {dimension_numbers = #tpu.dot_dimension_numbers<[1], [0], [0], [1], [0, 0, 1, 1], [], []>} : vector<16x32xf32>, vector<32x64xf32>, vector<16x64xf32> -> vector<16x64xf32>
    %c0_57 = arith.constant 0 : index
    %c0_58 = arith.constant 0 : index
    %129 = vector.load %arg13[%c0_57, %c0_58] : memref<1x64xf32, #tpu.memory_space<vmem>>, vector<1x64xf32>
    %130 = vector.broadcast %129 : vector<1x64xf32> to vector<16x64xf32>
    %131 = arith.addf %128, %130 : vector<16x64xf32>
    %132 = vector.extract_strided_slice %131 {offsets = [0, 0], sizes = [16, 32], strides = [1, 1]} : vector<16x64xf32> to vector<16x32xf32>
    %133 = vector.extract_strided_slice %131 {offsets = [0, 32], sizes = [16, 32], strides = [1, 1]} : vector<16x64xf32> to vector<16x32xf32>
    %c0_59 = arith.constant 0 : index
    %c0_60 = arith.constant 0 : index
    %134 = vector.load %arg14[%c0_59, %c0_60] : memref<32x32xf32, #tpu.memory_space<vmem>>, vector<32x32xf32>
    %c0_61 = arith.constant 0 : index
    %c0_62 = arith.constant 0 : index
    %135 = vector.load %arg15[%c0_61, %c0_62] : memref<1x32xf32, #tpu.memory_space<vmem>>, vector<1x32xf32>
    %136 = vector.extract_strided_slice %126 {offsets = [0, 0], sizes = [8, 8], strides = [1, 1]} : vector<8x32xf32> to vector<8x8xf32>
    %137 = vector.extract_strided_slice %132 {offsets = [0, 0], sizes = [16, 8], strides = [1, 1]} : vector<16x32xf32> to vector<16x8xf32>
    %138 = vector.extract_strided_slice %133 {offsets = [0, 0], sizes = [16, 8], strides = [1, 1]} : vector<16x32xf32> to vector<16x8xf32>
    %cst_63 = arith.constant dense<0.000000e+00> : vector<8x16xf32>
    %139 = tpu.matmul %136, %137, %cst_63 {dimension_numbers = #tpu.dot_dimension_numbers<[1], [1], [0], [0], [0, 0, 1, 0], [], []>} : vector<8x8xf32>, vector<16x8xf32>, vector<8x16xf32> -> vector<8x16xf32>
    %cst_64 = arith.constant 0.353553385 : f32
    %140 = vector.broadcast %cst_64 : f32 to vector<8x16xf32>
    %141 = arith.mulf %139, %140 : vector<8x16xf32>
    %cst_65 = arith.constant dense<0xFF800000> : vector<8xf32>
    %142 = vector.multi_reduction <maximumf>, %141, %cst_65 [1] : vector<8x16xf32> to vector<8xf32>
    %143 = vector.shape_cast %142 : vector<8xf32> to vector<8x1xf32>
    %144 = vector.broadcast %143 : vector<8x1xf32> to vector<8x16xf32>
    %145 = arith.subf %141, %144 : vector<8x16xf32>
    %146 = math.exp %145 : vector<8x16xf32>
    %cst_66 = arith.constant dense<0.000000e+00> : vector<8xf32>
    %147 = vector.multi_reduction <add>, %146, %cst_66 [1] : vector<8x16xf32> to vector<8xf32>
    %148 = vector.shape_cast %147 : vector<8xf32> to vector<8x1xf32>
    %149 = vector.broadcast %148 : vector<8x1xf32> to vector<8x16xf32>
    %150 = arith.divf %146, %149 : vector<8x16xf32>
    %c0_67 = arith.constant 0 : index
    %c0_68 = arith.constant 0 : index
    %c0_69 = arith.constant 0 : index
    %c0_70 = arith.constant 0 : index
    %151 = vector.load %arg25[%c0_67, %c0_68, %c0_69, %c0_70] : memref<1x4x8x16xf32, #tpu.memory_space<vmem>>, vector<1x1x8x16xf32>
    %152 = vector.shape_cast %151 : vector<1x1x8x16xf32> to vector<8x16xf32>
    %153 = vector.shape_cast %150 : vector<8x16xf32> to vector<1x1x8x16xf32>
    tpu.vector_store %arg25[%c0_67, %c0_68, %c0_69, %c0_70], %153 {strides = array<i32>} : memref<1x4x8x16xf32, #tpu.memory_space<vmem>>, vector<1x1x8x16xf32>,
    %cst_71 = arith.constant dense<0.000000e+00> : vector<8x8xf32>
    %154 = tpu.matmul %150, %138, %cst_71 {dimension_numbers = #tpu.dot_dimension_numbers<[1], [0], [0], [1], [0, 0, 1, 1], [], []>} : vector<8x16xf32>, vector<16x8xf32>, vector<8x8xf32> -> vector<8x8xf32>
    %155 = vector.extract_strided_slice %134 {offsets = [0, 0], sizes = [8, 32], strides = [1, 1]} : vector<32x32xf32> to vector<8x32xf32>
    %cst_72 = arith.constant dense<0.000000e+00> : vector<8x32xf32>
    %156 = tpu.matmul %154, %155, %cst_72 {dimension_numbers = #tpu.dot_dimension_numbers<[1], [0], [0], [1], [0, 0, 1, 1], [], []>} : vector<8x8xf32>, vector<8x32xf32>, vector<8x32xf32> -> vector<8x32xf32>
    %157 = vector.extract_strided_slice %126 {offsets = [0, 8], sizes = [8, 8], strides = [1, 1]} : vector<8x32xf32> to vector<8x8xf32>
    %158 = vector.extract_strided_slice %132 {offsets = [0, 8], sizes = [16, 8], strides = [1, 1]} : vector<16x32xf32> to vector<16x8xf32>
    %159 = vector.extract_strided_slice %133 {offsets = [0, 8], sizes = [16, 8], strides = [1, 1]} : vector<16x32xf32> to vector<16x8xf32>
    %cst_73 = arith.constant dense<0.000000e+00> : vector<8x16xf32>
    %160 = tpu.matmul %157, %158, %cst_73 {dimension_numbers = #tpu.dot_dimension_numbers<[1], [1], [0], [0], [0, 0, 1, 0], [], []>} : vector<8x8xf32>, vector<16x8xf32>, vector<8x16xf32> -> vector<8x16xf32>
    %cst_74 = arith.constant 0.353553385 : f32
    %161 = vector.broadcast %cst_74 : f32 to vector<8x16xf32>
    %162 = arith.mulf %160, %161 : vector<8x16xf32>
    %cst_75 = arith.constant dense<0xFF800000> : vector<8xf32>
    %163 = vector.multi_reduction <maximumf>, %162, %cst_75 [1] : vector<8x16xf32> to vector<8xf32>
    %164 = vector.shape_cast %163 : vector<8xf32> to vector<8x1xf32>
    %165 = vector.broadcast %164 : vector<8x1xf32> to vector<8x16xf32>
    %166 = arith.subf %162, %165 : vector<8x16xf32>
    %167 = math.exp %166 : vector<8x16xf32>
    %cst_76 = arith.constant dense<0.000000e+00> : vector<8xf32>
    %168 = vector.multi_reduction <add>, %167, %cst_76 [1] : vector<8x16xf32> to vector<8xf32>
    %169 = vector.shape_cast %168 : vector<8xf32> to vector<8x1xf32>
    %170 = vector.broadcast %169 : vector<8x1xf32> to vector<8x16xf32>
    %171 = arith.divf %167, %170 : vector<8x16xf32>
    %c0_77 = arith.constant 0 : index
    %c1 = arith.constant 1 : index
    %c0_78 = arith.constant 0 : index
    %c0_79 = arith.constant 0 : index
    %172 = vector.load %arg25[%c0_77, %c1, %c0_78, %c0_79] : memref<1x4x8x16xf32, #tpu.memory_space<vmem>>, vector<1x1x8x16xf32>
    %173 = vector.shape_cast %172 : vector<1x1x8x16xf32> to vector<8x16xf32>
    %174 = vector.shape_cast %171 : vector<8x16xf32> to vector<1x1x8x16xf32>
    tpu.vector_store %arg25[%c0_77, %c1, %c0_78, %c0_79], %174 {strides = array<i32>} : memref<1x4x8x16xf32, #tpu.memory_space<vmem>>, vector<1x1x8x16xf32>,
    %cst_80 = arith.constant dense<0.000000e+00> : vector<8x8xf32>
    %175 = tpu.matmul %171, %159, %cst_80 {dimension_numbers = #tpu.dot_dimension_numbers<[1], [0], [0], [1], [0, 0, 1, 1], [], []>} : vector<8x16xf32>, vector<16x8xf32>, vector<8x8xf32> -> vector<8x8xf32>
    %176 = vector.extract_strided_slice %134 {offsets = [8, 0], sizes = [8, 32], strides = [1, 1]} : vector<32x32xf32> to vector<8x32xf32>
    %cst_81 = arith.constant dense<0.000000e+00> : vector<8x32xf32>
    %177 = tpu.matmul %175, %176, %cst_81 {dimension_numbers = #tpu.dot_dimension_numbers<[1], [0], [0], [1], [0, 0, 1, 1], [], []>} : vector<8x8xf32>, vector<8x32xf32>, vector<8x32xf32> -> vector<8x32xf32>
    %178 = arith.addf %156, %177 : vector<8x32xf32>
    %179 = vector.extract_strided_slice %126 {offsets = [0, 16], sizes = [8, 8], strides = [1, 1]} : vector<8x32xf32> to vector<8x8xf32>
    %180 = vector.extract_strided_slice %132 {offsets = [0, 16], sizes = [16, 8], strides = [1, 1]} : vector<16x32xf32> to vector<16x8xf32>
    %181 = vector.extract_strided_slice %133 {offsets = [0, 16], sizes = [16, 8], strides = [1, 1]} : vector<16x32xf32> to vector<16x8xf32>
    %cst_82 = arith.constant dense<0.000000e+00> : vector<8x16xf32>
    %182 = tpu.matmul %179, %180, %cst_82 {dimension_numbers = #tpu.dot_dimension_numbers<[1], [1], [0], [0], [0, 0, 1, 0], [], []>} : vector<8x8xf32>, vector<16x8xf32>, vector<8x16xf32> -> vector<8x16xf32>
    %cst_83 = arith.constant 0.353553385 : f32
    %183 = vector.broadcast %cst_83 : f32 to vector<8x16xf32>
    %184 = arith.mulf %182, %183 : vector<8x16xf32>
    %cst_84 = arith.constant dense<0xFF800000> : vector<8xf32>
    %185 = vector.multi_reduction <maximumf>, %184, %cst_84 [1] : vector<8x16xf32> to vector<8xf32>
    %186 = vector.shape_cast %185 : vector<8xf32> to vector<8x1xf32>
    %187 = vector.broadcast %186 : vector<8x1xf32> to vector<8x16xf32>
    %188 = arith.subf %184, %187 : vector<8x16xf32>
    %189 = math.exp %188 : vector<8x16xf32>
    %cst_85 = arith.constant dense<0.000000e+00> : vector<8xf32>
    %190 = vector.multi_reduction <add>, %189, %cst_85 [1] : vector<8x16xf32> to vector<8xf32>
    %191 = vector.shape_cast %190 : vector<8xf32> to vector<8x1xf32>
    %192 = vector.broadcast %191 : vector<8x1xf32> to vector<8x16xf32>
    %193 = arith.divf %189, %192 : vector<8x16xf32>
    %c0_86 = arith.constant 0 : index
    %c2 = arith.constant 2 : index
    %c0_87 = arith.constant 0 : index
    %c0_88 = arith.constant 0 : index
    %194 = vector.load %arg25[%c0_86, %c2, %c0_87, %c0_88] : memref<1x4x8x16xf32, #tpu.memory_space<vmem>>, vector<1x1x8x16xf32>
    %195 = vector.shape_cast %194 : vector<1x1x8x16xf32> to vector<8x16xf32>
    %196 = vector.shape_cast %193 : vector<8x16xf32> to vector<1x1x8x16xf32>
    tpu.vector_store %arg25[%c0_86, %c2, %c0_87, %c0_88], %196 {strides = array<i32>} : memref<1x4x8x16xf32, #tpu.memory_space<vmem>>, vector<1x1x8x16xf32>,
    %cst_89 = arith.constant dense<0.000000e+00> : vector<8x8xf32>
    %197 = tpu.matmul %193, %181, %cst_89 {dimension_numbers = #tpu.dot_dimension_numbers<[1], [0], [0], [1], [0, 0, 1, 1], [], []>} : vector<8x16xf32>, vector<16x8xf32>, vector<8x8xf32> -> vector<8x8xf32>
    %198 = vector.extract_strided_slice %134 {offsets = [16, 0], sizes = [8, 32], strides = [1, 1]} : vector<32x32xf32> to vector<8x32xf32>
    %cst_90 = arith.constant dense<0.000000e+00> : vector<8x32xf32>
    %199 = tpu.matmul %197, %198, %cst_90 {dimension_numbers = #tpu.dot_dimension_numbers<[1], [0], [0], [1], [0, 0, 1, 1], [], []>} : vector<8x8xf32>, vector<8x32xf32>, vector<8x32xf32> -> vector<8x32xf32>
    %200 = arith.addf %178, %199 : vector<8x32xf32>
    %201 = vector.extract_strided_slice %126 {offsets = [0, 24], sizes = [8, 8], strides = [1, 1]} : vector<8x32xf32> to vector<8x8xf32>
    %202 = vector.extract_strided_slice %132 {offsets = [0, 24], sizes = [16, 8], strides = [1, 1]} : vector<16x32xf32> to vector<16x8xf32>
    %203 = vector.extract_strided_slice %133 {offsets = [0, 24], sizes = [16, 8], strides = [1, 1]} : vector<16x32xf32> to vector<16x8xf32>
    %cst_91 = arith.constant dense<0.000000e+00> : vector<8x16xf32>
    %204 = tpu.matmul %201, %202, %cst_91 {dimension_numbers = #tpu.dot_dimension_numbers<[1], [1], [0], [0], [0, 0, 1, 0], [], []>} : vector<8x8xf32>, vector<16x8xf32>, vector<8x16xf32> -> vector<8x16xf32>
    %cst_92 = arith.constant 0.353553385 : f32
    %205 = vector.broadcast %cst_92 : f32 to vector<8x16xf32>
    %206 = arith.mulf %204, %205 : vector<8x16xf32>
    %cst_93 = arith.constant dense<0xFF800000> : vector<8xf32>
    %207 = vector.multi_reduction <maximumf>, %206, %cst_93 [1] : vector<8x16xf32> to vector<8xf32>
    %208 = vector.shape_cast %207 : vector<8xf32> to vector<8x1xf32>
    %209 = vector.broadcast %208 : vector<8x1xf32> to vector<8x16xf32>
    %210 = arith.subf %206, %209 : vector<8x16xf32>
    %211 = math.exp %210 : vector<8x16xf32>
    %cst_94 = arith.constant dense<0.000000e+00> : vector<8xf32>
    %212 = vector.multi_reduction <add>, %211, %cst_94 [1] : vector<8x16xf32> to vector<8xf32>
    %213 = vector.shape_cast %212 : vector<8xf32> to vector<8x1xf32>
    %214 = vector.broadcast %213 : vector<8x1xf32> to vector<8x16xf32>
    %215 = arith.divf %211, %214 : vector<8x16xf32>
    %c0_95 = arith.constant 0 : index
    %c3 = arith.constant 3 : index
    %c0_96 = arith.constant 0 : index
    %c0_97 = arith.constant 0 : index
    %216 = vector.load %arg25[%c0_95, %c3, %c0_96, %c0_97] : memref<1x4x8x16xf32, #tpu.memory_space<vmem>>, vector<1x1x8x16xf32>
    %217 = vector.shape_cast %216 : vector<1x1x8x16xf32> to vector<8x16xf32>
    %218 = vector.shape_cast %215 : vector<8x16xf32> to vector<1x1x8x16xf32>
    tpu.vector_store %arg25[%c0_95, %c3, %c0_96, %c0_97], %218 {strides = array<i32>} : memref<1x4x8x16xf32, #tpu.memory_space<vmem>>, vector<1x1x8x16xf32>,
    %cst_98 = arith.constant dense<0.000000e+00> : vector<8x8xf32>
    %219 = tpu.matmul %215, %203, %cst_98 {dimension_numbers = #tpu.dot_dimension_numbers<[1], [0], [0], [1], [0, 0, 1, 1], [], []>} : vector<8x16xf32>, vector<16x8xf32>, vector<8x8xf32> -> vector<8x8xf32>
    %220 = vector.extract_strided_slice %134 {offsets = [24, 0], sizes = [8, 32], strides = [1, 1]} : vector<32x32xf32> to vector<8x32xf32>
    %cst_99 = arith.constant dense<0.000000e+00> : vector<8x32xf32>
    %221 = tpu.matmul %219, %220, %cst_99 {dimension_numbers = #tpu.dot_dimension_numbers<[1], [0], [0], [1], [0, 0, 1, 1], [], []>} : vector<8x8xf32>, vector<8x32xf32>, vector<8x32xf32> -> vector<8x32xf32>
    %222 = arith.addf %200, %221 : vector<8x32xf32>
    %223 = vector.broadcast %135 : vector<1x32xf32> to vector<8x32xf32>
    %224 = arith.addf %222, %223 : vector<8x32xf32>
    %225 = arith.addf %121, %224 : vector<8x32xf32>
    %c0_100 = arith.constant 0 : index
    %c0_101 = arith.constant 0 : index
    %226 = vector.load %arg16[%c0_100, %c0_101] : memref<1x32xf32, #tpu.memory_space<vmem>>, vector<1x32xf32>
    %c0_102 = arith.constant 0 : index
    %c0_103 = arith.constant 0 : index
    %227 = vector.load %arg17[%c0_102, %c0_103] : memref<1x32xf32, #tpu.memory_space<vmem>>, vector<1x32xf32>
    %cst_104 = arith.constant dense<0.000000e+00> : vector<8xf32>
    %228 = vector.multi_reduction <add>, %225, %cst_104 [1] : vector<8x32xf32> to vector<8xf32>
    %229 = vector.shape_cast %228 : vector<8xf32> to vector<8x1xf32>
    %cst_105 = arith.constant 3.200000e+01 : f32
    %230 = vector.broadcast %cst_105 : f32 to vector<8x1xf32>
    %231 = arith.divf %229, %230 : vector<8x1xf32>
    %232 = vector.broadcast %231 : vector<8x1xf32> to vector<8x32xf32>
    %233 = arith.subf %225, %232 : vector<8x32xf32>
    %234 = arith.mulf %233, %233 : vector<8x32xf32>
    %cst_106 = arith.constant dense<0.000000e+00> : vector<8xf32>
    %235 = vector.multi_reduction <add>, %234, %cst_106 [1] : vector<8x32xf32> to vector<8xf32>
    %236 = vector.shape_cast %235 : vector<8xf32> to vector<8x1xf32>
    %cst_107 = arith.constant 3.200000e+01 : f32
    %237 = vector.broadcast %cst_107 : f32 to vector<8x1xf32>
    %238 = arith.divf %236, %237 : vector<8x1xf32>
    %239 = vector.broadcast %231 : vector<8x1xf32> to vector<8x32xf32>
    %240 = arith.subf %225, %239 : vector<8x32xf32>
    %cst_108 = arith.constant 9.99999974E-6 : f32
    %241 = vector.broadcast %cst_108 : f32 to vector<8x1xf32>
    %242 = arith.addf %238, %241 : vector<8x1xf32>
    %243 = math.rsqrt %242 : vector<8x1xf32>
    %244 = vector.broadcast %243 : vector<8x1xf32> to vector<8x32xf32>
    %245 = arith.mulf %240, %244 : vector<8x32xf32>
    %246 = vector.broadcast %226 : vector<1x32xf32> to vector<8x32xf32>
    %247 = arith.mulf %245, %246 : vector<8x32xf32>
    %248 = vector.broadcast %227 : vector<1x32xf32> to vector<8x32xf32>
    %249 = arith.addf %247, %248 : vector<8x32xf32>
    %c0_109 = arith.constant 0 : index
    %c0_110 = arith.constant 0 : index
    %250 = vector.load %arg18[%c0_109, %c0_110] : memref<32x64xf32, #tpu.memory_space<vmem>>, vector<32x64xf32>
    %cst_111 = arith.constant dense<0.000000e+00> : vector<8x64xf32>
    %251 = tpu.matmul %249, %250, %cst_111 {dimension_numbers = #tpu.dot_dimension_numbers<[1], [0], [0], [1], [0, 0, 1, 1], [], []>} : vector<8x32xf32>, vector<32x64xf32>, vector<8x64xf32> -> vector<8x64xf32>
    %c0_112 = arith.constant 0 : index
    %c0_113 = arith.constant 0 : index
    %252 = vector.load %arg19[%c0_112, %c0_113] : memref<1x64xf32, #tpu.memory_space<vmem>>, vector<1x64xf32>
    %253 = vector.broadcast %252 : vector<1x64xf32> to vector<8x64xf32>
    %254 = arith.addf %251, %253 : vector<8x64xf32>
    %cst_114 = arith.constant 0.000000e+00 : f32
    %255 = vector.broadcast %cst_114 : f32 to vector<8x64xf32>
    %256 = arith.maximumf %254, %255 : vector<8x64xf32>
    %c0_115 = arith.constant 0 : index
    %c0_116 = arith.constant 0 : index
    %257 = vector.load %arg20[%c0_115, %c0_116] : memref<64x32xf32, #tpu.memory_space<vmem>>, vector<64x32xf32>
    %cst_117 = arith.constant dense<0.000000e+00> : vector<8x32xf32>
    %258 = tpu.matmul %256, %257, %cst_117 {dimension_numbers = #tpu.dot_dimension_numbers<[1], [0], [0], [1], [0, 0, 1, 1], [], []>} : vector<8x64xf32>, vector<64x32xf32>, vector<8x32xf32> -> vector<8x32xf32>
    %c0_118 = arith.constant 0 : index
    %c0_119 = arith.constant 0 : index
    %259 = vector.load %arg21[%c0_118, %c0_119] : memref<1x32xf32, #tpu.memory_space<vmem>>, vector<1x32xf32>
    %260 = vector.broadcast %259 : vector<1x32xf32> to vector<8x32xf32>
    %261 = arith.addf %258, %260 : vector<8x32xf32>
    %262 = arith.addf %249, %261 : vector<8x32xf32>
    %c0_120 = arith.constant 0 : index
    %c0_121 = arith.constant 0 : index
    %263 = vector.load %arg22[%c0_120, %c0_121] : memref<1x32xf32, #tpu.memory_space<vmem>>, vector<1x32xf32>
    %c0_122 = arith.constant 0 : index
    %c0_123 = arith.constant 0 : index
    %264 = vector.load %arg23[%c0_122, %c0_123] : memref<1x32xf32, #tpu.memory_space<vmem>>, vector<1x32xf32>
    %cst_124 = arith.constant dense<0.000000e+00> : vector<8xf32>
    %265 = vector.multi_reduction <add>, %262, %cst_124 [1] : vector<8x32xf32> to vector<8xf32>
    %266 = vector.shape_cast %265 : vector<8xf32> to vector<8x1xf32>
    %cst_125 = arith.constant 3.200000e+01 : f32
    %267 = vector.broadcast %cst_125 : f32 to vector<8x1xf32>
    %268 = arith.divf %266, %267 : vector<8x1xf32>
    %269 = vector.broadcast %268 : vector<8x1xf32> to vector<8x32xf32>
    %270 = arith.subf %262, %269 : vector<8x32xf32>
    %271 = arith.mulf %270, %270 : vector<8x32xf32>
    %cst_126 = arith.constant dense<0.000000e+00> : vector<8xf32>
    %272 = vector.multi_reduction <add>, %271, %cst_126 [1] : vector<8x32xf32> to vector<8xf32>
    %273 = vector.shape_cast %272 : vector<8xf32> to vector<8x1xf32>
    %cst_127 = arith.constant 3.200000e+01 : f32
    %274 = vector.broadcast %cst_127 : f32 to vector<8x1xf32>
    %275 = arith.divf %273, %274 : vector<8x1xf32>
    %276 = vector.broadcast %268 : vector<8x1xf32> to vector<8x32xf32>
    %277 = arith.subf %262, %276 : vector<8x32xf32>
    %cst_128 = arith.constant 9.99999974E-6 : f32
    %278 = vector.broadcast %cst_128 : f32 to vector<8x1xf32>
    %279 = arith.addf %275, %278 : vector<8x1xf32>
    %280 = math.rsqrt %279 : vector<8x1xf32>
    %281 = vector.broadcast %280 : vector<8x1xf32> to vector<8x32xf32>
    %282 = arith.mulf %277, %281 : vector<8x32xf32>
    %283 = vector.broadcast %263 : vector<1x32xf32> to vector<8x32xf32>
    %284 = arith.mulf %282, %283 : vector<8x32xf32>
    %285 = vector.broadcast %264 : vector<1x32xf32> to vector<8x32xf32>
    %286 = arith.addf %284, %285 : vector<8x32xf32>
    %c0_129 = arith.constant 0 : index
    %c0_130 = arith.constant 0 : index
    %c0_131 = arith.constant 0 : index
    %287 = vector.load %arg24[%c0_129, %c0_130, %c0_131] : memref<1x8x32xf32, #tpu.memory_space<vmem>>, vector<1x8x32xf32>
    %288 = vector.shape_cast %287 : vector<1x8x32xf32> to vector<8x32xf32>
    %289 = vector.shape_cast %286 : vector<8x32xf32> to vector<1x8x32xf32>
    tpu.vector_store %arg24[%c0_129, %c0_130, %c0_131], %289 {strides = array<i32>} : memref<1x8x32xf32, #tpu.memory_space<vmem>>, vector<1x8x32xf32>,
    return
  }
  func.func @transform_0(%arg0: i32) -> (i32, i32, i32) {
    %c0_i32 = arith.constant 0 : i32
    %c0_i32_0 = arith.constant 0 : i32
    %c0_i32_1 = arith.constant 0 : i32
    return %arg0, %c0_i32, %c0_i32_0 : i32, i32, i32
  }
  func.func @transform_1(%arg0: i32) -> (i32, i32, i32) {
    %c0_i32 = arith.constant 0 : i32
    %c0_i32_0 = arith.constant 0 : i32
    %c0_i32_1 = arith.constant 0 : i32
    return %arg0, %c0_i32, %c0_i32_0 : i32, i32, i32
  }
  func.func @transform_2(%arg0: i32) -> (i32, i32, i32) {
    %c0_i32 = arith.constant 0 : i32
    %c0_i32_0 = arith.constant 0 : i32
    %c0_i32_1 = arith.constant 0 : i32
    return %arg0, %c0_i32, %c0_i32_0 : i32, i32, i32
  }
  func.func @transform_3(%arg0: i32) -> (i32, i32) {
    %c0_i32 = arith.constant 0 : i32
    %c0_i32_0 = arith.constant 0 : i32
    %c0_i32_1 = arith.constant 0 : i32
    return %c0_i32, %c0_i32_0 : i32, i32
  }
  func.func @transform_4(%arg0: i32) -> (i32, i32) {
    %c0_i32 = arith.constant 0 : i32
    %c0_i32_0 = arith.constant 0 : i32
    %c0_i32_1 = arith.constant 0 : i32
    return %c0_i32, %c0_i32_0 : i32, i32
  }
  func.func @transform_5(%arg0: i32) -> (i32, i32) {
    %c0_i32 = arith.constant 0 : i32
    %c0_i32_0 = arith.constant 0 : i32
    %c0_i32_1 = arith.constant 0 : i32
    return %c0_i32, %c0_i32_0 : i32, i32
  }
  func.func @transform_6(%arg0: i32) -> (i32, i32) {
    %c0_i32 = arith.constant 0 : i32
    %c0_i32_0 = arith.constant 0 : i32
    %c0_i32_1 = arith.constant 0 : i32
    return %c0_i32, %c0_i32_0 : i32, i32
  }
  func.func @transform_7(%arg0: i32) -> (i32, i32) {
    %c0_i32 = arith.constant 0 : i32
    %c0_i32_0 = arith.constant 0 : i32
    %c0_i32_1 = arith.constant 0 : i32
    return %c0_i32, %c0_i32_0 : i32, i32
  }
  func.func @transform_8(%arg0: i32) -> (i32, i32) {
    %c0_i32 = arith.constant 0 : i32
    %c0_i32_0 = arith.constant 0 : i32
    %c0_i32_1 = arith.constant 0 : i32
    return %c0_i32, %c0_i32_0 : i32, i32
  }
  func.func @transform_9(%arg0: i32) -> (i32, i32) {
    %c0_i32 = arith.constant 0 : i32
    %c0_i32_0 = arith.constant 0 : i32
    %c0_i32_1 = arith.constant 0 : i32
    return %c0_i32, %c0_i32_0 : i32, i32
  }
  func.func @transform_10(%arg0: i32) -> (i32, i32) {
    %c0_i32 = arith.constant 0 : i32
    %c0_i32_0 = arith.constant 0 : i32
    %c0_i32_1 = arith.constant 0 : i32
    return %c0_i32, %c0_i32_0 : i32, i32
  }
  func.func @transform_11(%arg0: i32) -> (i32, i32) {
    %c0_i32 = arith.constant 0 : i32
    %c0_i32_0 = arith.constant 0 : i32
    %c0_i32_1 = arith.constant 0 : i32
    return %c0_i32, %c0_i32_0 : i32, i32
  }
  func.func @transform_12(%arg0: i32) -> (i32, i32) {
    %c0_i32 = arith.constant 0 : i32
    %c0_i32_0 = arith.constant 0 : i32
    %c0_i32_1 = arith.constant 0 : i32
    return %c0_i32, %c0_i32_0 : i32, i32
  }
  func.func @transform_13(%arg0: i32) -> (i32, i32) {
    %c0_i32 = arith.constant 0 : i32
    %c0_i32_0 = arith.constant 0 : i32
    %c0_i32_1 = arith.constant 0 : i32
    return %c0_i32, %c0_i32_0 : i32, i32
  }
  func.func @transform_14(%arg0: i32) -> (i32, i32) {
    %c0_i32 = arith.constant 0 : i32
    %c0_i32_0 = arith.constant 0 : i32
    %c0_i32_1 = arith.constant 0 : i32
    return %c0_i32, %c0_i32_0 : i32, i32
  }
  func.func @transform_15(%arg0: i32) -> (i32, i32) {
    %c0_i32 = arith.constant 0 : i32
    %c0_i32_0 = arith.constant 0 : i32
    %c0_i32_1 = arith.constant 0 : i32
    return %c0_i32, %c0_i32_0 : i32, i32
  }
  func.func @transform_16(%arg0: i32) -> (i32, i32) {
    %c0_i32 = arith.constant 0 : i32
    %c0_i32_0 = arith.constant 0 : i32
    %c0_i32_1 = arith.constant 0 : i32
    return %c0_i32, %c0_i32_0 : i32, i32
  }
  func.func @transform_17(%arg0: i32) -> (i32, i32) {
    %c0_i32 = arith.constant 0 : i32
    %c0_i32_0 = arith.constant 0 : i32
    %c0_i32_1 = arith.constant 0 : i32
    return %c0_i32, %c0_i32_0 : i32, i32
  }
  func.func @transform_18(%arg0: i32) -> (i32, i32) {
    %c0_i32 = arith.constant 0 : i32
    %c0_i32_0 = arith.constant 0 : i32
    %c0_i32_1 = arith.constant 0 : i32
    return %c0_i32, %c0_i32_0 : i32, i32
  }
  func.func @transform_19(%arg0: i32) -> (i32, i32) {
    %c0_i32 = arith.constant 0 : i32
    %c0_i32_0 = arith.constant 0 : i32
    %c0_i32_1 = arith.constant 0 : i32
    return %c0_i32, %c0_i32_0 : i32, i32
  }
  func.func @transform_20(%arg0: i32) -> (i32, i32) {
    %c0_i32 = arith.constant 0 : i32
    %c0_i32_0 = arith.constant 0 : i32
    %c0_i32_1 = arith.constant 0 : i32
    return %c0_i32, %c0_i32_0 : i32, i32
  }
  func.func @transform_21(%arg0: i32) -> (i32, i32) {
    %c0_i32 = arith.constant 0 : i32
    %c0_i32_0 = arith.constant 0 : i32
    %c0_i32_1 = arith.constant 0 : i32
    return %c0_i32, %c0_i32_0 : i32, i32
  }
  func.func @transform_22(%arg0: i32) -> (i32, i32) {
    %c0_i32 = arith.constant 0 : i32
    %c0_i32_0 = arith.constant 0 : i32
    %c0_i32_1 = arith.constant 0 : i32
    return %c0_i32, %c0_i32_0 : i32, i32
  }
  func.func @transform_23(%arg0: i32) -> (i32, i32, i32) {
    %c0_i32 = arith.constant 0 : i32
    %c0_i32_0 = arith.constant 0 : i32
    %c0_i32_1 = arith.constant 0 : i32
    return %arg0, %c0_i32, %c0_i32_0 : i32, i32, i32
  }
  func.func @transform_24(%arg0: i32) -> (i32, i32, i32, i32) {
    %c0_i32 = arith.constant 0 : i32
    %c0_i32_0 = arith.constant 0 : i32
    %c0_i32_1 = arith.constant 0 : i32
    %c0_i32_2 = arith.constant 0 : i32
    return %arg0, %c0_i32, %c0_i32_0, %c0_i32_1 : i32, i32, i32, i32
  }
}

</mosaic_0001>

<llo_original>
// kernel: decoder_layer_forward.1
$region0: #{decoder_layer_forward.1}
  #allocation0 [shape = 'u32[]', space=smem, size = 0x4, offset = 0x4, fixed_abs, tag = 'smem constant byte address 0x4 - core index']
  #allocation1 [shape = 'u32[144,128]{1,0:T(1,128)}', space=vmem, size = 0x12000, scoped, tag = 'internal scratch']
  %s0 = inlined_call_operand.vmem [shape: f32[2,8,32], index: 0, kind: input, shape index: {}]
  %s1 = inlined_call_operand.vmem [shape: f32[2,16,32], index: 1, kind: input, shape index: {}]
  %s2 = inlined_call_operand.vmem [shape: f32[2,8,8], index: 2, kind: input, shape index: {}]
  %s3 = inlined_call_operand.vmem [shape: f32[32,96], index: 3, kind: input, shape index: {}]
  %s4 = inlined_call_operand.vmem [shape: f32[1,96], index: 4, kind: input, shape index: {}]
  %s5 = inlined_call_operand.vmem [shape: f32[32,32], index: 5, kind: input, shape index: {}]
  %s6 = inlined_call_operand.vmem [shape: f32[1,32], index: 6, kind: input, shape index: {}]
  %s7 = inlined_call_operand.vmem [shape: f32[1,32], index: 7, kind: input, shape index: {}]
  %s8 = inlined_call_operand.vmem [shape: f32[1,32], index: 8, kind: input, shape index: {}]
  %s9 = inlined_call_operand.vmem [shape: f32[32,32], index: 9, kind: input, shape index: {}]
  %s10 = inlined_call_operand.vmem [shape: f32[1,32], index: 10, kind: input, shape index: {}]
  %s11 = inlined_call_operand.vmem [shape: f32[32,64], index: 11, kind: input, shape index: {}]
  %s12 = inlined_call_operand.vmem [shape: f32[1,64], index: 12, kind: input, shape index: {}]
  %s13 = inlined_call_operand.vmem [shape: f32[32,32], index: 13, kind: input, shape index: {}]
  %s14 = inlined_call_operand.vmem [shape: f32[1,32], index: 14, kind: input, shape index: {}]
  %s15 = inlined_call_operand.vmem [shape: f32[1,32], index: 15, kind: input, shape index: {}]
  %s16 = inlined_call_operand.vmem [shape: f32[1,32], index: 16, kind: input, shape index: {}]
  %s17 = inlined_call_operand.vmem [shape: f32[32,64], index: 17, kind: input, shape index: {}]
  %s18 = inlined_call_operand.vmem [shape: f32[1,64], index: 18, kind: input, shape index: {}]
  %s19 = inlined_call_operand.vmem [shape: f32[64,32], index: 19, kind: input, shape index: {}]
  %s20 = inlined_call_operand.vmem [shape: f32[1,32], index: 20, kind: input, shape index: {}]
  %s21 = inlined_call_operand.vmem [shape: f32[1,32], index: 21, kind: input, shape index: {}]
  %s22 = inlined_call_operand.vmem [shape: f32[1,32], index: 22, kind: input, shape index: {}]
  %s23 = inlined_call_operand.vmem [shape: f32[2,8,32], index: 23, kind: output, shape index: {0}]
  %s24 = inlined_call_operand.hbm [shape: f32[2,4,8,16], index: 24, kind: output, shape index: {1}]
  %25 = xla_tuple %s23, %s24
  %s26 = sld [smem:[#allocation0]]
  $region133: #{decoder_layer_forward.1} parent=0
    _
  %s28 = ssub.s32 1, %s26
  %s29 = scalar_select 0, %s28, %s26
  $region1: #{decoder_layer_forward.1} parent=0
    #allocation2 [shape = 'u8[32768]{0}', space=vmem, size = 0x8000, scoped, tag = 'output window, operand 1']
    #allocation3 [shape = 's32[2]{0}', space=sflag, size = 0x8, scoped, tag = 'scoped memory for decoder_layer_forward.1']
    %30 = vsyncpa [#allocation3], 0
    %s31 = scalar_lea.sflag [#allocation3], 1
    %32 = vsyncpa %s31, 0
    loop: start=0, step=1, limit=4
    $region2: #{decoder_layer_forward.1} parent=1 // loop_pre_header
      _
    $region3: #{decoder_layer_forward.1} parent=1 // loop_header
      %s34 = sphi 0, %s38
      %p35 = scmp.ge.s32.totalorder %s34, 4
      %s44 = sphi 0, %s46
      %s47 = sphi 0, %s44
      %s48 = sphi 0, %s47
      %s64 = sphi 0, %s48
      %s70 = sphi 0, %s72
      %s73 = sphi 0, %s70
      %s74 = sphi 0, %s73
      %s90 = sphi 0, %s74
      %s96 = sphi 0, %s98
      %s99 = sphi 0, %s96
      %s100 = sphi 0, %s99
      %s116 = sphi 0, %s100
      %s120 = sphi 0, %s120
      %s122 = sphi 0, %s120
      %s123 = sphi 0, %s122
      %s137 = sphi 0, %s123
      %s141 = sphi 0, %s141
      %s143 = sphi 0, %s141
      %s144 = sphi 0, %s143
      %s158 = sphi 0, %s144
      %s162 = sphi 0, %s162
      %s164 = sphi 0, %s162
      %s165 = sphi 0, %s164
      %s179 = sphi 0, %s165
      %s183 = sphi 0, %s183
      %s185 = sphi 0, %s183
      %s186 = sphi 0, %s185
      %s200 = sphi 0, %s186
      %s204 = sphi 0, %s204
      %s206 = sphi 0, %s204
      %s207 = sphi 0, %s206
      %s221 = sphi 0, %s207
      %s225 = sphi 0, %s225
      %s227 = sphi 0, %s225
      %s228 = sphi 0, %s227
      %s242 = sphi 0, %s228
      %s246 = sphi 0, %s246
      %s248 = sphi 0, %s246
      %s249 = sphi 0, %s248
      %s263 = sphi 0, %s249
      %s267 = sphi 0, %s267
      %s269 = sphi 0, %s267
      %s270 = sphi 0, %s269
      %s284 = sphi 0, %s270
      %s288 = sphi 0, %s288
      %s290 = sphi 0, %s288
      %s291 = sphi 0, %s290
      %s305 = sphi 0, %s291
      %s309 = sphi 0, %s309
      %s311 = sphi 0, %s309
      %s312 = sphi 0, %s311
      %s326 = sphi 0, %s312
      %s330 = sphi 0, %s330
      %s332 = sphi 0, %s330
      %s333 = sphi 0, %s332
      %s347 = sphi 0, %s333
      %s351 = sphi 0, %s351
      %s353 = sphi 0, %s351
      %s354 = sphi 0, %s353
      %s368 = sphi 0, %s354
      %s372 = sphi 0, %s372
      %s374 = sphi 0, %s372
      %s375 = sphi 0, %s374
      %s389 = sphi 0, %s375
      %s393 = sphi 0, %s393
      %s395 = sphi 0, %s393
      %s396 = sphi 0, %s395
      %s410 = sphi 0, %s396
      %s414 = sphi 0, %s414
      %s416 = sphi 0, %s414
      %s417 = sphi 0, %s416
      %s431 = sphi 0, %s417
      %s435 = sphi 0, %s435
      %s437 = sphi 0, %s435
      %s438 = sphi 0, %s437
      %s452 = sphi 0, %s438
      %s456 = sphi 0, %s456
      %s458 = sphi 0, %s456
      %s459 = sphi 0, %s458
      %s473 = sphi 0, %s459
      %s477 = sphi 0, %s477
      %s479 = sphi 0, %s477
      %s480 = sphi 0, %s479
      %s494 = sphi 0, %s480
      %s498 = sphi 0, %s498
      %s500 = sphi 0, %s498
      %s501 = sphi 0, %s500
      %s515 = sphi 0, %s501
      %s519 = sphi 0, %s519
      %s521 = sphi 0, %s519
      %s522 = sphi 0, %s521
      %s536 = sphi 0, %s522
      %s542 = sphi 0, %s544
      %s545 = sphi 0, %s542
      %s546 = sphi 0, %s545
      %s562 = sphi 0, %s546
      %s568 = sphi 0, %s570
      %s571 = sphi 0, %s568
      %s572 = sphi 0, %s571
      %s588 = sphi 0, %s572
    $region4: #{decoder_layer_forward.1} parent=1 // loop_header_branch
      %37 = sbr.rel (%p35) target = $region8
    $region5: #{decoder_layer_forward.1} parent=1 // loop_body
      %s39 = ssub.s32 %s34, 1
      %s40 = ssub.s32 %s34, 2
      %s41 = sadd.s32 %s34, 1
      %s42 = ssub.s32 %s34, %s41
      %p43 = scmp.eq.s32.totalorder %s42, 0
      %s45 = sadd.s32 %s44, 1
      %s46 = scalar_select %p43, %s44, %s45
      %p49 = pneg %p43
      %p50 = scmp.eq.s32.totalorder %s34, 1
      %p51 = por %p49, %p50
      %p52 = scmp.ne.s32.totalorder %s44, %s47
      %p53 = scmp.eq.s32.totalorder %s34, 0
      %p54 = por %p52, %p53
      %p55 = scmp.ne.s32.totalorder %s44, %s47
      %p56 = scmp.eq.s32.totalorder %s39, 1
      %p57 = por %p55, %p56
      %p58 = scmp.ne.s32.totalorder %s47, %s48
      %p59 = scmp.eq.s32.totalorder %s39, 0
      %p60 = por %p58, %p59
      %p61 = scmp.ne.s32.totalorder %s47, %s48
      %p62 = scmp.eq.s32.totalorder %s40, 1
      %p63 = por %p61, %p62
      %p65 = scmp.ne.s32.totalorder %s48, %s64
      %p66 = scmp.eq.s32.totalorder %s40, 0
      %p67 = por %p65, %p66
      %s68 = ssub.s32 %s34, %s41
      %p69 = scmp.eq.s32.totalorder %s68, 0
      %s71 = sadd.s32 %s70, 1
      %s72 = scalar_select %p69, %s70, %s71
      %p75 = pneg %p69
      %p76 = scmp.eq.s32.totalorder %s34, 1
      %p77 = por %p75, %p76
      %p78 = scmp.ne.s32.totalorder %s70, %s73
      %p79 = scmp.eq.s32.totalorder %s34, 0
      %p80 = por %p78, %p79
      %p81 = scmp.ne.s32.totalorder %s70, %s73
      %p82 = scmp.eq.s32.totalorder %s39, 1
      %p83 = por %p81, %p82
      %p84 = scmp.ne.s32.totalorder %s73, %s74
      %p85 = scmp.eq.s32.totalorder %s39, 0
      %p86 = por %p84, %p85
      %p87 = scmp.ne.s32.totalorder %s73, %s74
      %p88 = scmp.eq.s32.totalorder %s40, 1
      %p89 = por %p87, %p88
      %p91 = scmp.ne.s32.totalorder %s74, %s90
      %p92 = scmp.eq.s32.totalorder %s40, 0
      %p93 = por %p91, %p92
      %s94 = ssub.s32 %s34, %s41
      %p95 = scmp.eq.s32.totalorder %s94, 0
      %s97 = sadd.s32 %s96, 1
      %s98 = scalar_select %p95, %s96, %s97
      %p101 = pneg %p95
      %p102 = scmp.eq.s32.totalorder %s34, 1
      %p103 = por %p101, %p102
      %p104 = scmp.ne.s32.totalorder %s96, %s99
      %p105 = scmp.eq.s32.totalorder %s34, 0
      %p106 = por %p104, %p105
      %p107 = scmp.ne.s32.totalorder %s96, %s99
      %p108 = scmp.eq.s32.totalorder %s39, 1
      %p109 = por %p107, %p108
      %p110 = scmp.ne.s32.totalorder %s99, %s100
      %p111 = scmp.eq.s32.totalorder %s39, 0
      %p112 = por %p110, %p111
      %p113 = scmp.ne.s32.totalorder %s99, %s100
      %p114 = scmp.eq.s32.totalorder %s40, 1
      %p115 = por %p113, %p114
      %p117 = scmp.ne.s32.totalorder %s100, %s116
      %p118 = scmp.eq.s32.totalorder %s40, 0
      %p119 = por %p117, %p118
      %s121 = sadd.s32 %s120, 1
      %p124 = scmp.eq.s32.totalorder %s34, 1
      %p125 = scmp.ne.s32.totalorder %s120, %s122
      %p126 = scmp.eq.s32.totalorder %s34, 0
      %p127 = por %p125, %p126
      %p128 = scmp.ne.s32.totalorder %s120, %s122
      %p129 = scmp.eq.s32.totalorder %s39, 1
      %p130 = por %p128, %p129
      %p131 = scmp.ne.s32.totalorder %s122, %s123
      %p132 = scmp.eq.s32.totalorder %s39, 0
      %p133 = por %p131, %p132
      %p134 = scmp.ne.s32.totalorder %s122, %s123
      %p135 = scmp.eq.s32.totalorder %s40, 1
      %p136 = por %p134, %p135
      %p138 = scmp.ne.s32.totalorder %s123, %s137
      %p139 = scmp.eq.s32.totalorder %s40, 0
      %p140 = por %p138, %p139
      %s142 = sadd.s32 %s141, 1
      %p145 = scmp.eq.s32.totalorder %s34, 1
      %p146 = scmp.ne.s32.totalorder %s141, %s143
      %p147 = scmp.eq.s32.totalorder %s34, 0
      %p148 = por %p146, %p147
      %p149 = scmp.ne.s32.totalorder %s141, %s143
      %p150 = scmp.eq.s32.totalorder %s39, 1
      %p151 = por %p149, %p150
      %p152 = scmp.ne.s32.totalorder %s143, %s144
      %p153 = scmp.eq.s32.totalorder %s39, 0
      %p154 = por %p152, %p153
      %p155 = scmp.ne.s32.totalorder %s143, %s144
      %p156 = scmp.eq.s32.totalorder %s40, 1
      %p157 = por %p155, %p156
      %p159 = scmp.ne.s32.totalorder %s144, %s158
      %p160 = scmp.eq.s32.totalorder %s40, 0
      %p161 = por %p159, %p160
      %s163 = sadd.s32 %s162, 1
      %p166 = scmp.eq.s32.totalorder %s34, 1
      %p167 = scmp.ne.s32.totalorder %s162, %s164
      %p168 = scmp.eq.s32.totalorder %s34, 0
      %p169 = por %p167, %p168
      %p170 = scmp.ne.s32.totalorder %s162, %s164
      %p171 = scmp.eq.s32.totalorder %s39, 1
      %p172 = por %p170, %p171
      %p173 = scmp.ne.s32.totalorder %s164, %s165
      %p174 = scmp.eq.s32.totalorder %s39, 0
      %p175 = por %p173, %p174
      %p176 = scmp.ne.s32.totalorder %s164, %s165
      %p177 = scmp.eq.s32.totalorder %s40, 1
      %p178 = por %p176, %p177
      %p180 = scmp.ne.s32.totalorder %s165, %s179
      %p181 = scmp.eq.s32.totalorder %s40, 0
      %p182 = por %p180, %p181
      %s184 = sadd.s32 %s183, 1
      %p187 = scmp.eq.s32.totalorder %s34, 1
      %p188 = scmp.ne.s32.totalorder %s183, %s185
      %p189 = scmp.eq.s32.totalorder %s34, 0
      %p190 = por %p188, %p189
      %p191 = scmp.ne.s32.totalorder %s183, %s185
      %p192 = scmp.eq.s32.totalorder %s39, 1
      %p193 = por %p191, %p192
      %p194 = scmp.ne.s32.totalorder %s185, %s186
      %p195 = scmp.eq.s32.totalorder %s39, 0
      %p196 = por %p194, %p195
      %p197 = scmp.ne.s32.totalorder %s185, %s186
      %p198 = scmp.eq.s32.totalorder %s40, 1
      %p199 = por %p197, %p198
      %p201 = scmp.ne.s32.totalorder %s186, %s200
      %p202 = scmp.eq.s32.totalorder %s40, 0
      %p203 = por %p201, %p202
      %s205 = sadd.s32 %s204, 1
      %p208 = scmp.eq.s32.totalorder %s34, 1
      %p209 = scmp.ne.s32.totalorder %s204, %s206
      %p210 = scmp.eq.s32.totalorder %s34, 0
      %p211 = por %p209, %p210
      %p212 = scmp.ne.s32.totalorder %s204, %s206
      %p213 = scmp.eq.s32.totalorder %s39, 1
      %p214 = por %p212, %p213
      %p215 = scmp.ne.s32.totalorder %s206, %s207
      %p216 = scmp.eq.s32.totalorder %s39, 0
      %p217 = por %p215, %p216
      %p218 = scmp.ne.s32.totalorder %s206, %s207
      %p219 = scmp.eq.s32.totalorder %s40, 1
      %p220 = por %p218, %p219
      %p222 = scmp.ne.s32.totalorder %s207, %s221
      %p223 = scmp.eq.s32.totalorder %s40, 0
      %p224 = por %p222, %p223
      %s226 = sadd.s32 %s225, 1
      %p229 = scmp.eq.s32.totalorder %s34, 1
      %p230 = scmp.ne.s32.totalorder %s225, %s227
      %p231 = scmp.eq.s32.totalorder %s34, 0
      %p232 = por %p230, %p231
      %p233 = scmp.ne.s32.totalorder %s225, %s227
      %p234 = scmp.eq.s32.totalorder %s39, 1
      %p235 = por %p233, %p234
      %p236 = scmp.ne.s32.totalorder %s227, %s228
      %p237 = scmp.eq.s32.totalorder %s39, 0
      %p238 = por %p236, %p237
      %p239 = scmp.ne.s32.totalorder %s227, %s228
      %p240 = scmp.eq.s32.totalorder %s40, 1
      %p241 = por %p239, %p240
      %p243 = scmp.ne.s32.totalorder %s228, %s242
      %p244 = scmp.eq.s32.totalorder %s40, 0
      %p245 = por %p243, %p244
      %s247 = sadd.s32 %s246, 1
      %p250 = scmp.eq.s32.totalorder %s34, 1
      %p251 = scmp.ne.s32.totalorder %s246, %s248
      %p252 = scmp.eq.s32.totalorder %s34, 0
      %p253 = por %p251, %p252
      %p254 = scmp.ne.s32.totalorder %s246, %s248
      %p255 = scmp.eq.s32.totalorder %s39, 1
      %p256 = por %p254, %p255
      %p257 = scmp.ne.s32.totalorder %s248, %s249
      %p258 = scmp.eq.s32.totalorder %s39, 0
      %p259 = por %p257, %p258
      %p260 = scmp.ne.s32.totalorder %s248, %s249
      %p261 = scmp.eq.s32.totalorder %s40, 1
      %p262 = por %p260, %p261
      %p264 = scmp.ne.s32.totalorder %s249, %s263
      %p265 = scmp.eq.s32.totalorder %s40, 0
      %p266 = por %p264, %p265
      %s268 = sadd.s32 %s267, 1
      %p271 = scmp.eq.s32.totalorder %s34, 1
      %p272 = scmp.ne.s32.totalorder %s267, %s269
      %p273 = scmp.eq.s32.totalorder %s34, 0
      %p274 = por %p272, %p273
      %p275 = scmp.ne.s32.totalorder %s267, %s269
      %p276 = scmp.eq.s32.totalorder %s39, 1
      %p277 = por %p275, %p276
      %p278 = scmp.ne.s32.totalorder %s269, %s270
      %p279 = scmp.eq.s32.totalorder %s39, 0
      %p280 = por %p278, %p279
      %p281 = scmp.ne.s32.totalorder %s269, %s270
      %p282 = scmp.eq.s32.totalorder %s40, 1
      %p283 = por %p281, %p282
      %p285 = scmp.ne.s32.totalorder %s270, %s284
      %p286 = scmp.eq.s32.totalorder %s40, 0
      %p287 = por %p285, %p286
      %s289 = sadd.s32 %s288, 1
      %p292 = scmp.eq.s32.totalorder %s34, 1
      %p293 = scmp.ne.s32.totalorder %s288, %s290
      %p294 = scmp.eq.s32.totalorder %s34, 0
      %p295 = por %p293, %p294
      %p296 = scmp.ne.s32.totalorder %s288, %s290
      %p297 = scmp.eq.s32.totalorder %s39, 1
      %p298 = por %p296, %p297
      %p299 = scmp.ne.s32.totalorder %s290, %s291
      %p300 = scmp.eq.s32.totalorder %s39, 0
      %p301 = por %p299, %p300
      %p302 = scmp.ne.s32.totalorder %s290, %s291
      %p303 = scmp.eq.s32.totalorder %s40, 1
      %p304 = por %p302, %p303
      %p306 = scmp.ne.s32.totalorder %s291, %s305
      %p307 = scmp.eq.s32.totalorder %s40, 0
      %p308 = por %p306, %p307
      %s310 = sadd.s32 %s309, 1
      %p313 = scmp.eq.s32.totalorder %s34, 1
      %p314 = scmp.ne.s32.totalorder %s309, %s311
      %p315 = scmp.eq.s32.totalorder %s34, 0
      %p316 = por %p314, %p315
      %p317 = scmp.ne.s32.totalorder %s309, %s311
      %p318 = scmp.eq.s32.totalorder %s39, 1
      %p319 = por %p317, %p318
      %p320 = scmp.ne.s32.totalorder %s311, %s312
      %p321 = scmp.eq.s32.totalorder %s39, 0
      %p322 = por %p320, %p321
      %p323 = scmp.ne.s32.totalorder %s311, %s312
      %p324 = scmp.eq.s32.totalorder %s40, 1
      %p325 = por %p323, %p324
      %p327 = scmp.ne.s32.totalorder %s312, %s326
      %p328 = scmp.eq.s32.totalorder %s40, 0
      %p329 = por %p327, %p328
      %s331 = sadd.s32 %s330, 1
      %p334 = scmp.eq.s32.totalorder %s34, 1
      %p335 = scmp.ne.s32.totalorder %s330, %s332
      %p336 = scmp.eq.s32.totalorder %s34, 0
      %p337 = por %p335, %p336
      %p338 = scmp.ne.s32.totalorder %s330, %s332
      %p339 = scmp.eq.s32.totalorder %s39, 1
      %p340 = por %p338, %p339
      %p341 = scmp.ne.s32.totalorder %s332, %s333
      %p342 = scmp.eq.s32.totalorder %s39, 0
      %p343 = por %p341, %p342
      %p344 = scmp.ne.s32.totalorder %s332, %s333
      %p345 = scmp.eq.s32.totalorder %s40, 1
      %p346 = por %p344, %p345
      %p348 = scmp.ne.s32.totalorder %s333, %s347
      %p349 = scmp.eq.s32.totalorder %s40, 0
      %p350 = por %p348, %p349
      %s352 = sadd.s32 %s351, 1
      %p355 = scmp.eq.s32.totalorder %s34, 1
      %p356 = scmp.ne.s32.totalorder %s351, %s353
      %p357 = scmp.eq.s32.totalorder %s34, 0
      %p358 = por %p356, %p357
      %p359 = scmp.ne.s32.totalorder %s351, %s353
      %p360 = scmp.eq.s32.totalorder %s39, 1
      %p361 = por %p359, %p360
      %p362 = scmp.ne.s32.totalorder %s353, %s354
      %p363 = scmp.eq.s32.totalorder %s39, 0
      %p364 = por %p362, %p363
      %p365 = scmp.ne.s32.totalorder %s353, %s354
      %p366 = scmp.eq.s32.totalorder %s40, 1
      %p367 = por %p365, %p366
      %p369 = scmp.ne.s32.totalorder %s354, %s368
      %p370 = scmp.eq.s32.totalorder %s40, 0
      %p371 = por %p369, %p370
      %s373 = sadd.s32 %s372, 1
      %p376 = scmp.eq.s32.totalorder %s34, 1
      %p377 = scmp.ne.s32.totalorder %s372, %s374
      %p378 = scmp.eq.s32.totalorder %s34, 0
      %p379 = por %p377, %p378
      %p380 = scmp.ne.s32.totalorder %s372, %s374
      %p381 = scmp.eq.s32.totalorder %s39, 1
      %p382 = por %p380, %p381
      %p383 = scmp.ne.s32.totalorder %s374, %s375
      %p384 = scmp.eq.s32.totalorder %s39, 0
      %p385 = por %p383, %p384
      %p386 = scmp.ne.s32.totalorder %s374, %s375
      %p387 = scmp.eq.s32.totalorder %s40, 1
      %p388 = por %p386, %p387
      %p390 = scmp.ne.s32.totalorder %s375, %s389
      %p391 = scmp.eq.s32.totalorder %s40, 0
      %p392 = por %p390, %p391
      %s394 = sadd.s32 %s393, 1
      %p397 = scmp.eq.s32.totalorder %s34, 1
      %p398 = scmp.ne.s32.totalorder %s393, %s395
      %p399 = scmp.eq.s32.totalorder %s34, 0
      %p400 = por %p398, %p399
      %p401 = scmp.ne.s32.totalorder %s393, %s395
      %p402 = scmp.eq.s32.totalorder %s39, 1
      %p403 = por %p401, %p402
      %p404 = scmp.ne.s32.totalorder %s395, %s396
      %p405 = scmp.eq.s32.totalorder %s39, 0
      %p406 = por %p404, %p405
      %p407 = scmp.ne.s32.totalorder %s395, %s396
      %p408 = scmp.eq.s32.totalorder %s40, 1
      %p409 = por %p407, %p408
      %p411 = scmp.ne.s32.totalorder %s396, %s410
      %p412 = scmp.eq.s32.totalorder %s40, 0
      %p413 = por %p411, %p412
      %s415 = sadd.s32 %s414, 1
      %p418 = scmp.eq.s32.totalorder %s34, 1
      %p419 = scmp.ne.s32.totalorder %s414, %s416
      %p420 = scmp.eq.s32.totalorder %s34, 0
      %p421 = por %p419, %p420
      %p422 = scmp.ne.s32.totalorder %s414, %s416
      %p423 = scmp.eq.s32.totalorder %s39, 1
      %p424 = por %p422, %p423
      %p425 = scmp.ne.s32.totalorder %s416, %s417
      %p426 = scmp.eq.s32.totalorder %s39, 0
      %p427 = por %p425, %p426
      %p428 = scmp.ne.s32.totalorder %s416, %s417
      %p429 = scmp.eq.s32.totalorder %s40, 1
      %p430 = por %p428, %p429
      %p432 = scmp.ne.s32.totalorder %s417, %s431
      %p433 = scmp.eq.s32.totalorder %s40, 0
      %p434 = por %p432, %p433
      %s436 = sadd.s32 %s435, 1
      %p439 = scmp.eq.s32.totalorder %s34, 1
      %p440 = scmp.ne.s32.totalorder %s435, %s437
      %p441 = scmp.eq.s32.totalorder %s34, 0
      %p442 = por %p440, %p441
      %p443 = scmp.ne.s32.totalorder %s435, %s437
      %p444 = scmp.eq.s32.totalorder %s39, 1
      %p445 = por %p443, %p444
      %p446 = scmp.ne.s32.totalorder %s437, %s438
      %p447 = scmp.eq.s32.totalorder %s39, 0
      %p448 = por %p446, %p447
      %p449 = scmp.ne.s32.totalorder %s437, %s438
      %p450 = scmp.eq.s32.totalorder %s40, 1
      %p451 = por %p449, %p450
      %p453 = scmp.ne.s32.totalorder %s438, %s452
      %p454 = scmp.eq.s32.totalorder %s40, 0
      %p455 = por %p453, %p454
      %s457 = sadd.s32 %s456, 1
      %p460 = scmp.eq.s32.totalorder %s34, 1
      %p461 = scmp.ne.s32.totalorder %s456, %s458
      %p462 = scmp.eq.s32.totalorder %s34, 0
      %p463 = por %p461, %p462
      %p464 = scmp.ne.s32.totalorder %s456, %s458
      %p465 = scmp.eq.s32.totalorder %s39, 1
      %p466 = por %p464, %p465
      %p467 = scmp.ne.s32.totalorder %s458, %s459
      %p468 = scmp.eq.s32.totalorder %s39, 0
      %p469 = por %p467, %p468
      %p470 = scmp.ne.s32.totalorder %s458, %s459
      %p471 = scmp.eq.s32.totalorder %s40, 1
      %p472 = por %p470, %p471
      %p474 = scmp.ne.s32.totalorder %s459, %s473
      %p475 = scmp.eq.s32.totalorder %s40, 0
      %p476 = por %p474, %p475
      %s478 = sadd.s32 %s477, 1
      %p481 = scmp.eq.s32.totalorder %s34, 1
      %p482 = scmp.ne.s32.totalorder %s477, %s479
      %p483 = scmp.eq.s32.totalorder %s34, 0
      %p484 = por %p482, %p483
      %p485 = scmp.ne.s32.totalorder %s477, %s479
      %p486 = scmp.eq.s32.totalorder %s39, 1
      %p487 = por %p485, %p486
      %p488 = scmp.ne.s32.totalorder %s479, %s480
      %p489 = scmp.eq.s32.totalorder %s39, 0
      %p490 = por %p488, %p489
      %p491 = scmp.ne.s32.totalorder %s479, %s480
      %p492 = scmp.eq.s32.totalorder %s40, 1
      %p493 = por %p491, %p492
      %p495 = scmp.ne.s32.totalorder %s480, %s494
      %p496 = scmp.eq.s32.totalorder %s40, 0
      %p497 = por %p495, %p496
      %s499 = sadd.s32 %s498, 1
      %p502 = scmp.eq.s32.totalorder %s34, 1
      %p503 = scmp.ne.s32.totalorder %s498, %s500
      %p504 = scmp.eq.s32.totalorder %s34, 0
      %p505 = por %p503, %p504
      %p506 = scmp.ne.s32.totalorder %s498, %s500
      %p507 = scmp.eq.s32.totalorder %s39, 1
      %p508 = por %p506, %p507
      %p509 = scmp.ne.s32.totalorder %s500, %s501
      %p510 = scmp.eq.s32.totalorder %s39, 0
      %p511 = por %p509, %p510
      %p512 = scmp.ne.s32.totalorder %s500, %s501
      %p513 = scmp.eq.s32.totalorder %s40, 1
      %p514 = por %p512, %p513
      %p516 = scmp.ne.s32.totalorder %s501, %s515
      %p517 = scmp.eq.s32.totalorder %s40, 0
      %p518 = por %p516, %p517
      %s520 = sadd.s32 %s519, 1
      %p523 = scmp.eq.s32.totalorder %s34, 1
      %p524 = scmp.ne.s32.totalorder %s519, %s521
      %p525 = scmp.eq.s32.totalorder %s34, 0
      %p526 = por %p524, %p525
      %p527 = scmp.ne.s32.totalorder %s519, %s521
      %p528 = scmp.eq.s32.totalorder %s39, 1
      %p529 = por %p527, %p528
      %p530 = scmp.ne.s32.totalorder %s521, %s522
      %p531 = scmp.eq.s32.totalorder %s39, 0
      %p532 = por %p530, %p531
      %p533 = scmp.ne.s32.totalorder %s521, %s522
      %p534 = scmp.eq.s32.totalorder %s40, 1
      %p535 = por %p533, %p534
      %p537 = scmp.ne.s32.totalorder %s522, %s536
      %p538 = scmp.eq.s32.totalorder %s40, 0
      %p539 = por %p537, %p538
      %s540 = ssub.s32 %s34, %s41
      %p541 = scmp.eq.s32.totalorder %s540, 0
      %s543 = sadd.s32 %s542, 1
      %s544 = scalar_select %p541, %s542, %s543
      %p547 = pneg %p541
      %p548 = scmp.eq.s32.totalorder %s34, 1
      %p549 = por %p547, %p548
      %p550 = scmp.ne.s32.totalorder %s542, %s545
      %p551 = scmp.eq.s32.totalorder %s34, 0
      %p552 = por %p550, %p551
      %p553 = scmp.ne.s32.totalorder %s542, %s545
      %p554 = scmp.eq.s32.totalorder %s39, 1
      %p555 = por %p553, %p554
      %p556 = scmp.ne.s32.totalorder %s545, %s546
      %p557 = scmp.eq.s32.totalorder %s39, 0
      %p558 = por %p556, %p557
      %p559 = scmp.ne.s32.totalorder %s545, %s546
      %p560 = scmp.eq.s32.totalorder %s40, 1
      %p561 = por %p559, %p560
      %p563 = scmp.ne.s32.totalorder %s546, %s562
      %p564 = scmp.eq.s32.totalorder %s40, 0
      %p565 = por %p563, %p564
      %s566 = ssub.s32 %s34, %s41
      %p567 = scmp.eq.s32.totalorder %s566, 0
      %s569 = sadd.s32 %s568, 1
      %s570 = scalar_select %p567, %s568, %s569
      %p573 = pneg %p567
      %p574 = scmp.eq.s32.totalorder %s34, 1
      %p575 = por %p573, %p574
      %p576 = scmp.ne.s32.totalorder %s568, %s571
      %p577 = scmp.eq.s32.totalorder %s34, 0
      %p578 = por %p576, %p577
      %p579 = scmp.ne.s32.totalorder %s568, %s571
      %p580 = scmp.eq.s32.totalorder %s39, 1
      %p581 = por %p579, %p580
      %p582 = scmp.ne.s32.totalorder %s571, %s572
      %p583 = scmp.eq.s32.totalorder %s39, 0
      %p584 = por %p582, %p583
      %p585 = scmp.ne.s32.totalorder %s571, %s572
      %p586 = scmp.eq.s32.totalorder %s40, 1
      %p587 = por %p585, %p586
      %p589 = scmp.ne.s32.totalorder %s572, %s588
      %p590 = scmp.eq.s32.totalorder %s40, 0
      %p591 = por %p589, %p590
      %p592 = scmp.le.s32.totalorder 1, %s34
      %p593 = scmp.lt.s32.totalorder %s34, 3
      %p594 = pnand %p592, %p593
      %p595 = pneg %p594
      // Predicated region
      $region9: #{decoder_layer_forward.1} parent=5 // pred_check
        _
      $region10: #{decoder_layer_forward.1} parent=5 // pred_check_branch
        %597 = sbr.rel (%p594) target = $region12
      $region11: #{decoder_layer_forward.1} parent=5 // pred_region
        %s598 = ssub.s32 %s34, 1
        // Predicated region
        $region13: #{decoder_layer_forward.1} parent=11 // pred_check
          %p599 = pneg %p133
        $region14: #{decoder_layer_forward.1} parent=11 // pred_check_branch
          %601 = sbr.rel (%p599) target = $region16
        $region15: #{decoder_layer_forward.1} parent=11 // pred_region
          _
        $region16: #{decoder_layer_forward.1} parent=11 // pred_fallthru
          _
        // Predicated region
        $region17: #{decoder_layer_forward.1} parent=11 // pred_check
          %p602 = pneg %p154
        $region18: #{decoder_layer_forward.1} parent=11 // pred_check_branch
          %604 = sbr.rel (%p602) target = $region20
        $region19: #{decoder_layer_forward.1} parent=11 // pred_region
          _
        $region20: #{decoder_layer_forward.1} parent=11 // pred_fallthru
          _
        // Predicated region
        $region21: #{decoder_layer_forward.1} parent=11 // pred_check
          %p605 = pneg %p175
        $region22: #{decoder_layer_forward.1} parent=11 // pred_check_branch
          %607 = sbr.rel (%p605) target = $region24
        $region23: #{decoder_layer_forward.1} parent=11 // pred_region
          _
        $region24: #{decoder_layer_forward.1} parent=11 // pred_fallthru
          _
        // Predicated region
        $region25: #{decoder_layer_forward.1} parent=11 // pred_check
          %p608 = pneg %p196
        $region26: #{decoder_layer_forward.1} parent=11 // pred_check_branch
          %610 = sbr.rel (%p608) target = $region28
        $region27: #{decoder_layer_forward.1} parent=11 // pred_region
          _
        $region28: #{decoder_layer_forward.1} parent=11 // pred_fallthru
          _
        // Predicated region
        $region29: #{decoder_layer_forward.1} parent=11 // pred_check
          %p611 = pneg %p217
        $region30: #{decoder_layer_forward.1} parent=11 // pred_check_branch
          %613 = sbr.rel (%p611) target = $region32
        $region31: #{decoder_layer_forward.1} parent=11 // pred_region
          _
        $region32: #{decoder_layer_forward.1} parent=11 // pred_fallthru
          _
        // Predicated region
        $region33: #{decoder_layer_forward.1} parent=11 // pred_check
          %p614 = pneg %p238
        $region34: #{decoder_layer_forward.1} parent=11 // pred_check_branch
          %616 = sbr.rel (%p614) target = $region36
        $region35: #{decoder_layer_forward.1} parent=11 // pred_region
          _
        $region36: #{decoder_layer_forward.1} parent=11 // pred_fallthru
          _
        // Predicated region
        $region37: #{decoder_layer_forward.1} parent=11 // pred_check
          %p617 = pneg %p259
        $region38: #{decoder_layer_forward.1} parent=11 // pred_check_branch
          %619 = sbr.rel (%p617) target = $region40
        $region39: #{decoder_layer_forward.1} parent=11 // pred_region
          _
        $region40: #{decoder_layer_forward.1} parent=11 // pred_fallthru
          _
        // Predicated region
        $region41: #{decoder_layer_forward.1} parent=11 // pred_check
          %p620 = pneg %p280
        $region42: #{decoder_layer_forward.1} parent=11 // pred_check_branch
          %622 = sbr.rel (%p620) target = $region44
        $region43: #{decoder_layer_forward.1} parent=11 // pred_region
          _
        $region44: #{decoder_layer_forward.1} parent=11 // pred_fallthru
          _
        // Predicated region
        $region45: #{decoder_layer_forward.1} parent=11 // pred_check
          %p623 = pneg %p301
        $region46: #{decoder_layer_forward.1} parent=11 // pred_check_branch
          %625 = sbr.rel (%p623) target = $region48
        $region47: #{decoder_layer_forward.1} parent=11 // pred_region
          _
        $region48: #{decoder_layer_forward.1} parent=11 // pred_fallthru
          _
        // Predicated region
        $region49: #{decoder_layer_forward.1} parent=11 // pred_check
          %p626 = pneg %p322
        $region50: #{decoder_layer_forward.1} parent=11 // pred_check_branch
          %628 = sbr.rel (%p626) target = $region52
        $region51: #{decoder_layer_forward.1} parent=11 // pred_region
          _
        $region52: #{decoder_layer_forward.1} parent=11 // pred_fallthru
          _
        // Predicated region
        $region53: #{decoder_layer_forward.1} parent=11 // pred_check
          %p629 = pneg %p343
        $region54: #{decoder_layer_forward.1} parent=11 // pred_check_branch
          %631 = sbr.rel (%p629) target = $region56
        $region55: #{decoder_layer_forward.1} parent=11 // pred_region
          _
        $region56: #{decoder_layer_forward.1} parent=11 // pred_fallthru
          _
        // Predicated region
        $region57: #{decoder_layer_forward.1} parent=11 // pred_check
          %p632 = pneg %p364
        $region58: #{decoder_layer_forward.1} parent=11 // pred_check_branch
          %634 = sbr.rel (%p632) target = $region60
        $region59: #{decoder_layer_forward.1} parent=11 // pred_region
          _
        $region60: #{decoder_layer_forward.1} parent=11 // pred_fallthru
          _
        // Predicated region
        $region61: #{decoder_layer_forward.1} parent=11 // pred_check
          %p635 = pneg %p385
        $region62: #{decoder_layer_forward.1} parent=11 // pred_check_branch
          %637 = sbr.rel (%p635) target = $region64
        $region63: #{decoder_layer_forward.1} parent=11 // pred_region
          _
        $region64: #{decoder_layer_forward.1} parent=11 // pred_fallthru
          _
        // Predicated region
        $region65: #{decoder_layer_forward.1} parent=11 // pred_check
          %p638 = pneg %p406
        $region66: #{decoder_layer_forward.1} parent=11 // pred_check_branch
          %640 = sbr.rel (%p638) target = $region68
        $region67: #{decoder_layer_forward.1} parent=11 // pred_region
          _
        $region68: #{decoder_layer_forward.1} parent=11 // pred_fallthru
          _
        // Predicated region
        $region69: #{decoder_layer_forward.1} parent=11 // pred_check
          %p641 = pneg %p427
        $region70: #{decoder_layer_forward.1} parent=11 // pred_check_branch
          %643 = sbr.rel (%p641) target = $region72
        $region71: #{decoder_layer_forward.1} parent=11 // pred_region
          _
        $region72: #{decoder_layer_forward.1} parent=11 // pred_fallthru
          _
        // Predicated region
        $region73: #{decoder_layer_forward.1} parent=11 // pred_check
          %p644 = pneg %p448
        $region74: #{decoder_layer_forward.1} parent=11 // pred_check_branch
          %646 = sbr.rel (%p644) target = $region76
        $region75: #{decoder_layer_forward.1} parent=11 // pred_region
          _
        $region76: #{decoder_layer_forward.1} parent=11 // pred_fallthru
          _
        // Predicated region
        $region77: #{decoder_layer_forward.1} parent=11 // pred_check
          %p647 = pneg %p469
        $region78: #{decoder_layer_forward.1} parent=11 // pred_check_branch
          %649 = sbr.rel (%p647) target = $region80
        $region79: #{decoder_layer_forward.1} parent=11 // pred_region
          _
        $region80: #{decoder_layer_forward.1} parent=11 // pred_fallthru
          _
        // Predicated region
        $region81: #{decoder_layer_forward.1} parent=11 // pred_check
          %p650 = pneg %p490
        $region82: #{decoder_layer_forward.1} parent=11 // pred_check_branch
          %652 = sbr.rel (%p650) target = $region84
        $region83: #{decoder_layer_forward.1} parent=11 // pred_region
          _
        $region84: #{decoder_layer_forward.1} parent=11 // pred_fallthru
          _
        // Predicated region
        $region85: #{decoder_layer_forward.1} parent=11 // pred_check
          %p653 = pneg %p511
        $region86: #{decoder_layer_forward.1} parent=11 // pred_check_branch
          %655 = sbr.rel (%p653) target = $region88
        $region87: #{decoder_layer_forward.1} parent=11 // pred_region
          _
        $region88: #{decoder_layer_forward.1} parent=11 // pred_fallthru
          _
        // Predicated region
        $region89: #{decoder_layer_forward.1} parent=11 // pred_check
          %p656 = pneg %p532
        $region90: #{decoder_layer_forward.1} parent=11 // pred_check_branch
          %658 = sbr.rel (%p656) target = $region92
        $region91: #{decoder_layer_forward.1} parent=11 // pred_region
          _
        $region92: #{decoder_layer_forward.1} parent=11 // pred_fallthru
          _
      $region12: #{decoder_layer_forward.1} parent=5 // pred_fallthru
        _
      %p659 = scmp.lt.s32.totalorder %s34, 2
      // Predicated region
      $region93: #{decoder_layer_forward.1} parent=5 // pred_check
        %p660 = pneg %p659
      $region94: #{decoder_layer_forward.1} parent=5 // pred_check_branch
        %662 = sbr.rel (%p660) target = $region96
      $region95: #{decoder_layer_forward.1} parent=5 // pred_region
        // Predicated region
        $region97: #{decoder_layer_forward.1} parent=95 // pred_check
          %p663 = pneg %p54
        $region98: #{decoder_layer_forward.1} parent=95 // pred_check_branch
          %665 = sbr.rel (%p663) target = $region100
        $region99: #{decoder_layer_forward.1} parent=95 // pred_region
          %p666 = scmp.lt.s32.totalorder %s34, 1
          %s667 = scalar_select %p666, %s34, 1
          %s668 = smul.addr %s667, 8
          %s669 = scalar_lea.vmem %s0, %s668
        $region100: #{decoder_layer_forward.1} parent=95 // pred_fallthru
          _
        // Predicated region
        $region101: #{decoder_layer_forward.1} parent=95 // pred_check
          %p670 = pneg %p80
        $region102: #{decoder_layer_forward.1} parent=95 // pred_check_branch
          %672 = sbr.rel (%p670) target = $region104
        $region103: #{decoder_layer_forward.1} parent=95 // pred_region
          %p673 = scmp.lt.s32.totalorder %s34, 1
          %s674 = scalar_select %p673, %s34, 1
          %s675 = smul.addr %s674, 2
          %s676 = smul.addr %s675, 8
          %s677 = scalar_lea.vmem %s1, %s676
        $region104: #{decoder_layer_forward.1} parent=95 // pred_fallthru
          _
        // Predicated region
        $region105: #{decoder_layer_forward.1} parent=95 // pred_check
          %p678 = pneg %p106
        $region106: #{decoder_layer_forward.1} parent=95 // pred_check_branch
          %680 = sbr.rel (%p678) target = $region108
        $region107: #{decoder_layer_forward.1} parent=95 // pred_region
          %p681 = scmp.lt.s32.totalorder %s34, 1
          %s682 = scalar_select %p681, %s34, 1
          %s683 = smul.addr %s682, 8
          %s684 = scalar_lea.vmem %s2, %s683
        $region108: #{decoder_layer_forward.1} parent=95 // pred_fallthru
          _
      $region96: #{decoder_layer_forward.1} parent=5 // pred_fallthru
        _
      %p685 = scmp.le.s32.totalorder 1, %s34
      %p686 = scmp.lt.s32.totalorder %s34, 3
      %p687 = pnand %p685, %p686
      %p688 = pneg %p687
      // Predicated region
      $region109: #{decoder_layer_forward.1} parent=5 // pred_check
        _
      $region110: #{decoder_layer_forward.1} parent=5 // pred_check_branch
        %690 = sbr.rel (%p687) target = $region112
      $region111: #{decoder_layer_forward.1} parent=5 // pred_region
        %s691 = ssub.s32 %s34, 1
        %p692 = scmp.lt.s32.totalorder %s39, 1
        %s693 = scalar_select %p692, %s39, 1
        %s694 = smul.addr %s693, 8
        %s695 = scalar_lea.vmem %s0, %s694
        %p696 = pneg %p60
        %p697 = pneg %p57
        %p698 = scmp.lt.s32.totalorder %s39, 1
        %s699 = scalar_select %p698, %s39, 1
        %s700 = smul.addr %s699, 2
        %s701 = smul.addr %s700, 8
        %s702 = scalar_lea.vmem %s1, %s701
        %p703 = pneg %p86
        %p704 = pneg %p83
        %p705 = scmp.lt.s32.totalorder %s39, 1
        %s706 = scalar_select %p705, %s39, 1
        %s707 = smul.addr %s706, 8
        %s708 = scalar_lea.vmem %s2, %s707
        %p709 = pneg %p112
        %p710 = pneg %p109
        %p711 = pneg %p133
        %p712 = pneg %p130
        %p713 = pneg %p154
        %p714 = pneg %p151
        %p715 = pneg %p175
        %p716 = pneg %p172
        %p717 = pneg %p196
        %p718 = pneg %p193
        %p719 = pneg %p217
        %p720 = pneg %p214
        %p721 = pneg %p238
        %p722 = pneg %p235
        %p723 = pneg %p259
        %p724 = pneg %p256
        %p725 = pneg %p280
        %p726 = pneg %p277
        %p727 = pneg %p301
        %p728 = pneg %p298
        %p729 = pneg %p322
        %p730 = pneg %p319
        %p731 = pneg %p343
        %p732 = pneg %p340
        %p733 = pneg %p364
        %p734 = pneg %p361
        %p735 = pneg %p385
        %p736 = pneg %p382
        %p737 = pneg %p406
        %p738 = pneg %p403
        %p739 = pneg %p427
        %p740 = pneg %p424
        %p741 = pneg %p448
        %p742 = pneg %p445
        %p743 = pneg %p469
        %p744 = pneg %p466
        %p745 = pneg %p490
        %p746 = pneg %p487
        %p747 = pneg %p511
        %p748 = pneg %p508
        %p749 = pneg %p532
        %p750 = pneg %p529
        %p751 = pneg %p558
        %p752 = pneg %p555
        %p753 = scmp.lt.s32.totalorder %s39, 1
        %s754 = scalar_select %p753, %s39, 1
        %s755 = smul.addr %s754, 8
        %s756 = scalar_lea.vmem %s23, %s755
        %p757 = pneg %p584
        %p758 = pneg %p581
        %s759 = sand.u32 %s571, 1
        %s760 = scalar_lea.sflag [#allocation3], %s759
        %s761 = sand.u32 %s571, 1
        %s762 = smul.addr %s761, 32
        %s763 = scalar_lea.vmem [#allocation2], %s762
        %p764 = scmp.lt.s32.totalorder %s39, 1
        %s765 = scalar_select %p764, %s39, 1
        %s766 = smul.addr %s765, 8
        %s767 = scalar_lea.vmem %s0, %s766
        %p768 = scmp.lt.s32.totalorder %s39, 1
        %s769 = scalar_select %p768, %s39, 1
        %s770 = smul.addr %s769, 2
        %s771 = smul.addr %s770, 8
        %s772 = scalar_lea.vmem %s1, %s771
        %p773 = scmp.lt.s32.totalorder %s39, 1
        %s774 = scalar_select %p773, %s39, 1
        %s775 = smul.addr %s774, 8
        %s776 = scalar_lea.vmem %s2, %s775
        %p777 = scmp.lt.s32.totalorder %s39, 1
        %s778 = scalar_select %p777, %s39, 1
        %s779 = smul.addr %s778, 8
        %s780 = scalar_lea.vmem %s23, %s779
        %v781 = vld [vmem:[%s767] sm:$0xff]
        %v782 = vld [vmem:[%s772] sm:$0xff]
        %v783 = vld [vmem:[%s772 + $0x8] sm:$0xff]
        %v784 = vld [vmem:[%s776] sm:$0xff]
        %v785 = vld [vmem:[%s3] sm:$0xff]
        %v786 = vld [vmem:[%s3 + $0x8] sm:$0xff]
        %v787 = vld [vmem:[%s3 + $0x10] sm:$0xff]
        %v788 = vld [vmem:[%s3 + $0x18] sm:$0xff]
        %v789 = vld [vmem:[%s4] sm:$0x1]
        %v791 = vlaneseq
        %v792 = vshrl.u32 %v791, 7
        %v793 = vsub.s32 0, %v792
        %v794 = vrot.slane %v789, %v793
        %vm796 = vcmask 261120
        %v798 = vsel %vm796, %v781, 0
        %800 = vmatprep.subr.mxu0 0.0
        %801 = vmatpush1.msra.mxu0 %v785
        %802 = vmatprep.subr.mxu0 0.0
        %803 = vmatpush1.msra.mxu0 %v786
        %804 = vmatprep.subr.mxu0 0.0
        %805 = vmatpush1.msra.mxu0 %v787
        %806 = vmatprep.subr.mxu0 0.0
        %807 = vmatpush1.msra.mxu0 %v788
        %808 = vmatprep.subr.mxu0 0.0
        %809 = vmatpush1.msra.mxu0 0.0
        %810 = vmatprep.subr.mxu0 0.0
        %811 = vmatpush1.msra.mxu0 0.0
        %812 = vmatprep.subr.mxu0 0.0
        %813 = vmatpush1.msra.mxu0 0.0
        %814 = vmatprep.subr.mxu0 0.0
        %815 = vmatpush1.msra.mxu0 0.0
        %816 = vmatprep.subr.mxu0 0.0
        %817 = vmatpush1.msra.mxu0 0.0
        %818 = vmatprep.subr.mxu0 0.0
        %819 = vmatpush1.msra.mxu0 0.0
        %820 = vmatprep.subr.mxu0 0.0
        %821 = vmatpush1.msra.mxu0 0.0
        %822 = vmatprep.subr.mxu0 0.0
        %823 = vmatpush1.msra.mxu0 0.0
        %824 = vmatprep.subr.mxu0 0.0
        %825 = vmatpush1.msra.mxu0 0.0
        %826 = vmatprep.subr.mxu0 0.0
        %827 = vmatpush1.msra.mxu0 0.0
        %828 = vmatprep.subr.mxu0 0.0
        %829 = vmatpush1.msra.mxu0 0.0
        %830 = vmatprep.subr.mxu0 0.0
        %831 = vmatpush1.msra.mxu0 0.0
        %832 = vmatprep.subr.mxu0 0.0
        %833 = vmatpush1.msra.mxu0 0.0
        %834 = vmatprep.subr.mxu0 0.0
        %835 = vmatpush1.msra.mxu0 0.0
        %836 = vmatprep.subr.mxu0 0.0
        %837 = vmatpush1.msra.mxu0 0.0
        %838 = vmatprep.subr.mxu0 0.0
        %839 = vmatpush1.msra.mxu0 0.0
        %840 = vmatprep.subr.mxu0 0.0
        %841 = vmatpush1.msra.mxu0 0.0
        %842 = vmatprep.subr.mxu0 0.0
        %843 = vmatpush1.msra.mxu0 0.0
        %844 = vmatprep.subr.mxu0 0.0
        %845 = vmatpush1.msra.mxu0 0.0
        %846 = vmatprep.subr.mxu0 0.0
        %847 = vmatpush1.msra.mxu0 0.0
        %848 = vmatprep.subr.mxu0 0.0
        %849 = vmatpush1.msra.mxu0 0.0
        %850 = vmatprep.subr.mxu0 0.0
        %851 = vmatpush1.msra.mxu0 0.0
        %852 = vmatprep.subr.mxu0 0.0
        %853 = vmatpush1.msra.mxu0 0.0
        %854 = vmatprep.subr.mxu0 0.0
        %855 = vmatpush1.msra.mxu0 0.0
        %856 = vmatprep.subr.mxu0 0.0
        %857 = vmatpush1.msra.mxu0 0.0
        %858 = vmatprep.subr.mxu0 0.0
        %859 = vmatpush1.msra.mxu0 0.0
        %860 = vmatprep.subr.mxu0 0.0
        %861 = vmatpush1.msra.mxu0 0.0
        %862 = vmatprep.subr.mxu0 0.0
        %863 = vmatpush1.msra.mxu0 0.0
        %864 = vmatprep.mubr.f32.mxu0 0.0
        %865 = vmatmul.mubr.f32.gmra.mrb[0].mxu0 %v798
        %v866 = vpop.f32.mrb[0].mxu0
        %v867 = vadd.f32 %v794, %v866
        %v868 = vpop.f32.mrb[0].mxu0
        %869 = vdwg.mxu0
        %v870 = vld [vmem:[%s5] sm:$0xff]
        %v871 = vld [vmem:[%s5 + $0x8] sm:$0xff]
        %v872 = vld [vmem:[%s5 + $0x10] sm:$0xff]
        %v873 = vld [vmem:[%s5 + $0x18] sm:$0xff]
        %v874 = vld [vmem:[%s6] sm:$0x1]
        %876 = vrot.lane.b32.xlu0 %v867, 96
        %v877 = vpop.permute.xlu0 %876
        %vm878 = vcmask 64512
        %v879 = vsel %vm878, %v867, 0
        %v881 = vsel %vm878, %v877, 0
        %883 = vmatprep.subr.mxu0 0.0
        %884 = vmatpush1.xpose.msra.mxu0 %v881
        %885 = vmatprep.subr.mxu0 0.0
        %886 = vmatpush1.xpose.msra.mxu0 0.0
        %887 = vmatprep.subr.mxu0 0.0
        %888 = vmatpush1.xpose.msra.mxu0 0.0
        %889 = vmatprep.subr.mxu0 0.0
        %890 = vmatpush1.xpose.msra.mxu0 0.0
        %891 = vmatprep.subr.mxu0 0.0
        %892 = vmatpush1.xpose.msra.mxu0 0.0
        %893 = vmatprep.subr.mxu0 0.0
        %894 = vmatpush1.xpose.msra.mxu0 0.0
        %895 = vmatprep.subr.mxu0 0.0
        %896 = vmatpush1.xpose.msra.mxu0 0.0
        %897 = vmatprep.subr.mxu0 0.0
        %898 = vmatpush1.xpose.msra.mxu0 0.0
        %899 = vmatprep.subr.mxu0 0.0
        %900 = vmatpush1.xpose.msra.mxu0 0.0
        %901 = vmatprep.subr.mxu0 0.0
        %902 = vmatpush1.xpose.msra.mxu0 0.0
        %903 = vmatprep.subr.mxu0 0.0
        %904 = vmatpush1.xpose.msra.mxu0 0.0
        %905 = vmatprep.subr.mxu0 0.0
        %906 = vmatpush1.xpose.msra.mxu0 0.0
        %907 = vmatprep.subr.mxu0 0.0
        %908 = vmatpush1.xpose.msra.mxu0 0.0
        %909 = vmatprep.subr.mxu0 0.0
        %910 = vmatpush1.xpose.msra.mxu0 0.0
        %911 = vmatprep.subr.mxu0 0.0
        %912 = vmatpush1.xpose.msra.mxu0 0.0
        %913 = vmatprep.subr.mxu0 0.0
        %914 = vmatpush1.xpose.msra.mxu0 0.0
        %915 = vmatprep.subr.mxu0 0.0
        %916 = vmatpush1.xpose.msra.mxu0 0.0
        %917 = vmatprep.subr.mxu0 0.0
        %918 = vmatpush1.xpose.msra.mxu0 0.0
        %919 = vmatprep.subr.mxu0 0.0
        %920 = vmatpush1.xpose.msra.mxu0 0.0
        %921 = vmatprep.subr.mxu0 0.0
        %922 = vmatpush1.xpose.msra.mxu0 0.0
        %923 = vmatprep.subr.mxu0 0.0
        %924 = vmatpush1.xpose.msra.mxu0 0.0
        %925 = vmatprep.subr.mxu0 0.0
        %926 = vmatpush1.xpose.msra.mxu0 0.0
        %927 = vmatprep.subr.mxu0 0.0
        %928 = vmatpush1.xpose.msra.mxu0 0.0
        %929 = vmatprep.subr.mxu0 0.0
        %930 = vmatpush1.xpose.msra.mxu0 0.0
        %931 = vmatprep.subr.mxu0 0.0
        %932 = vmatpush1.xpose.msra.mxu0 0.0
        %933 = vmatprep.subr.mxu0 0.0
        %934 = vmatpush1.xpose.msra.mxu0 0.0
        %935 = vmatprep.subr.mxu0 0.0
        %936 = vmatpush1.xpose.msra.mxu0 0.0
        %937 = vmatprep.subr.mxu0 0.0
        %938 = vmatpush1.xpose.msra.mxu0 0.0
        %939 = vmatprep.subr.mxu0 0.0
        %940 = vmatpush1.xpose.msra.mxu0 0.0
        %941 = vmatprep.subr.mxu0 0.0
        %942 = vmatpush1.xpose.msra.mxu0 0.0
        %943 = vmatprep.subr.mxu0 0.0
        %944 = vmatpush1.xpose.msra.mxu0 0.0
        %945 = vmatprep.subr.mxu0 0.0
        %946 = vmatpush1.xpose.msra.mxu0 0.0
        %947 = vmatprep.mubr.f32.mxu0 0.0
        %948 = vmatmul.mubr.f32.gmra.mrb[0].mxu0 %v879
        %v949 = vpop.f32.mrb[0].mxu0
        %v950 = vadd.f32 0.0, %v949
        %v951 = vpop.f32.mrb[0].mxu0
        %952 = vdwg.mxu0
        %v953 = vmul.f32 %v950, 0.35355338
        %v954 = vadd.f32 %v953, %v784
        %v955 = vsel %vm878, %v954, -inf
        %956 = vmax.xlane.f32.xlu0 %v955
        %v957 = vpop.xlane.xlu0 %956
        %v958 = vsub.f32 %v954, %v957
        %v959 = vmul.f32 %v958, 1.442695
        %v960 = vpow.pop %v959
        %v961 = vsel %vm878, %v960, 0.0
        %962 = vadd.xlane.f32.xlu0 %v961
        %v963 = vpop.xlane.xlu0 %962
        %v964 = vrcp.pop %v963
        %v965 = vmul.f32 %v960, %v964
        %966 = vrot.lane.b32.xlu0 %v867, 64
        %v967 = vpop.permute.xlu0 %966
        %v970 = vsel %vm878, %v965, 0
        %972 = vmatprep.subr.mxu0 0.0
        %973 = vmatpush1.msra.mxu0 %v967
        %974 = vmatprep.subr.mxu0 0.0
        %975 = vmatpush1.msra.mxu0 0.0
        %976 = vmatprep.subr.mxu0 0.0
        %977 = vmatpush1.msra.mxu0 0.0
        %978 = vmatprep.subr.mxu0 0.0
        %979 = vmatpush1.msra.mxu0 0.0
        %980 = vmatprep.subr.mxu0 0.0
        %981 = vmatpush1.msra.mxu0 0.0
        %982 = vmatprep.subr.mxu0 0.0
        %983 = vmatpush1.msra.mxu0 0.0
        %984 = vmatprep.subr.mxu0 0.0
        %985 = vmatpush1.msra.mxu0 0.0
        %986 = vmatprep.subr.mxu0 0.0
        %987 = vmatpush1.msra.mxu0 0.0
        %988 = vmatprep.subr.mxu0 0.0
        %989 = vmatpush1.msra.mxu0 0.0
        %990 = vmatprep.subr.mxu0 0.0
        %991 = vmatpush1.msra.mxu0 0.0
        %992 = vmatprep.subr.mxu0 0.0
        %993 = vmatpush1.msra.mxu0 0.0
        %994 = vmatprep.subr.mxu0 0.0
        %995 = vmatpush1.msra.mxu0 0.0
        %996 = vmatprep.subr.mxu0 0.0
        %997 = vmatpush1.msra.mxu0 0.0
        %998 = vmatprep.subr.mxu0 0.0
        %999 = vmatpush1.msra.mxu0 0.0
        %1000 = vmatprep.subr.mxu0 0.0
        %1001 = vmatpush1.msra.mxu0 0.0
        %1002 = vmatprep.subr.mxu0 0.0
        %1003 = vmatpush1.msra.mxu0 0.0
        %1004 = vmatprep.subr.mxu0 0.0
        %1005 = vmatpush1.msra.mxu0 0.0
        %1006 = vmatprep.subr.mxu0 0.0
        %1007 = vmatpush1.msra.mxu0 0.0
        %1008 = vmatprep.subr.mxu0 0.0
        %1009 = vmatpush1.msra.mxu0 0.0
        %1010 = vmatprep.subr.mxu0 0.0
        %1011 = vmatpush1.msra.mxu0 0.0
        %1012 = vmatprep.subr.mxu0 0.0
        %1013 = vmatpush1.msra.mxu0 0.0
        %1014 = vmatprep.subr.mxu0 0.0
        %1015 = vmatpush1.msra.mxu0 0.0
        %1016 = vmatprep.subr.mxu0 0.0
        %1017 = vmatpush1.msra.mxu0 0.0
        %1018 = vmatprep.subr.mxu0 0.0
        %1019 = vmatpush1.msra.mxu0 0.0
        %1020 = vmatprep.subr.mxu0 0.0
        %1021 = vmatpush1.msra.mxu0 0.0
        %1022 = vmatprep.subr.mxu0 0.0
        %1023 = vmatpush1.msra.mxu0 0.0
        %1024 = vmatprep.subr.mxu0 0.0
        %1025 = vmatpush1.msra.mxu0 0.0
        %1026 = vmatprep.subr.mxu0 0.0
        %1027 = vmatpush1.msra.mxu0 0.0
        %1028 = vmatprep.subr.mxu0 0.0
        %1029 = vmatpush1.msra.mxu0 0.0
        %1030 = vmatprep.subr.mxu0 0.0
        %1031 = vmatpush1.msra.mxu0 0.0
        %1032 = vmatprep.subr.mxu0 0.0
        %1033 = vmatpush1.msra.mxu0 0.0
        %1034 = vmatprep.subr.mxu0 0.0
        %1035 = vmatpush1.msra.mxu0 0.0
        %1036 = vmatprep.mubr.f32.mxu0 0.0
        %1037 = vmatmul.mubr.f32.gmra.mrb[0].mxu0 %v970
        %v1038 = vpop.f32.mrb[0].mxu0
        %v1039 = vadd.f32 0.0, %v1038
        %v1040 = vpop.f32.mrb[0].mxu0
        %1041 = vdwg.mxu0
        %1042 = vrot.lane.b32.xlu0 %v867, 120
        %v1043 = vpop.permute.xlu0 %1042
        %1044 = vrot.lane.b32.xlu0 %v867, 88
        %v1045 = vpop.permute.xlu0 %1044
        %v1046 = vsel %vm878, %v1043, 0
        %v1048 = vsel %vm878, %v1045, 0
        %1050 = vmatprep.subr.mxu0 0.0
        %1051 = vmatpush1.xpose.msra.mxu0 %v1048
        %1052 = vmatprep.subr.mxu0 0.0
        %1053 = vmatpush1.xpose.msra.mxu0 0.0
        %1054 = vmatprep.subr.mxu0 0.0
        %1055 = vmatpush1.xpose.msra.mxu0 0.0
        %1056 = vmatprep.subr.mxu0 0.0
        %1057 = vmatpush1.xpose.msra.mxu0 0.0
        %1058 = vmatprep.subr.mxu0 0.0
        %1059 = vmatpush1.xpose.msra.mxu0 0.0
        %1060 = vmatprep.subr.mxu0 0.0
        %1061 = vmatpush1.xpose.msra.mxu0 0.0
        %1062 = vmatprep.subr.mxu0 0.0
        %1063 = vmatpush1.xpose.msra.mxu0 0.0
        %1064 = vmatprep.subr.mxu0 0.0
        %1065 = vmatpush1.xpose.msra.mxu0 0.0
        %1066 = vmatprep.subr.mxu0 0.0
        %1067 = vmatpush1.xpose.msra.mxu0 0.0
        %1068 = vmatprep.subr.mxu0 0.0
        %1069 = vmatpush1.xpose.msra.mxu0 0.0
        %1070 = vmatprep.subr.mxu0 0.0
        %1071 = vmatpush1.xpose.msra.mxu0 0.0
        %1072 = vmatprep.subr.mxu0 0.0
        %1073 = vmatpush1.xpose.msra.mxu0 0.0
        %1074 = vmatprep.subr.mxu0 0.0
        %1075 = vmatpush1.xpose.msra.mxu0 0.0
        %1076 = vmatprep.subr.mxu0 0.0
        %1077 = vmatpush1.xpose.msra.mxu0 0.0
        %1078 = vmatprep.subr.mxu0 0.0
        %1079 = vmatpush1.xpose.msra.mxu0 0.0
        %1080 = vmatprep.subr.mxu0 0.0
        %1081 = vmatpush1.xpose.msra.mxu0 0.0
        %1082 = vmatprep.subr.mxu0 0.0
        %1083 = vmatpush1.xpose.msra.mxu0 0.0
        %1084 = vmatprep.subr.mxu0 0.0
        %1085 = vmatpush1.xpose.msra.mxu0 0.0
        %1086 = vmatprep.subr.mxu0 0.0
        %1087 = vmatpush1.xpose.msra.mxu0 0.0
        %1088 = vmatprep.subr.mxu0 0.0
        %1089 = vmatpush1.xpose.msra.mxu0 0.0
        %1090 = vmatprep.subr.mxu0 0.0
        %1091 = vmatpush1.xpose.msra.mxu0 0.0
        %1092 = vmatprep.subr.mxu0 0.0
        %1093 = vmatpush1.xpose.msra.mxu0 0.0
        %1094 = vmatprep.subr.mxu0 0.0
        %1095 = vmatpush1.xpose.msra.mxu0 0.0
        %1096 = vmatprep.subr.mxu0 0.0
        %1097 = vmatpush1.xpose.msra.mxu0 0.0
        %1098 = vmatprep.subr.mxu0 0.0
        %1099 = vmatpush1.xpose.msra.mxu0 0.0
        %1100 = vmatprep.subr.mxu0 0.0
        %1101 = vmatpush1.xpose.msra.mxu0 0.0
        %1102 = vmatprep.subr.mxu0 0.0
        %1103 = vmatpush1.xpose.msra.mxu0 0.0
        %1104 = vmatprep.subr.mxu0 0.0
        %1105 = vmatpush1.xpose.msra.mxu0 0.0
        %1106 = vmatprep.subr.mxu0 0.0
        %1107 = vmatpush1.xpose.msra.mxu0 0.0
        %1108 = vmatprep.subr.mxu0 0.0
        %1109 = vmatpush1.xpose.msra.mxu0 0.0
        %1110 = vmatprep.subr.mxu0 0.0
        %1111 = vmatpush1.xpose.msra.mxu0 0.0
        %1112 = vmatprep.subr.mxu0 0.0
        %1113 = vmatpush1.xpose.msra.mxu0 0.0
        %1114 = vmatprep.mubr.f32.mxu0 0.0
        %1115 = vmatmul.mubr.f32.gmra.mrb[0].mxu0 %v1046
        %v1116 = vpop.f32.mrb[0].mxu0
        %v1117 = vadd.f32 0.0, %v1116
        %v1118 = vpop.f32.mrb[0].mxu0
        %1119 = vdwg.mxu0
        %v1120 = vmul.f32 %v1117, 0.35355338
        %v1121 = vadd.f32 %v1120, %v784
        %v1122 = vsel %vm878, %v1121, -inf
        %1123 = vmax.xlane.f32.xlu0 %v1122
        %v1124 = vpop.xlane.xlu0 %1123
        %v1125 = vsub.f32 %v1121, %v1124
        %v1126 = vmul.f32 %v1125, 1.442695
        %v1127 = vpow.pop %v1126
        %v1128 = vsel %vm878, %v1127, 0.0
        %1129 = vadd.xlane.f32.xlu0 %v1128
        %v1130 = vpop.xlane.xlu0 %1129
        %v1131 = vrcp.pop %v1130
        %v1132 = vmul.f32 %v1127, %v1131
        %1133 = vrot.lane.b32.xlu0 %v867, 56
        %v1134 = vpop.permute.xlu0 %1133
        %v1137 = vsel %vm878, %v1132, 0
        %1139 = vmatprep.subr.mxu0 0.0
        %1140 = vmatpush1.msra.mxu0 %v1134
        %1141 = vmatprep.subr.mxu0 0.0
        %1142 = vmatpush1.msra.mxu0 0.0
        %1143 = vmatprep.subr.mxu0 0.0
        %1144 = vmatpush1.msra.mxu0 0.0
        %1145 = vmatprep.subr.mxu0 0.0
        %1146 = vmatpush1.msra.mxu0 0.0
        %1147 = vmatprep.subr.mxu0 0.0
        %1148 = vmatpush1.msra.mxu0 0.0
        %1149 = vmatprep.subr.mxu0 0.0
        %1150 = vmatpush1.msra.mxu0 0.0
        %1151 = vmatprep.subr.mxu0 0.0
        %1152 = vmatpush1.msra.mxu0 0.0
        %1153 = vmatprep.subr.mxu0 0.0
        %1154 = vmatpush1.msra.mxu0 0.0
        %1155 = vmatprep.subr.mxu0 0.0
        %1156 = vmatpush1.msra.mxu0 0.0
        %1157 = vmatprep.subr.mxu0 0.0
        %1158 = vmatpush1.msra.mxu0 0.0
        %1159 = vmatprep.subr.mxu0 0.0
        %1160 = vmatpush1.msra.mxu0 0.0
        %1161 = vmatprep.subr.mxu0 0.0
        %1162 = vmatpush1.msra.mxu0 0.0
        %1163 = vmatprep.subr.mxu0 0.0
        %1164 = vmatpush1.msra.mxu0 0.0
        %1165 = vmatprep.subr.mxu0 0.0
        %1166 = vmatpush1.msra.mxu0 0.0
        %1167 = vmatprep.subr.mxu0 0.0
        %1168 = vmatpush1.msra.mxu0 0.0
        %1169 = vmatprep.subr.mxu0 0.0
        %1170 = vmatpush1.msra.mxu0 0.0
        %1171 = vmatprep.subr.mxu0 0.0
        %1172 = vmatpush1.msra.mxu0 0.0
        %1173 = vmatprep.subr.mxu0 0.0
        %1174 = vmatpush1.msra.mxu0 0.0
        %1175 = vmatprep.subr.mxu0 0.0
        %1176 = vmatpush1.msra.mxu0 0.0
        %1177 = vmatprep.subr.mxu0 0.0
        %1178 = vmatpush1.msra.mxu0 0.0
        %1179 = vmatprep.subr.mxu0 0.0
        %1180 = vmatpush1.msra.mxu0 0.0
        %1181 = vmatprep.subr.mxu0 0.0
        %1182 = vmatpush1.msra.mxu0 0.0
        %1183 = vmatprep.subr.mxu0 0.0
        %1184 = vmatpush1.msra.mxu0 0.0
        %1185 = vmatprep.subr.mxu0 0.0
        %1186 = vmatpush1.msra.mxu0 0.0
        %1187 = vmatprep.subr.mxu0 0.0
        %1188 = vmatpush1.msra.mxu0 0.0
        %1189 = vmatprep.subr.mxu0 0.0
        %1190 = vmatpush1.msra.mxu0 0.0
        %1191 = vmatprep.subr.mxu0 0.0
        %1192 = vmatpush1.msra.mxu0 0.0
        %1193 = vmatprep.subr.mxu0 0.0
        %1194 = vmatpush1.msra.mxu0 0.0
        %1195 = vmatprep.subr.mxu0 0.0
        %1196 = vmatpush1.msra.mxu0 0.0
        %1197 = vmatprep.subr.mxu0 0.0
        %1198 = vmatpush1.msra.mxu0 0.0
        %1199 = vmatprep.subr.mxu0 0.0
        %1200 = vmatpush1.msra.mxu0 0.0
        %1201 = vmatprep.subr.mxu0 0.0
        %1202 = vmatpush1.msra.mxu0 0.0
        %1203 = vmatprep.mubr.f32.mxu0 0.0
        %1204 = vmatmul.mubr.f32.gmra.mrb[0].mxu0 %v1137
        %v1205 = vpop.f32.mrb[0].mxu0
        %v1206 = vadd.f32 0.0, %v1205
        %v1207 = vpop.f32.mrb[0].mxu0
        %1208 = vdwg.mxu0
        %v1210 = vsel %vm878, %v1206, 0
        %1212 = vmatprep.subr.mxu0 0.0
        %1213 = vmatpush1.msra.mxu0 %v871
        %1214 = vmatprep.subr.mxu0 0.0
        %1215 = vmatpush1.msra.mxu0 0.0
        %1216 = vmatprep.subr.mxu0 0.0
        %1217 = vmatpush1.msra.mxu0 0.0
        %1218 = vmatprep.subr.mxu0 0.0
        %1219 = vmatpush1.msra.mxu0 0.0
        %1220 = vmatprep.subr.mxu0 0.0
        %1221 = vmatpush1.msra.mxu0 0.0
        %1222 = vmatprep.subr.mxu0 0.0
        %1223 = vmatpush1.msra.mxu0 0.0
        %1224 = vmatprep.subr.mxu0 0.0
        %1225 = vmatpush1.msra.mxu0 0.0
        %1226 = vmatprep.subr.mxu0 0.0
        %1227 = vmatpush1.msra.mxu0 0.0
        %1228 = vmatprep.subr.mxu0 0.0
        %1229 = vmatpush1.msra.mxu0 0.0
        %1230 = vmatprep.subr.mxu0 0.0
        %1231 = vmatpush1.msra.mxu0 0.0
        %1232 = vmatprep.subr.mxu0 0.0
        %1233 = vmatpush1.msra.mxu0 0.0
        %1234 = vmatprep.subr.mxu0 0.0
        %1235 = vmatpush1.msra.mxu0 0.0
        %1236 = vmatprep.subr.mxu0 0.0
        %1237 = vmatpush1.msra.mxu0 0.0
        %1238 = vmatprep.subr.mxu0 0.0
        %1239 = vmatpush1.msra.mxu0 0.0
        %1240 = vmatprep.subr.mxu0 0.0
        %1241 = vmatpush1.msra.mxu0 0.0
        %1242 = vmatprep.subr.mxu0 0.0
        %1243 = vmatpush1.msra.mxu0 0.0
        %1244 = vmatprep.subr.mxu0 0.0
        %1245 = vmatpush1.msra.mxu0 0.0
        %1246 = vmatprep.subr.mxu0 0.0
        %1247 = vmatpush1.msra.mxu0 0.0
        %1248 = vmatprep.subr.mxu0 0.0
        %1249 = vmatpush1.msra.mxu0 0.0
        %1250 = vmatprep.subr.mxu0 0.0
        %1251 = vmatpush1.msra.mxu0 0.0
        %1252 = vmatprep.subr.mxu0 0.0
        %1253 = vmatpush1.msra.mxu0 0.0
        %1254 = vmatprep.subr.mxu0 0.0
        %1255 = vmatpush1.msra.mxu0 0.0
        %1256 = vmatprep.subr.mxu0 0.0
        %1257 = vmatpush1.msra.mxu0 0.0
        %1258 = vmatprep.subr.mxu0 0.0
        %1259 = vmatpush1.msra.mxu0 0.0
        %1260 = vmatprep.subr.mxu0 0.0
        %1261 = vmatpush1.msra.mxu0 0.0
        %1262 = vmatprep.subr.mxu0 0.0
        %1263 = vmatpush1.msra.mxu0 0.0
        %1264 = vmatprep.subr.mxu0 0.0
        %1265 = vmatpush1.msra.mxu0 0.0
        %1266 = vmatprep.subr.mxu0 0.0
        %1267 = vmatpush1.msra.mxu0 0.0
        %1268 = vmatprep.subr.mxu0 0.0
        %1269 = vmatpush1.msra.mxu0 0.0
        %1270 = vmatprep.subr.mxu0 0.0
        %1271 = vmatpush1.msra.mxu0 0.0
        %1272 = vmatprep.subr.mxu0 0.0
        %1273 = vmatpush1.msra.mxu0 0.0
        %1274 = vmatprep.subr.mxu0 0.0
        %1275 = vmatpush1.msra.mxu0 0.0
        %1276 = vmatprep.mubr.f32.mxu0 0.0
        %1277 = vmatmul.mubr.f32.gmra.mrb[0].mxu0 %v1210
        %v1278 = vpop.f32.mrb[0].mxu0
        %v1279 = vadd.f32 0.0, %v1278
        %v1280 = vpop.f32.mrb[0].mxu0
        %1281 = vdwg.mxu0
        %v1283 = vsel %vm878, %v1039, 0
        %1285 = vmatprep.subr.mxu0 0.0
        %1286 = vmatpush1.msra.mxu0 %v870
        %1287 = vmatprep.subr.mxu0 0.0
        %1288 = vmatpush1.msra.mxu0 0.0
        %1289 = vmatprep.subr.mxu0 0.0
        %1290 = vmatpush1.msra.mxu0 0.0
        %1291 = vmatprep.subr.mxu0 0.0
        %1292 = vmatpush1.msra.mxu0 0.0
        %1293 = vmatprep.subr.mxu0 0.0
        %1294 = vmatpush1.msra.mxu0 0.0
        %1295 = vmatprep.subr.mxu0 0.0
        %1296 = vmatpush1.msra.mxu0 0.0
        %1297 = vmatprep.subr.mxu0 0.0
        %1298 = vmatpush1.msra.mxu0 0.0
        %1299 = vmatprep.subr.mxu0 0.0
        %1300 = vmatpush1.msra.mxu0 0.0
        %1301 = vmatprep.subr.mxu0 0.0
        %1302 = vmatpush1.msra.mxu0 0.0
        %1303 = vmatprep.subr.mxu0 0.0
        %1304 = vmatpush1.msra.mxu0 0.0
        %1305 = vmatprep.subr.mxu0 0.0
        %1306 = vmatpush1.msra.mxu0 0.0
        %1307 = vmatprep.subr.mxu0 0.0
        %1308 = vmatpush1.msra.mxu0 0.0
        %1309 = vmatprep.subr.mxu0 0.0
        %1310 = vmatpush1.msra.mxu0 0.0
        %1311 = vmatprep.subr.mxu0 0.0
        %1312 = vmatpush1.msra.mxu0 0.0
        %1313 = vmatprep.subr.mxu0 0.0
        %1314 = vmatpush1.msra.mxu0 0.0
        %1315 = vmatprep.subr.mxu0 0.0
        %1316 = vmatpush1.msra.mxu0 0.0
        %1317 = vmatprep.subr.mxu0 0.0
        %1318 = vmatpush1.msra.mxu0 0.0
        %1319 = vmatprep.subr.mxu0 0.0
        %1320 = vmatpush1.msra.mxu0 0.0
        %1321 = vmatprep.subr.mxu0 0.0
        %1322 = vmatpush1.msra.mxu0 0.0
        %1323 = vmatprep.subr.mxu0 0.0
        %1324 = vmatpush1.msra.mxu0 0.0
        %1325 = vmatprep.subr.mxu0 0.0
        %1326 = vmatpush1.msra.mxu0 0.0
        %1327 = vmatprep.subr.mxu0 0.0
        %1328 = vmatpush1.msra.mxu0 0.0
        %1329 = vmatprep.subr.mxu0 0.0
        %1330 = vmatpush1.msra.mxu0 0.0
        %1331 = vmatprep.subr.mxu0 0.0
        %1332 = vmatpush1.msra.mxu0 0.0
        %1333 = vmatprep.subr.mxu0 0.0
        %1334 = vmatpush1.msra.mxu0 0.0
        %1335 = vmatprep.subr.mxu0 0.0
        %1336 = vmatpush1.msra.mxu0 0.0
        %1337 = vmatprep.subr.mxu0 0.0
        %1338 = vmatpush1.msra.mxu0 0.0
        %1339 = vmatprep.subr.mxu0 0.0
        %1340 = vmatpush1.msra.mxu0 0.0
        %1341 = vmatprep.subr.mxu0 0.0
        %1342 = vmatpush1.msra.mxu0 0.0
        %1343 = vmatprep.subr.mxu0 0.0
        %1344 = vmatpush1.msra.mxu0 0.0
        %1345 = vmatprep.subr.mxu0 0.0
        %1346 = vmatpush1.msra.mxu0 0.0
        %1347 = vmatprep.subr.mxu0 0.0
        %1348 = vmatpush1.msra.mxu0 0.0
        %1349 = vmatprep.mubr.f32.mxu0 0.0
        %1350 = vmatmul.mubr.f32.gmra.mrb[0].mxu0 %v1283
        %v1351 = vpop.f32.mrb[0].mxu0
        %v1352 = vadd.f32 %v1279, %v1351
        %v1353 = vpop.f32.mrb[0].mxu0
        %1354 = vdwg.mxu0
        %1355 = vrot.lane.b32.xlu0 %v867, 112
        %v1356 = vpop.permute.xlu0 %1355
        %1357 = vrot.lane.b32.xlu0 %v867, 80
        %v1358 = vpop.permute.xlu0 %1357
        %v1359 = vsel %vm878, %v1356, 0
        %v1361 = vsel %vm878, %v1358, 0
        %1363 = vmatprep.subr.mxu0 0.0
        %1364 = vmatpush1.xpose.msra.mxu0 %v1361
        %1365 = vmatprep.subr.mxu0 0.0
        %1366 = vmatpush1.xpose.msra.mxu0 0.0
        %1367 = vmatprep.subr.mxu0 0.0
        %1368 = vmatpush1.xpose.msra.mxu0 0.0
        %1369 = vmatprep.subr.mxu0 0.0
        %1370 = vmatpush1.xpose.msra.mxu0 0.0
        %1371 = vmatprep.subr.mxu0 0.0
        %1372 = vmatpush1.xpose.msra.mxu0 0.0
        %1373 = vmatprep.subr.mxu0 0.0
        %1374 = vmatpush1.xpose.msra.mxu0 0.0
        %1375 = vmatprep.subr.mxu0 0.0
        %1376 = vmatpush1.xpose.msra.mxu0 0.0
        %1377 = vmatprep.subr.mxu0 0.0
        %1378 = vmatpush1.xpose.msra.mxu0 0.0
        %1379 = vmatprep.subr.mxu0 0.0
        %1380 = vmatpush1.xpose.msra.mxu0 0.0
        %1381 = vmatprep.subr.mxu0 0.0
        %1382 = vmatpush1.xpose.msra.mxu0 0.0
        %1383 = vmatprep.subr.mxu0 0.0
        %1384 = vmatpush1.xpose.msra.mxu0 0.0
        %1385 = vmatprep.subr.mxu0 0.0
        %1386 = vmatpush1.xpose.msra.mxu0 0.0
        %1387 = vmatprep.subr.mxu0 0.0
        %1388 = vmatpush1.xpose.msra.mxu0 0.0
        %1389 = vmatprep.subr.mxu0 0.0
        %1390 = vmatpush1.xpose.msra.mxu0 0.0
        %1391 = vmatprep.subr.mxu0 0.0
        %1392 = vmatpush1.xpose.msra.mxu0 0.0
        %1393 = vmatprep.subr.mxu0 0.0
        %1394 = vmatpush1.xpose.msra.mxu0 0.0
        %1395 = vmatprep.subr.mxu0 0.0
        %1396 = vmatpush1.xpose.msra.mxu0 0.0
        %1397 = vmatprep.subr.mxu0 0.0
        %1398 = vmatpush1.xpose.msra.mxu0 0.0
        %1399 = vmatprep.subr.mxu0 0.0
        %1400 = vmatpush1.xpose.msra.mxu0 0.0
        %1401 = vmatprep.subr.mxu0 0.0
        %1402 = vmatpush1.xpose.msra.mxu0 0.0
        %1403 = vmatprep.subr.mxu0 0.0
        %1404 = vmatpush1.xpose.msra.mxu0 0.0
        %1405 = vmatprep.subr.mxu0 0.0
        %1406 = vmatpush1.xpose.msra.mxu0 0.0
        %1407 = vmatprep.subr.mxu0 0.0
        %1408 = vmatpush1.xpose.msra.mxu0 0.0
        %1409 = vmatprep.subr.mxu0 0.0
        %1410 = vmatpush1.xpose.msra.mxu0 0.0
        %1411 = vmatprep.subr.mxu0 0.0
        %1412 = vmatpush1.xpose.msra.mxu0 0.0
        %1413 = vmatprep.subr.mxu0 0.0
        %1414 = vmatpush1.xpose.msra.mxu0 0.0
        %1415 = vmatprep.subr.mxu0 0.0
        %1416 = vmatpush1.xpose.msra.mxu0 0.0
        %1417 = vmatprep.subr.mxu0 0.0
        %1418 = vmatpush1.xpose.msra.mxu0 0.0
        %1419 = vmatprep.subr.mxu0 0.0
        %1420 = vmatpush1.xpose.msra.mxu0 0.0
        %1421 = vmatprep.subr.mxu0 0.0
        %1422 = vmatpush1.xpose.msra.mxu0 0.0
        %1423 = vmatprep.subr.mxu0 0.0
        %1424 = vmatpush1.xpose.msra.mxu0 0.0
        %1425 = vmatprep.subr.mxu0 0.0
        %1426 = vmatpush1.xpose.msra.mxu0 0.0
        %1427 = vmatprep.mubr.f32.mxu0 0.0
        %1428 = vmatmul.mubr.f32.gmra.mrb[0].mxu0 %v1359
        %v1429 = vpop.f32.mrb[0].mxu0
        %v1430 = vadd.f32 0.0, %v1429
        %v1431 = vpop.f32.mrb[0].mxu0
        %1432 = vdwg.mxu0
        %v1433 = vmul.f32 %v1430, 0.35355338
        %v1434 = vadd.f32 %v1433, %v784
        %v1435 = vsel %vm878, %v1434, -inf
        %1436 = vmax.xlane.f32.xlu0 %v1435
        %v1437 = vpop.xlane.xlu0 %1436
        %v1438 = vsub.f32 %v1434, %v1437
        %v1439 = vmul.f32 %v1438, 1.442695
        %v1440 = vpow.pop %v1439
        %v1441 = vsel %vm878, %v1440, 0.0
        %1442 = vadd.xlane.f32.xlu0 %v1441
        %v1443 = vpop.xlane.xlu0 %1442
        %v1444 = vrcp.pop %v1443
        %v1445 = vmul.f32 %v1440, %v1444
        %1446 = vrot.lane.b32.xlu0 %v867, 48
        %v1447 = vpop.permute.xlu0 %1446
        %v1450 = vsel %vm878, %v1445, 0
        %1452 = vmatprep.subr.mxu0 0.0
        %1453 = vmatpush1.msra.mxu0 %v1447
        %1454 = vmatprep.subr.mxu0 0.0
        %1455 = vmatpush1.msra.mxu0 0.0
        %1456 = vmatprep.subr.mxu0 0.0
        %1457 = vmatpush1.msra.mxu0 0.0
        %1458 = vmatprep.subr.mxu0 0.0
        %1459 = vmatpush1.msra.mxu0 0.0
        %1460 = vmatprep.subr.mxu0 0.0
        %1461 = vmatpush1.msra.mxu0 0.0
        %1462 = vmatprep.subr.mxu0 0.0
        %1463 = vmatpush1.msra.mxu0 0.0
        %1464 = vmatprep.subr.mxu0 0.0
        %1465 = vmatpush1.msra.mxu0 0.0
        %1466 = vmatprep.subr.mxu0 0.0
        %1467 = vmatpush1.msra.mxu0 0.0
        %1468 = vmatprep.subr.mxu0 0.0
        %1469 = vmatpush1.msra.mxu0 0.0
        %1470 = vmatprep.subr.mxu0 0.0
        %1471 = vmatpush1.msra.mxu0 0.0
        %1472 = vmatprep.subr.mxu0 0.0
        %1473 = vmatpush1.msra.mxu0 0.0
        %1474 = vmatprep.subr.mxu0 0.0
        %1475 = vmatpush1.msra.mxu0 0.0
        %1476 = vmatprep.subr.mxu0 0.0
        %1477 = vmatpush1.msra.mxu0 0.0
        %1478 = vmatprep.subr.mxu0 0.0
        %1479 = vmatpush1.msra.mxu0 0.0
        %1480 = vmatprep.subr.mxu0 0.0
        %1481 = vmatpush1.msra.mxu0 0.0
        %1482 = vmatprep.subr.mxu0 0.0
        %1483 = vmatpush1.msra.mxu0 0.0
        %1484 = vmatprep.subr.mxu0 0.0
        %1485 = vmatpush1.msra.mxu0 0.0
        %1486 = vmatprep.subr.mxu0 0.0
        %1487 = vmatpush1.msra.mxu0 0.0
        %1488 = vmatprep.subr.mxu0 0.0
        %1489 = vmatpush1.msra.mxu0 0.0
        %1490 = vmatprep.subr.mxu0 0.0
        %1491 = vmatpush1.msra.mxu0 0.0
        %1492 = vmatprep.subr.mxu0 0.0
        %1493 = vmatpush1.msra.mxu0 0.0
        %1494 = vmatprep.subr.mxu0 0.0
        %1495 = vmatpush1.msra.mxu0 0.0
        %1496 = vmatprep.subr.mxu0 0.0
        %1497 = vmatpush1.msra.mxu0 0.0
        %1498 = vmatprep.subr.mxu0 0.0
        %1499 = vmatpush1.msra.mxu0 0.0
        %1500 = vmatprep.subr.mxu0 0.0
        %1501 = vmatpush1.msra.mxu0 0.0
        %1502 = vmatprep.subr.mxu0 0.0
        %1503 = vmatpush1.msra.mxu0 0.0
        %1504 = vmatprep.subr.mxu0 0.0
        %1505 = vmatpush1.msra.mxu0 0.0
        %1506 = vmatprep.subr.mxu0 0.0
        %1507 = vmatpush1.msra.mxu0 0.0
        %1508 = vmatprep.subr.mxu0 0.0
        %1509 = vmatpush1.msra.mxu0 0.0
        %1510 = vmatprep.subr.mxu0 0.0
        %1511 = vmatpush1.msra.mxu0 0.0
        %1512 = vmatprep.subr.mxu0 0.0
        %1513 = vmatpush1.msra.mxu0 0.0
        %1514 = vmatprep.subr.mxu0 0.0
        %1515 = vmatpush1.msra.mxu0 0.0
        %1516 = vmatprep.mubr.f32.mxu0 0.0
        %1517 = vmatmul.mubr.f32.gmra.mrb[0].mxu0 %v1450
        %v1518 = vpop.f32.mrb[0].mxu0
        %v1519 = vadd.f32 0.0, %v1518
        %v1520 = vpop.f32.mrb[0].mxu0
        %1521 = vdwg.mxu0
        %v1523 = vsel %vm878, %v1519, 0
        %1525 = vmatprep.subr.mxu0 0.0
        %1526 = vmatpush1.msra.mxu0 %v872
        %1527 = vmatprep.subr.mxu0 0.0
        %1528 = vmatpush1.msra.mxu0 0.0
        %1529 = vmatprep.subr.mxu0 0.0
        %1530 = vmatpush1.msra.mxu0 0.0
        %1531 = vmatprep.subr.mxu0 0.0
        %1532 = vmatpush1.msra.mxu0 0.0
        %1533 = vmatprep.subr.mxu0 0.0
        %1534 = vmatpush1.msra.mxu0 0.0
        %1535 = vmatprep.subr.mxu0 0.0
        %1536 = vmatpush1.msra.mxu0 0.0
        %1537 = vmatprep.subr.mxu0 0.0
        %1538 = vmatpush1.msra.mxu0 0.0
        %1539 = vmatprep.subr.mxu0 0.0
        %1540 = vmatpush1.msra.mxu0 0.0
        %1541 = vmatprep.subr.mxu0 0.0
        %1542 = vmatpush1.msra.mxu0 0.0
        %1543 = vmatprep.subr.mxu0 0.0
        %1544 = vmatpush1.msra.mxu0 0.0
        %1545 = vmatprep.subr.mxu0 0.0
        %1546 = vmatpush1.msra.mxu0 0.0
        %1547 = vmatprep.subr.mxu0 0.0
        %1548 = vmatpush1.msra.mxu0 0.0
        %1549 = vmatprep.subr.mxu0 0.0
        %1550 = vmatpush1.msra.mxu0 0.0
        %1551 = vmatprep.subr.mxu0 0.0
        %1552 = vmatpush1.msra.mxu0 0.0
        %1553 = vmatprep.subr.mxu0 0.0
        %1554 = vmatpush1.msra.mxu0 0.0
        %1555 = vmatprep.subr.mxu0 0.0
        %1556 = vmatpush1.msra.mxu0 0.0
        %1557 = vmatprep.subr.mxu0 0.0
        %1558 = vmatpush1.msra.mxu0 0.0
        %1559 = vmatprep.subr.mxu0 0.0
        %1560 = vmatpush1.msra.mxu0 0.0
        %1561 = vmatprep.subr.mxu0 0.0
        %1562 = vmatpush1.msra.mxu0 0.0
        %1563 = vmatprep.subr.mxu0 0.0
        %1564 = vmatpush1.msra.mxu0 0.0
        %1565 = vmatprep.subr.mxu0 0.0
        %1566 = vmatpush1.msra.mxu0 0.0
        %1567 = vmatprep.subr.mxu0 0.0
        %1568 = vmatpush1.msra.mxu0 0.0
        %1569 = vmatprep.subr.mxu0 0.0
        %1570 = vmatpush1.msra.mxu0 0.0
        %1571 = vmatprep.subr.mxu0 0.0
        %1572 = vmatpush1.msra.mxu0 0.0
        %1573 = vmatprep.subr.mxu0 0.0
        %1574 = vmatpush1.msra.mxu0 0.0
        %1575 = vmatprep.subr.mxu0 0.0
        %1576 = vmatpush1.msra.mxu0 0.0
        %1577 = vmatprep.subr.mxu0 0.0
        %1578 = vmatpush1.msra.mxu0 0.0
        %1579 = vmatprep.subr.mxu0 0.0
        %1580 = vmatpush1.msra.mxu0 0.0
        %1581 = vmatprep.subr.mxu0 0.0
        %1582 = vmatpush1.msra.mxu0 0.0
        %1583 = vmatprep.subr.mxu0 0.0
        %1584 = vmatpush1.msra.mxu0 0.0
        %1585 = vmatprep.subr.mxu0 0.0
        %1586 = vmatpush1.msra.mxu0 0.0
        %1587 = vmatprep.subr.mxu0 0.0
        %1588 = vmatpush1.msra.mxu0 0.0
        %1589 = vmatprep.mubr.f32.mxu0 0.0
        %1590 = vmatmul.mubr.f32.gmra.mrb[0].mxu0 %v1523
        %v1591 = vpop.f32.mrb[0].mxu0
        %v1592 = vadd.f32 0.0, %v1591
        %v1593 = vpop.f32.mrb[0].mxu0
        %1594 = vdwg.mxu0
        %v1595 = vadd.f32 %v1352, %v1592
        %1596 = vrot.lane.b32.xlu0 %v867, 104
        %v1597 = vpop.permute.xlu0 %1596
        %1598 = vrot.lane.b32.xlu0 %v867, 72
        %v1599 = vpop.permute.xlu0 %1598
        %v1600 = vsel %vm878, %v1597, 0
        %v1602 = vsel %vm878, %v1599, 0
        %1604 = vmatprep.subr.mxu0 0.0
        %1605 = vmatpush1.xpose.msra.mxu0 %v1602
        %1606 = vmatprep.subr.mxu0 0.0
        %1607 = vmatpush1.xpose.msra.mxu0 0.0
        %1608 = vmatprep.subr.mxu0 0.0
        %1609 = vmatpush1.xpose.msra.mxu0 0.0
        %1610 = vmatprep.subr.mxu0 0.0
        %1611 = vmatpush1.xpose.msra.mxu0 0.0
        %1612 = vmatprep.subr.mxu0 0.0
        %1613 = vmatpush1.xpose.msra.mxu0 0.0
        %1614 = vmatprep.subr.mxu0 0.0
        %1615 = vmatpush1.xpose.msra.mxu0 0.0
        %1616 = vmatprep.subr.mxu0 0.0
        %1617 = vmatpush1.xpose.msra.mxu0 0.0
        %1618 = vmatprep.subr.mxu0 0.0
        %1619 = vmatpush1.xpose.msra.mxu0 0.0
        %1620 = vmatprep.subr.mxu0 0.0
        %1621 = vmatpush1.xpose.msra.mxu0 0.0
        %1622 = vmatprep.subr.mxu0 0.0
        %1623 = vmatpush1.xpose.msra.mxu0 0.0
        %1624 = vmatprep.subr.mxu0 0.0
        %1625 = vmatpush1.xpose.msra.mxu0 0.0
        %1626 = vmatprep.subr.mxu0 0.0
        %1627 = vmatpush1.xpose.msra.mxu0 0.0
        %1628 = vmatprep.subr.mxu0 0.0
        %1629 = vmatpush1.xpose.msra.mxu0 0.0
        %1630 = vmatprep.subr.mxu0 0.0
        %1631 = vmatpush1.xpose.msra.mxu0 0.0
        %1632 = vmatprep.subr.mxu0 0.0
        %1633 = vmatpush1.xpose.msra.mxu0 0.0
        %1634 = vmatprep.subr.mxu0 0.0
        %1635 = vmatpush1.xpose.msra.mxu0 0.0
        %1636 = vmatprep.subr.mxu0 0.0
        %1637 = vmatpush1.xpose.msra.mxu0 0.0
        %1638 = vmatprep.subr.mxu0 0.0
        %1639 = vmatpush1.xpose.msra.mxu0 0.0
        %1640 = vmatprep.subr.mxu0 0.0
        %1641 = vmatpush1.xpose.msra.mxu0 0.0
        %1642 = vmatprep.subr.mxu0 0.0
        %1643 = vmatpush1.xpose.msra.mxu0 0.0
        %1644 = vmatprep.subr.mxu0 0.0
        %1645 = vmatpush1.xpose.msra.mxu0 0.0
        %1646 = vmatprep.subr.mxu0 0.0
        %1647 = vmatpush1.xpose.msra.mxu0 0.0
        %1648 = vmatprep.subr.mxu0 0.0
        %1649 = vmatpush1.xpose.msra.mxu0 0.0
        %1650 = vmatprep.subr.mxu0 0.0
        %1651 = vmatpush1.xpose.msra.mxu0 0.0
        %1652 = vmatprep.subr.mxu0 0.0
        %1653 = vmatpush1.xpose.msra.mxu0 0.0
        %1654 = vmatprep.subr.mxu0 0.0
        %1655 = vmatpush1.xpose.msra.mxu0 0.0
        %1656 = vmatprep.subr.mxu0 0.0
        %1657 = vmatpush1.xpose.msra.mxu0 0.0
        %1658 = vmatprep.subr.mxu0 0.0
        %1659 = vmatpush1.xpose.msra.mxu0 0.0
        %1660 = vmatprep.subr.mxu0 0.0
        %1661 = vmatpush1.xpose.msra.mxu0 0.0
        %1662 = vmatprep.subr.mxu0 0.0
        %1663 = vmatpush1.xpose.msra.mxu0 0.0
        %1664 = vmatprep.subr.mxu0 0.0
        %1665 = vmatpush1.xpose.msra.mxu0 0.0
        %1666 = vmatprep.subr.mxu0 0.0
        %1667 = vmatpush1.xpose.msra.mxu0 0.0
        %1668 = vmatprep.mubr.f32.mxu0 0.0
        %1669 = vmatmul.mubr.f32.gmra.mrb[0].mxu0 %v1600
        %v1670 = vpop.f32.mrb[0].mxu0
        %v1671 = vadd.f32 0.0, %v1670
        %v1672 = vpop.f32.mrb[0].mxu0
        %1673 = vdwg.mxu0
        %v1674 = vmul.f32 %v1671, 0.35355338
        %v1675 = vadd.f32 %v1674, %v784
        %v1676 = vsel %vm878, %v1675, -inf
        %1677 = vmax.xlane.f32.xlu0 %v1676
        %v1678 = vpop.xlane.xlu0 %1677
        %v1679 = vsub.f32 %v1675, %v1678
        %v1680 = vmul.f32 %v1679, 1.442695
        %v1681 = vpow.pop %v1680
        %v1682 = vsel %vm878, %v1681, 0.0
        %1683 = vadd.xlane.f32.xlu0 %v1682
        %v1684 = vpop.xlane.xlu0 %1683
        %v1685 = vrcp.pop %v1684
        %v1686 = vmul.f32 %v1681, %v1685
        %1687 = vrot.lane.b32.xlu0 %v867, 40
        %v1688 = vpop.permute.xlu0 %1687
        %v1691 = vsel %vm878, %v1686, 0
        %1693 = vmatprep.subr.mxu0 0.0
        %1694 = vmatpush1.msra.mxu0 %v1688
        %1695 = vmatprep.subr.mxu0 0.0
        %1696 = vmatpush1.msra.mxu0 0.0
        %1697 = vmatprep.subr.mxu0 0.0
        %1698 = vmatpush1.msra.mxu0 0.0
        %1699 = vmatprep.subr.mxu0 0.0
        %1700 = vmatpush1.msra.mxu0 0.0
        %1701 = vmatprep.subr.mxu0 0.0
        %1702 = vmatpush1.msra.mxu0 0.0
        %1703 = vmatprep.subr.mxu0 0.0
        %1704 = vmatpush1.msra.mxu0 0.0
        %1705 = vmatprep.subr.mxu0 0.0
        %1706 = vmatpush1.msra.mxu0 0.0
        %1707 = vmatprep.subr.mxu0 0.0
        %1708 = vmatpush1.msra.mxu0 0.0
        %1709 = vmatprep.subr.mxu0 0.0
        %1710 = vmatpush1.msra.mxu0 0.0
        %1711 = vmatprep.subr.mxu0 0.0
        %1712 = vmatpush1.msra.mxu0 0.0
        %1713 = vmatprep.subr.mxu0 0.0
        %1714 = vmatpush1.msra.mxu0 0.0
        %1715 = vmatprep.subr.mxu0 0.0
        %1716 = vmatpush1.msra.mxu0 0.0
        %1717 = vmatprep.subr.mxu0 0.0
        %1718 = vmatpush1.msra.mxu0 0.0
        %1719 = vmatprep.subr.mxu0 0.0
        %1720 = vmatpush1.msra.mxu0 0.0
        %1721 = vmatprep.subr.mxu0 0.0
        %1722 = vmatpush1.msra.mxu0 0.0
        %1723 = vmatprep.subr.mxu0 0.0
        %1724 = vmatpush1.msra.mxu0 0.0
        %1725 = vmatprep.subr.mxu0 0.0
        %1726 = vmatpush1.msra.mxu0 0.0
        %1727 = vmatprep.subr.mxu0 0.0
        %1728 = vmatpush1.msra.mxu0 0.0
        %1729 = vmatprep.subr.mxu0 0.0
        %1730 = vmatpush1.msra.mxu0 0.0
        %1731 = vmatprep.subr.mxu0 0.0
        %1732 = vmatpush1.msra.mxu0 0.0
        %1733 = vmatprep.subr.mxu0 0.0
        %1734 = vmatpush1.msra.mxu0 0.0
        %1735 = vmatprep.subr.mxu0 0.0
        %1736 = vmatpush1.msra.mxu0 0.0
        %1737 = vmatprep.subr.mxu0 0.0
        %1738 = vmatpush1.msra.mxu0 0.0
        %1739 = vmatprep.subr.mxu0 0.0
        %1740 = vmatpush1.msra.mxu0 0.0
        %1741 = vmatprep.subr.mxu0 0.0
        %1742 = vmatpush1.msra.mxu0 0.0
        %1743 = vmatprep.subr.mxu0 0.0
        %1744 = vmatpush1.msra.mxu0 0.0
        %1745 = vmatprep.subr.mxu0 0.0
        %1746 = vmatpush1.msra.mxu0 0.0
        %1747 = vmatprep.subr.mxu0 0.0
        %1748 = vmatpush1.msra.mxu0 0.0
        %1749 = vmatprep.subr.mxu0 0.0
        %1750 = vmatpush1.msra.mxu0 0.0
        %1751 = vmatprep.subr.mxu0 0.0
        %1752 = vmatpush1.msra.mxu0 0.0
        %1753 = vmatprep.subr.mxu0 0.0
        %1754 = vmatpush1.msra.mxu0 0.0
        %1755 = vmatprep.subr.mxu0 0.0
        %1756 = vmatpush1.msra.mxu0 0.0
        %1757 = vmatprep.mubr.f32.mxu0 0.0
        %1758 = vmatmul.mubr.f32.gmra.mrb[0].mxu0 %v1691
        %v1759 = vpop.f32.mrb[0].mxu0
        %v1760 = vadd.f32 0.0, %v1759
        %v1761 = vpop.f32.mrb[0].mxu0
        %1762 = vdwg.mxu0
        %v1764 = vsel %vm878, %v1760, 0
        %1766 = vmatprep.subr.mxu0 0.0
        %1767 = vmatpush1.msra.mxu0 %v873
        %1768 = vmatprep.subr.mxu0 0.0
        %1769 = vmatpush1.msra.mxu0 0.0
        %1770 = vmatprep.subr.mxu0 0.0
        %1771 = vmatpush1.msra.mxu0 0.0
        %1772 = vmatprep.subr.mxu0 0.0
        %1773 = vmatpush1.msra.mxu0 0.0
        %1774 = vmatprep.subr.mxu0 0.0
        %1775 = vmatpush1.msra.mxu0 0.0
        %1776 = vmatprep.subr.mxu0 0.0
        %1777 = vmatpush1.msra.mxu0 0.0
        %1778 = vmatprep.subr.mxu0 0.0
        %1779 = vmatpush1.msra.mxu0 0.0
        %1780 = vmatprep.subr.mxu0 0.0
        %1781 = vmatpush1.msra.mxu0 0.0
        %1782 = vmatprep.subr.mxu0 0.0
        %1783 = vmatpush1.msra.mxu0 0.0
        %1784 = vmatprep.subr.mxu0 0.0
        %1785 = vmatpush1.msra.mxu0 0.0
        %1786 = vmatprep.subr.mxu0 0.0
        %1787 = vmatpush1.msra.mxu0 0.0
        %1788 = vmatprep.subr.mxu0 0.0
        %1789 = vmatpush1.msra.mxu0 0.0
        %1790 = vmatprep.subr.mxu0 0.0
        %1791 = vmatpush1.msra.mxu0 0.0
        %1792 = vmatprep.subr.mxu0 0.0
        %1793 = vmatpush1.msra.mxu0 0.0
        %1794 = vmatprep.subr.mxu0 0.0
        %1795 = vmatpush1.msra.mxu0 0.0
        %1796 = vmatprep.subr.mxu0 0.0
        %1797 = vmatpush1.msra.mxu0 0.0
        %1798 = vmatprep.subr.mxu0 0.0
        %1799 = vmatpush1.msra.mxu0 0.0
        %1800 = vmatprep.subr.mxu0 0.0
        %1801 = vmatpush1.msra.mxu0 0.0
        %1802 = vmatprep.subr.mxu0 0.0
        %1803 = vmatpush1.msra.mxu0 0.0
        %1804 = vmatprep.subr.mxu0 0.0
        %1805 = vmatpush1.msra.mxu0 0.0
        %1806 = vmatprep.subr.mxu0 0.0
        %1807 = vmatpush1.msra.mxu0 0.0
        %1808 = vmatprep.subr.mxu0 0.0
        %1809 = vmatpush1.msra.mxu0 0.0
        %1810 = vmatprep.subr.mxu0 0.0
        %1811 = vmatpush1.msra.mxu0 0.0
        %1812 = vmatprep.subr.mxu0 0.0
        %1813 = vmatpush1.msra.mxu0 0.0
        %1814 = vmatprep.subr.mxu0 0.0
        %1815 = vmatpush1.msra.mxu0 0.0
        %1816 = vmatprep.subr.mxu0 0.0
        %1817 = vmatpush1.msra.mxu0 0.0
        %1818 = vmatprep.subr.mxu0 0.0
        %1819 = vmatpush1.msra.mxu0 0.0
        %1820 = vmatprep.subr.mxu0 0.0
        %1821 = vmatpush1.msra.mxu0 0.0
        %1822 = vmatprep.subr.mxu0 0.0
        %1823 = vmatpush1.msra.mxu0 0.0
        %1824 = vmatprep.subr.mxu0 0.0
        %1825 = vmatpush1.msra.mxu0 0.0
        %1826 = vmatprep.subr.mxu0 0.0
        %1827 = vmatpush1.msra.mxu0 0.0
        %1828 = vmatprep.subr.mxu0 0.0
        %1829 = vmatpush1.msra.mxu0 0.0
        %1830 = vmatprep.mubr.f32.mxu0 0.0
        %1831 = vmatmul.mubr.f32.gmra.mrb[0].mxu0 %v1764
        %v1832 = vpop.f32.mrb[0].mxu0
        %v1833 = vadd.f32 0.0, %v1832
        %v1834 = vpop.f32.mrb[0].mxu0
        %1835 = vdwg.mxu0
        %v1836 = vadd.f32 %v1595, %v1833
        %v1838 = vlaneseq
        %v1839 = vshrl.u32 %v1838, 7
        %v1840 = vsub.s32 0, %v1839
        %v1841 = vrot.slane %v874, %v1840
        %v1843 = vadd.f32 %v1836, %v1841
        %v1844 = vadd.f32 %v781, %v1843
        %v1845 = vld [vmem:[%s7] sm:$0x1]
        %v1846 = vld [vmem:[%s8] sm:$0x1]
        %v1847 = vsel %vm796, %v1844, 0.0
        %1848 = vadd.xlane.f32.xlu0 %v1847
        %v1849 = vpop.xlane.xlu0 %1848
        %v1850 = vrcp.pop 32.0
        %v1851 = vmul.f32 %v1849, %v1850
        %v1852 = vsub.f32 %v1844, %v1851
        %v1853 = vmul.f32 %v1852, %v1852
        %v1854 = vsel %vm796, %v1853, 0.0
        %1855 = vadd.xlane.f32.xlu0 %v1854
        %v1856 = vpop.xlane.xlu0 %1855
        %v1857 = vmul.f32 %v1856, %v1850
        %v1858 = vadd.f32 %v1857, 1e-05
        %v1859 = vrsqrt.pop %v1858
        %v1860 = vmul.f32 %v1852, %v1859
        %v1862 = vlaneseq
        %v1863 = vshrl.u32 %v1862, 7
        %v1864 = vsub.s32 0, %v1863
        %v1865 = vrot.slane %v1845, %v1864
        %v1867 = vmul.f32 %v1860, %v1865
        %v1869 = vlaneseq
        %v1870 = vshrl.u32 %v1869, 7
        %v1871 = vsub.s32 0, %v1870
        %v1872 = vrot.slane %v1846, %v1871
        %v1874 = vadd.f32 %v1867, %v1872
        %v1875 = vld [vmem:[%s9] sm:$0xff]
        %v1876 = vld [vmem:[%s9 + $0x8] sm:$0xff]
        %v1877 = vld [vmem:[%s9 + $0x10] sm:$0xff]
        %v1878 = vld [vmem:[%s9 + $0x18] sm:$0xff]
        %v1879 = vld [vmem:[%s10] sm:$0x1]
        %v1881 = vlaneseq
        %v1882 = vshrl.u32 %v1881, 7
        %v1883 = vsub.s32 0, %v1882
        %v1884 = vrot.slane %v1879, %v1883
        %v1887 = vsel %vm796, %v1874, 0
        %1889 = vmatprep.subr.mxu0 0.0
        %1890 = vmatpush1.msra.mxu0 %v1875
        %1891 = vmatprep.subr.mxu0 0.0
        %1892 = vmatpush1.msra.mxu0 %v1876
        %1893 = vmatprep.subr.mxu0 0.0
        %1894 = vmatpush1.msra.mxu0 %v1877
        %1895 = vmatprep.subr.mxu0 0.0
        %1896 = vmatpush1.msra.mxu0 %v1878
        %1897 = vmatprep.subr.mxu0 0.0
        %1898 = vmatpush1.msra.mxu0 0.0
        %1899 = vmatprep.subr.mxu0 0.0
        %1900 = vmatpush1.msra.mxu0 0.0
        %1901 = vmatprep.subr.mxu0 0.0
        %1902 = vmatpush1.msra.mxu0 0.0
        %1903 = vmatprep.subr.mxu0 0.0
        %1904 = vmatpush1.msra.mxu0 0.0
        %1905 = vmatprep.subr.mxu0 0.0
        %1906 = vmatpush1.msra.mxu0 0.0
        %1907 = vmatprep.subr.mxu0 0.0
        %1908 = vmatpush1.msra.mxu0 0.0
        %1909 = vmatprep.subr.mxu0 0.0
        %1910 = vmatpush1.msra.mxu0 0.0
        %1911 = vmatprep.subr.mxu0 0.0
        %1912 = vmatpush1.msra.mxu0 0.0
        %1913 = vmatprep.subr.mxu0 0.0
        %1914 = vmatpush1.msra.mxu0 0.0
        %1915 = vmatprep.subr.mxu0 0.0
        %1916 = vmatpush1.msra.mxu0 0.0
        %1917 = vmatprep.subr.mxu0 0.0
        %1918 = vmatpush1.msra.mxu0 0.0
        %1919 = vmatprep.subr.mxu0 0.0
        %1920 = vmatpush1.msra.mxu0 0.0
        %1921 = vmatprep.subr.mxu0 0.0
        %1922 = vmatpush1.msra.mxu0 0.0
        %1923 = vmatprep.subr.mxu0 0.0
        %1924 = vmatpush1.msra.mxu0 0.0
        %1925 = vmatprep.subr.mxu0 0.0
        %1926 = vmatpush1.msra.mxu0 0.0
        %1927 = vmatprep.subr.mxu0 0.0
        %1928 = vmatpush1.msra.mxu0 0.0
        %1929 = vmatprep.subr.mxu0 0.0
        %1930 = vmatpush1.msra.mxu0 0.0
        %1931 = vmatprep.subr.mxu0 0.0
        %1932 = vmatpush1.msra.mxu0 0.0
        %1933 = vmatprep.subr.mxu0 0.0
        %1934 = vmatpush1.msra.mxu0 0.0
        %1935 = vmatprep.subr.mxu0 0.0
        %1936 = vmatpush1.msra.mxu0 0.0
        %1937 = vmatprep.subr.mxu0 0.0
        %1938 = vmatpush1.msra.mxu0 0.0
        %1939 = vmatprep.subr.mxu0 0.0
        %1940 = vmatpush1.msra.mxu0 0.0
        %1941 = vmatprep.subr.mxu0 0.0
        %1942 = vmatpush1.msra.mxu0 0.0
        %1943 = vmatprep.subr.mxu0 0.0
        %1944 = vmatpush1.msra.mxu0 0.0
        %1945 = vmatprep.subr.mxu0 0.0
        %1946 = vmatpush1.msra.mxu0 0.0
        %1947 = vmatprep.subr.mxu0 0.0
        %1948 = vmatpush1.msra.mxu0 0.0
        %1949 = vmatprep.subr.mxu0 0.0
        %1950 = vmatpush1.msra.mxu0 0.0
        %1951 = vmatprep.subr.mxu0 0.0
        %1952 = vmatpush1.msra.mxu0 0.0
        %1953 = vmatprep.mubr.f32.mxu0 0.0
        %1954 = vmatmul.mubr.f32.gmra.mrb[0].mxu0 %v1887
        %v1955 = vpop.f32.mrb[0].mxu0
        %v1956 = vadd.f32 %v1884, %v1955
        %v1957 = vpop.f32.mrb[0].mxu0
        %1958 = vdwg.mxu0
        %v1959 = vld [vmem:[%s11] sm:$0xff]
        %v1960 = vld [vmem:[%s11 + $0x8] sm:$0xff]
        %v1961 = vld [vmem:[%s11 + $0x10] sm:$0xff]
        %v1962 = vld [vmem:[%s11 + $0x18] sm:$0xff]
        %v1963 = vld [vmem:[%s12] sm:$0x1]
        %v1965 = vlaneseq
        %v1966 = vshrl.u32 %v1965, 7
        %v1967 = vsub.s32 0, %v1966
        %v1968 = vrot.slane %v1963, %v1967
        %v1971 = vsel %vm796, %v782, 0
        %v1974 = vsel %vm796, %v783, 0
        %1976 = vmatprep.subr.mxu0 0.0
        %1977 = vmatpush1.msra.mxu0 %v1959
        %1978 = vmatprep.subr.mxu0 0.0
        %1979 = vmatpush1.msra.mxu0 %v1960
        %1980 = vmatprep.subr.mxu0 0.0
        %1981 = vmatpush1.msra.mxu0 %v1961
        %1982 = vmatprep.subr.mxu0 0.0
        %1983 = vmatpush1.msra.mxu0 %v1962
        %1984 = vmatprep.subr.mxu0 0.0
        %1985 = vmatpush1.msra.mxu0 0.0
        %1986 = vmatprep.subr.mxu0 0.0
        %1987 = vmatpush1.msra.mxu0 0.0
        %1988 = vmatprep.subr.mxu0 0.0
        %1989 = vmatpush1.msra.mxu0 0.0
        %1990 = vmatprep.subr.mxu0 0.0
        %1991 = vmatpush1.msra.mxu0 0.0
        %1992 = vmatprep.subr.mxu0 0.0
        %1993 = vmatpush1.msra.mxu0 0.0
        %1994 = vmatprep.subr.mxu0 0.0
        %1995 = vmatpush1.msra.mxu0 0.0
        %1996 = vmatprep.subr.mxu0 0.0
        %1997 = vmatpush1.msra.mxu0 0.0
        %1998 = vmatprep.subr.mxu0 0.0
        %1999 = vmatpush1.msra.mxu0 0.0
        %2000 = vmatprep.subr.mxu0 0.0
        %2001 = vmatpush1.msra.mxu0 0.0
        %2002 = vmatprep.subr.mxu0 0.0
        %2003 = vmatpush1.msra.mxu0 0.0
        %2004 = vmatprep.subr.mxu0 0.0
        %2005 = vmatpush1.msra.mxu0 0.0
        %2006 = vmatprep.subr.mxu0 0.0
        %2007 = vmatpush1.msra.mxu0 0.0
        %2008 = vmatprep.subr.mxu0 0.0
        %2009 = vmatpush1.msra.mxu0 0.0
        %2010 = vmatprep.subr.mxu0 0.0
        %2011 = vmatpush1.msra.mxu0 0.0
        %2012 = vmatprep.subr.mxu0 0.0
        %2013 = vmatpush1.msra.mxu0 0.0
        %2014 = vmatprep.subr.mxu0 0.0
        %2015 = vmatpush1.msra.mxu0 0.0
        %2016 = vmatprep.subr.mxu0 0.0
        %2017 = vmatpush1.msra.mxu0 0.0
        %2018 = vmatprep.subr.mxu0 0.0
        %2019 = vmatpush1.msra.mxu0 0.0
        %2020 = vmatprep.subr.mxu0 0.0
        %2021 = vmatpush1.msra.mxu0 0.0
        %2022 = vmatprep.subr.mxu0 0.0
        %2023 = vmatpush1.msra.mxu0 0.0
        %2024 = vmatprep.subr.mxu0 0.0
        %2025 = vmatpush1.msra.mxu0 0.0
        %2026 = vmatprep.subr.mxu0 0.0
        %2027 = vmatpush1.msra.mxu0 0.0
        %2028 = vmatprep.subr.mxu0 0.0
        %2029 = vmatpush1.msra.mxu0 0.0
        %2030 = vmatprep.subr.mxu0 0.0
        %2031 = vmatpush1.msra.mxu0 0.0
        %2032 = vmatprep.subr.mxu0 0.0
        %2033 = vmatpush1.msra.mxu0 0.0
        %2034 = vmatprep.subr.mxu0 0.0
        %2035 = vmatpush1.msra.mxu0 0.0
        %2036 = vmatprep.subr.mxu0 0.0
        %2037 = vmatpush1.msra.mxu0 0.0
        %2038 = vmatprep.subr.mxu0 0.0
        %2039 = vmatpush1.msra.mxu0 0.0
        %2040 = vmatprep.mubr.f32.mxu0 0.0
        %2041 = vmatmul.mubr.f32.gmra.mrb[0].mxu0 %v1971
        %v2042 = vpop.f32.mrb[0].mxu0
        %v2043 = vadd.f32 %v1968, %v2042
        %v2044 = vpop.f32.mrb[0].mxu0
        %2045 = vmatprep.mubr.f32.mxu0 0.0
        %2046 = vmatmul.mubr.f32.gmra.mrb[0].mxu0 %v1974
        %v2047 = vpop.f32.mrb[0].mxu0
        %v2048 = vadd.f32 %v1968, %v2047
        %v2049 = vpop.f32.mrb[0].mxu0
        %2050 = vdwg.mxu0
        %v2051 = vld [vmem:[%s13] sm:$0xff]
        %v2052 = vld [vmem:[%s13 + $0x8] sm:$0xff]
        %v2053 = vld [vmem:[%s13 + $0x10] sm:$0xff]
        %v2054 = vld [vmem:[%s13 + $0x18] sm:$0xff]
        %v2055 = vld [vmem:[%s14] sm:$0x1]
        %v2057 = vsel %vm878, %v1956, 0
        %v2060 = vsel %vm878, %v2043, 0
        %v2063 = vsel %vm878, %v2048, 0
        %2065 = vmatprep.subr.mxu0 0.0
        %2066 = vmatpush1.xpose.msra.mxu0 %v2060
        %2067 = vmatprep.subr.mxu0 0.0
        %2068 = vmatpush1.xpose.msra.mxu0 %v2063
        %2069 = vmatprep.subr.mxu0 0.0
        %2070 = vmatpush1.xpose.msra.mxu0 0.0
        %2071 = vmatprep.subr.mxu0 0.0
        %2072 = vmatpush1.xpose.msra.mxu0 0.0
        %2073 = vmatprep.subr.mxu0 0.0
        %2074 = vmatpush1.xpose.msra.mxu0 0.0
        %2075 = vmatprep.subr.mxu0 0.0
        %2076 = vmatpush1.xpose.msra.mxu0 0.0
        %2077 = vmatprep.subr.mxu0 0.0
        %2078 = vmatpush1.xpose.msra.mxu0 0.0
        %2079 = vmatprep.subr.mxu0 0.0
        %2080 = vmatpush1.xpose.msra.mxu0 0.0
        %2081 = vmatprep.subr.mxu0 0.0
        %2082 = vmatpush1.xpose.msra.mxu0 0.0
        %2083 = vmatprep.subr.mxu0 0.0
        %2084 = vmatpush1.xpose.msra.mxu0 0.0
        %2085 = vmatprep.subr.mxu0 0.0
        %2086 = vmatpush1.xpose.msra.mxu0 0.0
        %2087 = vmatprep.subr.mxu0 0.0
        %2088 = vmatpush1.xpose.msra.mxu0 0.0
        %2089 = vmatprep.subr.mxu0 0.0
        %2090 = vmatpush1.xpose.msra.mxu0 0.0
        %2091 = vmatprep.subr.mxu0 0.0
        %2092 = vmatpush1.xpose.msra.mxu0 0.0
        %2093 = vmatprep.subr.mxu0 0.0
        %2094 = vmatpush1.xpose.msra.mxu0 0.0
        %2095 = vmatprep.subr.mxu0 0.0
        %2096 = vmatpush1.xpose.msra.mxu0 0.0
        %2097 = vmatprep.subr.mxu0 0.0
        %2098 = vmatpush1.xpose.msra.mxu0 0.0
        %2099 = vmatprep.subr.mxu0 0.0
        %2100 = vmatpush1.xpose.msra.mxu0 0.0
        %2101 = vmatprep.subr.mxu0 0.0
        %2102 = vmatpush1.xpose.msra.mxu0 0.0
        %2103 = vmatprep.subr.mxu0 0.0
        %2104 = vmatpush1.xpose.msra.mxu0 0.0
        %2105 = vmatprep.subr.mxu0 0.0
        %2106 = vmatpush1.xpose.msra.mxu0 0.0
        %2107 = vmatprep.subr.mxu0 0.0
        %2108 = vmatpush1.xpose.msra.mxu0 0.0
        %2109 = vmatprep.subr.mxu0 0.0
        %2110 = vmatpush1.xpose.msra.mxu0 0.0
        %2111 = vmatprep.subr.mxu0 0.0
        %2112 = vmatpush1.xpose.msra.mxu0 0.0
        %2113 = vmatprep.subr.mxu0 0.0
        %2114 = vmatpush1.xpose.msra.mxu0 0.0
        %2115 = vmatprep.subr.mxu0 0.0
        %2116 = vmatpush1.xpose.msra.mxu0 0.0
        %2117 = vmatprep.subr.mxu0 0.0
        %2118 = vmatpush1.xpose.msra.mxu0 0.0
        %2119 = vmatprep.subr.mxu0 0.0
        %2120 = vmatpush1.xpose.msra.mxu0 0.0
        %2121 = vmatprep.subr.mxu0 0.0
        %2122 = vmatpush1.xpose.msra.mxu0 0.0
        %2123 = vmatprep.subr.mxu0 0.0
        %2124 = vmatpush1.xpose.msra.mxu0 0.0
        %2125 = vmatprep.subr.mxu0 0.0
        %2126 = vmatpush1.xpose.msra.mxu0 0.0
        %2127 = vmatprep.subr.mxu0 0.0
        %2128 = vmatpush1.xpose.msra.mxu0 0.0
        %2129 = vmatprep.mubr.f32.mxu0 0.0
        %2130 = vmatmul.mubr.f32.gmra.mrb[0].mxu0 %v2057
        %v2131 = vpop.f32.mrb[0].mxu0
        %v2132 = vadd.f32 0.0, %v2131
        %v2133 = vpop.f32.mrb[0].mxu0
        %2134 = vdwg.mxu0
        %v2135 = vmul.f32 %v2132, 0.35355338
        %vm2136 = vcmask 130048
        %v2137 = vsel %vm2136, %v2135, -inf
        %2138 = vmax.xlane.f32.xlu0 %v2137
        %v2139 = vpop.xlane.xlu0 %2138
        %v2140 = vsub.f32 %v2135, %v2139
        %v2141 = vmul.f32 %v2140, 1.442695
        %v2142 = vpow.pop %v2141
        %v2143 = vsel %vm2136, %v2142, 0.0
        %2144 = vadd.xlane.f32.xlu0 %v2143
        %v2145 = vpop.xlane.xlu0 %2144
        %v2146 = vrcp.pop %v2145
        %v2147 = vmul.f32 %v2142, %v2146
        %2148 = vst.msk [vmem:[%s763] sm:$0xff] %vm2136, %v2147
        %2149 = vrot.lane.b32.xlu0 %v2043, 96
        %v2150 = vpop.permute.xlu0 %2149
        %2151 = vrot.lane.b32.xlu0 %v2048, 96
        %v2152 = vpop.permute.xlu0 %2151
        %v2156 = vsel %vm2136, %v2147, 0
        %2158 = vmatprep.subr.mxu0 0.0
        %2159 = vmatpush1.msra.mxu0 %v2150
        %2160 = vmatprep.subr.mxu0 0.0
        %2161 = vmatpush1.msra.mxu0 %v2152
        %2162 = vmatprep.subr.mxu0 0.0
        %2163 = vmatpush1.msra.mxu0 0.0
        %2164 = vmatprep.subr.mxu0 0.0
        %2165 = vmatpush1.msra.mxu0 0.0
        %2166 = vmatprep.subr.mxu0 0.0
        %2167 = vmatpush1.msra.mxu0 0.0
        %2168 = vmatprep.subr.mxu0 0.0
        %2169 = vmatpush1.msra.mxu0 0.0
        %2170 = vmatprep.subr.mxu0 0.0
        %2171 = vmatpush1.msra.mxu0 0.0
        %2172 = vmatprep.subr.mxu0 0.0
        %2173 = vmatpush1.msra.mxu0 0.0
        %2174 = vmatprep.subr.mxu0 0.0
        %2175 = vmatpush1.msra.mxu0 0.0
        %2176 = vmatprep.subr.mxu0 0.0
        %2177 = vmatpush1.msra.mxu0 0.0
        %2178 = vmatprep.subr.mxu0 0.0
        %2179 = vmatpush1.msra.mxu0 0.0
        %2180 = vmatprep.subr.mxu0 0.0
        %2181 = vmatpush1.msra.mxu0 0.0
        %2182 = vmatprep.subr.mxu0 0.0
        %2183 = vmatpush1.msra.mxu0 0.0
        %2184 = vmatprep.subr.mxu0 0.0
        %2185 = vmatpush1.msra.mxu0 0.0
        %2186 = vmatprep.subr.mxu0 0.0
        %2187 = vmatpush1.msra.mxu0 0.0
        %2188 = vmatprep.subr.mxu0 0.0
        %2189 = vmatpush1.msra.mxu0 0.0
        %2190 = vmatprep.subr.mxu0 0.0
        %2191 = vmatpush1.msra.mxu0 0.0
        %2192 = vmatprep.subr.mxu0 0.0
        %2193 = vmatpush1.msra.mxu0 0.0
        %2194 = vmatprep.subr.mxu0 0.0
        %2195 = vmatpush1.msra.mxu0 0.0
        %2196 = vmatprep.subr.mxu0 0.0
        %2197 = vmatpush1.msra.mxu0 0.0
        %2198 = vmatprep.subr.mxu0 0.0
        %2199 = vmatpush1.msra.mxu0 0.0
        %2200 = vmatprep.subr.mxu0 0.0
        %2201 = vmatpush1.msra.mxu0 0.0
        %2202 = vmatprep.subr.mxu0 0.0
        %2203 = vmatpush1.msra.mxu0 0.0
        %2204 = vmatprep.subr.mxu0 0.0
        %2205 = vmatpush1.msra.mxu0 0.0
        %2206 = vmatprep.subr.mxu0 0.0
        %2207 = vmatpush1.msra.mxu0 0.0
        %2208 = vmatprep.subr.mxu0 0.0
        %2209 = vmatpush1.msra.mxu0 0.0
        %2210 = vmatprep.subr.mxu0 0.0
        %2211 = vmatpush1.msra.mxu0 0.0
        %2212 = vmatprep.subr.mxu0 0.0
        %2213 = vmatpush1.msra.mxu0 0.0
        %2214 = vmatprep.subr.mxu0 0.0
        %2215 = vmatpush1.msra.mxu0 0.0
        %2216 = vmatprep.subr.mxu0 0.0
        %2217 = vmatpush1.msra.mxu0 0.0
        %2218 = vmatprep.subr.mxu0 0.0
        %2219 = vmatpush1.msra.mxu0 0.0
        %2220 = vmatprep.subr.mxu0 0.0
        %2221 = vmatpush1.msra.mxu0 0.0
        %2222 = vmatprep.mubr.f32.mxu0 0.0
        %2223 = vmatmul.mubr.f32.gmra.mrb[0].mxu0 %v2156
        %v2224 = vpop.f32.mrb[0].mxu0
        %v2225 = vadd.f32 0.0, %v2224
        %v2226 = vpop.f32.mrb[0].mxu0
        %2227 = vdwg.mxu0
        %2228 = vrot.lane.b32.xlu0 %v1956, 120
        %v2229 = vpop.permute.xlu0 %2228
        %2230 = vrot.lane.b32.xlu0 %v2043, 120
        %v2231 = vpop.permute.xlu0 %2230
        %2232 = vrot.lane.b32.xlu0 %v2048, 120
        %v2233 = vpop.permute.xlu0 %2232
        %v2234 = vsel %vm878, %v2229, 0
        %v2236 = vsel %vm878, %v2231, 0
        %v2238 = vsel %vm878, %v2233, 0
        %2240 = vmatprep.subr.mxu0 0.0
        %2241 = vmatpush1.xpose.msra.mxu0 %v2236
        %2242 = vmatprep.subr.mxu0 0.0
        %2243 = vmatpush1.xpose.msra.mxu0 %v2238
        %2244 = vmatprep.subr.mxu0 0.0
        %2245 = vmatpush1.xpose.msra.mxu0 0.0
        %2246 = vmatprep.subr.mxu0 0.0
        %2247 = vmatpush1.xpose.msra.mxu0 0.0
        %2248 = vmatprep.subr.mxu0 0.0
        %2249 = vmatpush1.xpose.msra.mxu0 0.0
        %2250 = vmatprep.subr.mxu0 0.0
        %2251 = vmatpush1.xpose.msra.mxu0 0.0
        %2252 = vmatprep.subr.mxu0 0.0
        %2253 = vmatpush1.xpose.msra.mxu0 0.0
        %2254 = vmatprep.subr.mxu0 0.0
        %2255 = vmatpush1.xpose.msra.mxu0 0.0
        %2256 = vmatprep.subr.mxu0 0.0
        %2257 = vmatpush1.xpose.msra.mxu0 0.0
        %2258 = vmatprep.subr.mxu0 0.0
        %2259 = vmatpush1.xpose.msra.mxu0 0.0
        %2260 = vmatprep.subr.mxu0 0.0
        %2261 = vmatpush1.xpose.msra.mxu0 0.0
        %2262 = vmatprep.subr.mxu0 0.0
        %2263 = vmatpush1.xpose.msra.mxu0 0.0
        %2264 = vmatprep.subr.mxu0 0.0
        %2265 = vmatpush1.xpose.msra.mxu0 0.0
        %2266 = vmatprep.subr.mxu0 0.0
        %2267 = vmatpush1.xpose.msra.mxu0 0.0
        %2268 = vmatprep.subr.mxu0 0.0
        %2269 = vmatpush1.xpose.msra.mxu0 0.0
        %2270 = vmatprep.subr.mxu0 0.0
        %2271 = vmatpush1.xpose.msra.mxu0 0.0
        %2272 = vmatprep.subr.mxu0 0.0
        %2273 = vmatpush1.xpose.msra.mxu0 0.0
        %2274 = vmatprep.subr.mxu0 0.0
        %2275 = vmatpush1.xpose.msra.mxu0 0.0
        %2276 = vmatprep.subr.mxu0 0.0
        %2277 = vmatpush1.xpose.msra.mxu0 0.0
        %2278 = vmatprep.subr.mxu0 0.0
        %2279 = vmatpush1.xpose.msra.mxu0 0.0
        %2280 = vmatprep.subr.mxu0 0.0
        %2281 = vmatpush1.xpose.msra.mxu0 0.0
        %2282 = vmatprep.subr.mxu0 0.0
        %2283 = vmatpush1.xpose.msra.mxu0 0.0
        %2284 = vmatprep.subr.mxu0 0.0
        %2285 = vmatpush1.xpose.msra.mxu0 0.0
        %2286 = vmatprep.subr.mxu0 0.0
        %2287 = vmatpush1.xpose.msra.mxu0 0.0
        %2288 = vmatprep.subr.mxu0 0.0
        %2289 = vmatpush1.xpose.msra.mxu0 0.0
        %2290 = vmatprep.subr.mxu0 0.0
        %2291 = vmatpush1.xpose.msra.mxu0 0.0
        %2292 = vmatprep.subr.mxu0 0.0
        %2293 = vmatpush1.xpose.msra.mxu0 0.0
        %2294 = vmatprep.subr.mxu0 0.0
        %2295 = vmatpush1.xpose.msra.mxu0 0.0
        %2296 = vmatprep.subr.mxu0 0.0
        %2297 = vmatpush1.xpose.msra.mxu0 0.0
        %2298 = vmatprep.subr.mxu0 0.0
        %2299 = vmatpush1.xpose.msra.mxu0 0.0
        %2300 = vmatprep.subr.mxu0 0.0
        %2301 = vmatpush1.xpose.msra.mxu0 0.0
        %2302 = vmatprep.subr.mxu0 0.0
        %2303 = vmatpush1.xpose.msra.mxu0 0.0
        %2304 = vmatprep.mubr.f32.mxu0 0.0
        %2305 = vmatmul.mubr.f32.gmra.mrb[0].mxu0 %v2234
        %v2306 = vpop.f32.mrb[0].mxu0
        %v2307 = vadd.f32 0.0, %v2306
        %v2308 = vpop.f32.mrb[0].mxu0
        %2309 = vdwg.mxu0
        %v2310 = vmul.f32 %v2307, 0.35355338
        %v2311 = vsel %vm2136, %v2310, -inf
        %2312 = vmax.xlane.f32.xlu0 %v2311
        %v2313 = vpop.xlane.xlu0 %2312
        %v2314 = vsub.f32 %v2310, %v2313
        %v2315 = vmul.f32 %v2314, 1.442695
        %v2316 = vpow.pop %v2315
        %v2317 = vsel %vm2136, %v2316, 0.0
        %2318 = vadd.xlane.f32.xlu0 %v2317
        %v2319 = vpop.xlane.xlu0 %2318
        %v2320 = vrcp.pop %v2319
        %v2321 = vmul.f32 %v2316, %v2320
        %s2322 = scalar_lea.vmem %s763, 8 [#allocation2]
        %2323 = vst.msk [vmem:[%s2322] sm:$0xff] %vm2136, %v2321
        %2324 = vrot.lane.b32.xlu0 %v2043, 88
        %v2325 = vpop.permute.xlu0 %2324
        %2326 = vrot.lane.b32.xlu0 %v2048, 88
        %v2327 = vpop.permute.xlu0 %2326
        %v2331 = vsel %vm2136, %v2321, 0
        %2333 = vmatprep.subr.mxu0 0.0
        %2334 = vmatpush1.msra.mxu0 %v2325
        %2335 = vmatprep.subr.mxu0 0.0
        %2336 = vmatpush1.msra.mxu0 %v2327
        %2337 = vmatprep.subr.mxu0 0.0
        %2338 = vmatpush1.msra.mxu0 0.0
        %2339 = vmatprep.subr.mxu0 0.0
        %2340 = vmatpush1.msra.mxu0 0.0
        %2341 = vmatprep.subr.mxu0 0.0
        %2342 = vmatpush1.msra.mxu0 0.0
        %2343 = vmatprep.subr.mxu0 0.0
        %2344 = vmatpush1.msra.mxu0 0.0
        %2345 = vmatprep.subr.mxu0 0.0
        %2346 = vmatpush1.msra.mxu0 0.0
        %2347 = vmatprep.subr.mxu0 0.0
        %2348 = vmatpush1.msra.mxu0 0.0
        %2349 = vmatprep.subr.mxu0 0.0
        %2350 = vmatpush1.msra.mxu0 0.0
        %2351 = vmatprep.subr.mxu0 0.0
        %2352 = vmatpush1.msra.mxu0 0.0
        %2353 = vmatprep.subr.mxu0 0.0
        %2354 = vmatpush1.msra.mxu0 0.0
        %2355 = vmatprep.subr.mxu0 0.0
        %2356 = vmatpush1.msra.mxu0 0.0
        %2357 = vmatprep.subr.mxu0 0.0
        %2358 = vmatpush1.msra.mxu0 0.0
        %2359 = vmatprep.subr.mxu0 0.0
        %2360 = vmatpush1.msra.mxu0 0.0
        %2361 = vmatprep.subr.mxu0 0.0
        %2362 = vmatpush1.msra.mxu0 0.0
        %2363 = vmatprep.subr.mxu0 0.0
        %2364 = vmatpush1.msra.mxu0 0.0
        %2365 = vmatprep.subr.mxu0 0.0
        %2366 = vmatpush1.msra.mxu0 0.0
        %2367 = vmatprep.subr.mxu0 0.0
        %2368 = vmatpush1.msra.mxu0 0.0
        %2369 = vmatprep.subr.mxu0 0.0
        %2370 = vmatpush1.msra.mxu0 0.0
        %2371 = vmatprep.subr.mxu0 0.0
        %2372 = vmatpush1.msra.mxu0 0.0
        %2373 = vmatprep.subr.mxu0 0.0
        %2374 = vmatpush1.msra.mxu0 0.0
        %2375 = vmatprep.subr.mxu0 0.0
        %2376 = vmatpush1.msra.mxu0 0.0
        %2377 = vmatprep.subr.mxu0 0.0
        %2378 = vmatpush1.msra.mxu0 0.0
        %2379 = vmatprep.subr.mxu0 0.0
        %2380 = vmatpush1.msra.mxu0 0.0
        %2381 = vmatprep.subr.mxu0 0.0
        %2382 = vmatpush1.msra.mxu0 0.0
        %2383 = vmatprep.subr.mxu0 0.0
        %2384 = vmatpush1.msra.mxu0 0.0
        %2385 = vmatprep.subr.mxu0 0.0
        %2386 = vmatpush1.msra.mxu0 0.0
        %2387 = vmatprep.subr.mxu0 0.0
        %2388 = vmatpush1.msra.mxu0 0.0
        %2389 = vmatprep.subr.mxu0 0.0
        %2390 = vmatpush1.msra.mxu0 0.0
        %2391 = vmatprep.subr.mxu0 0.0
        %2392 = vmatpush1.msra.mxu0 0.0
        %2393 = vmatprep.subr.mxu0 0.0
        %2394 = vmatpush1.msra.mxu0 0.0
        %2395 = vmatprep.subr.mxu0 0.0
        %2396 = vmatpush1.msra.mxu0 0.0
        %2397 = vmatprep.mubr.f32.mxu0 0.0
        %2398 = vmatmul.mubr.f32.gmra.mrb[0].mxu0 %v2331
        %v2399 = vpop.f32.mrb[0].mxu0
        %v2400 = vadd.f32 0.0, %v2399
        %v2401 = vpop.f32.mrb[0].mxu0
        %2402 = vdwg.mxu0
        %v2404 = vsel %vm878, %v2400, 0
        %2406 = vmatprep.subr.mxu0 0.0
        %2407 = vmatpush1.msra.mxu0 %v2052
        %2408 = vmatprep.subr.mxu0 0.0
        %2409 = vmatpush1.msra.mxu0 0.0
        %2410 = vmatprep.subr.mxu0 0.0
        %2411 = vmatpush1.msra.mxu0 0.0
        %2412 = vmatprep.subr.mxu0 0.0
        %2413 = vmatpush1.msra.mxu0 0.0
        %2414 = vmatprep.subr.mxu0 0.0
        %2415 = vmatpush1.msra.mxu0 0.0
        %2416 = vmatprep.subr.mxu0 0.0
        %2417 = vmatpush1.msra.mxu0 0.0
        %2418 = vmatprep.subr.mxu0 0.0
        %2419 = vmatpush1.msra.mxu0 0.0
        %2420 = vmatprep.subr.mxu0 0.0
        %2421 = vmatpush1.msra.mxu0 0.0
        %2422 = vmatprep.subr.mxu0 0.0
        %2423 = vmatpush1.msra.mxu0 0.0
        %2424 = vmatprep.subr.mxu0 0.0
        %2425 = vmatpush1.msra.mxu0 0.0
        %2426 = vmatprep.subr.mxu0 0.0
        %2427 = vmatpush1.msra.mxu0 0.0
        %2428 = vmatprep.subr.mxu0 0.0
        %2429 = vmatpush1.msra.mxu0 0.0
        %2430 = vmatprep.subr.mxu0 0.0
        %2431 = vmatpush1.msra.mxu0 0.0
        %2432 = vmatprep.subr.mxu0 0.0
        %2433 = vmatpush1.msra.mxu0 0.0
        %2434 = vmatprep.subr.mxu0 0.0
        %2435 = vmatpush1.msra.mxu0 0.0
        %2436 = vmatprep.subr.mxu0 0.0
        %2437 = vmatpush1.msra.mxu0 0.0
        %2438 = vmatprep.subr.mxu0 0.0
        %2439 = vmatpush1.msra.mxu0 0.0
        %2440 = vmatprep.subr.mxu0 0.0
        %2441 = vmatpush1.msra.mxu0 0.0
        %2442 = vmatprep.subr.mxu0 0.0
        %2443 = vmatpush1.msra.mxu0 0.0
        %2444 = vmatprep.subr.mxu0 0.0
        %2445 = vmatpush1.msra.mxu0 0.0
        %2446 = vmatprep.subr.mxu0 0.0
        %2447 = vmatpush1.msra.mxu0 0.0
        %2448 = vmatprep.subr.mxu0 0.0
        %2449 = vmatpush1.msra.mxu0 0.0
        %2450 = vmatprep.subr.mxu0 0.0
        %2451 = vmatpush1.msra.mxu0 0.0
        %2452 = vmatprep.subr.mxu0 0.0
        %2453 = vmatpush1.msra.mxu0 0.0
        %2454 = vmatprep.subr.mxu0 0.0
        %2455 = vmatpush1.msra.mxu0 0.0
        %2456 = vmatprep.subr.mxu0 0.0
        %2457 = vmatpush1.msra.mxu0 0.0
        %2458 = vmatprep.subr.mxu0 0.0
        %2459 = vmatpush1.msra.mxu0 0.0
        %2460 = vmatprep.subr.mxu0 0.0
        %2461 = vmatpush1.msra.mxu0 0.0
        %2462 = vmatprep.subr.mxu0 0.0
        %2463 = vmatpush1.msra.mxu0 0.0
        %2464 = vmatprep.subr.mxu0 0.0
        %2465 = vmatpush1.msra.mxu0 0.0
        %2466 = vmatprep.subr.mxu0 0.0
        %2467 = vmatpush1.msra.mxu0 0.0
        %2468 = vmatprep.subr.mxu0 0.0
        %2469 = vmatpush1.msra.mxu0 0.0
        %2470 = vmatprep.mubr.f32.mxu0 0.0
        %2471 = vmatmul.mubr.f32.gmra.mrb[0].mxu0 %v2404
        %v2472 = vpop.f32.mrb[0].mxu0
        %v2473 = vadd.f32 0.0, %v2472
        %v2474 = vpop.f32.mrb[0].mxu0
        %2475 = vdwg.mxu0
        %v2477 = vsel %vm878, %v2225, 0
        %2479 = vmatprep.subr.mxu0 0.0
        %2480 = vmatpush1.msra.mxu0 %v2051
        %2481 = vmatprep.subr.mxu0 0.0
        %2482 = vmatpush1.msra.mxu0 0.0
        %2483 = vmatprep.subr.mxu0 0.0
        %2484 = vmatpush1.msra.mxu0 0.0
        %2485 = vmatprep.subr.mxu0 0.0
        %2486 = vmatpush1.msra.mxu0 0.0
        %2487 = vmatprep.subr.mxu0 0.0
        %2488 = vmatpush1.msra.mxu0 0.0
        %2489 = vmatprep.subr.mxu0 0.0
        %2490 = vmatpush1.msra.mxu0 0.0
        %2491 = vmatprep.subr.mxu0 0.0
        %2492 = vmatpush1.msra.mxu0 0.0
        %2493 = vmatprep.subr.mxu0 0.0
        %2494 = vmatpush1.msra.mxu0 0.0
        %2495 = vmatprep.subr.mxu0 0.0
        %2496 = vmatpush1.msra.mxu0 0.0
        %2497 = vmatprep.subr.mxu0 0.0
        %2498 = vmatpush1.msra.mxu0 0.0
        %2499 = vmatprep.subr.mxu0 0.0
        %2500 = vmatpush1.msra.mxu0 0.0
        %2501 = vmatprep.subr.mxu0 0.0
        %2502 = vmatpush1.msra.mxu0 0.0
        %2503 = vmatprep.subr.mxu0 0.0
        %2504 = vmatpush1.msra.mxu0 0.0
        %2505 = vmatprep.subr.mxu0 0.0
        %2506 = vmatpush1.msra.mxu0 0.0
        %2507 = vmatprep.subr.mxu0 0.0
        %2508 = vmatpush1.msra.mxu0 0.0
        %2509 = vmatprep.subr.mxu0 0.0
        %2510 = vmatpush1.msra.mxu0 0.0
        %2511 = vmatprep.subr.mxu0 0.0
        %2512 = vmatpush1.msra.mxu0 0.0
        %2513 = vmatprep.subr.mxu0 0.0
        %2514 = vmatpush1.msra.mxu0 0.0
        %2515 = vmatprep.subr.mxu0 0.0
        %2516 = vmatpush1.msra.mxu0 0.0
        %2517 = vmatprep.subr.mxu0 0.0
        %2518 = vmatpush1.msra.mxu0 0.0
        %2519 = vmatprep.subr.mxu0 0.0
        %2520 = vmatpush1.msra.mxu0 0.0
        %2521 = vmatprep.subr.mxu0 0.0
        %2522 = vmatpush1.msra.mxu0 0.0
        %2523 = vmatprep.subr.mxu0 0.0
        %2524 = vmatpush1.msra.mxu0 0.0
        %2525 = vmatprep.subr.mxu0 0.0
        %2526 = vmatpush1.msra.mxu0 0.0
        %2527 = vmatprep.subr.mxu0 0.0
        %2528 = vmatpush1.msra.mxu0 0.0
        %2529 = vmatprep.subr.mxu0 0.0
        %2530 = vmatpush1.msra.mxu0 0.0
        %2531 = vmatprep.subr.mxu0 0.0
        %2532 = vmatpush1.msra.mxu0 0.0
        %2533 = vmatprep.subr.mxu0 0.0
        %2534 = vmatpush1.msra.mxu0 0.0
        %2535 = vmatprep.subr.mxu0 0.0
        %2536 = vmatpush1.msra.mxu0 0.0
        %2537 = vmatprep.subr.mxu0 0.0
        %2538 = vmatpush1.msra.mxu0 0.0
        %2539 = vmatprep.subr.mxu0 0.0
        %2540 = vmatpush1.msra.mxu0 0.0
        %2541 = vmatprep.subr.mxu0 0.0
        %2542 = vmatpush1.msra.mxu0 0.0
        %2543 = vmatprep.mubr.f32.mxu0 0.0
        %2544 = vmatmul.mubr.f32.gmra.mrb[0].mxu0 %v2477
        %v2545 = vpop.f32.mrb[0].mxu0
        %v2546 = vadd.f32 %v2473, %v2545
        %v2547 = vpop.f32.mrb[0].mxu0
        %2548 = vdwg.mxu0
        %2549 = vrot.lane.b32.xlu0 %v1956, 112
        %v2550 = vpop.permute.xlu0 %2549
        %2551 = vrot.lane.b32.xlu0 %v2043, 112
        %v2552 = vpop.permute.xlu0 %2551
        %2553 = vrot.lane.b32.xlu0 %v2048, 112
        %v2554 = vpop.permute.xlu0 %2553
        %v2555 = vsel %vm878, %v2550, 0
        %v2557 = vsel %vm878, %v2552, 0
        %v2559 = vsel %vm878, %v2554, 0
        %2561 = vmatprep.subr.mxu0 0.0
        %2562 = vmatpush1.xpose.msra.mxu0 %v2557
        %2563 = vmatprep.subr.mxu0 0.0
        %2564 = vmatpush1.xpose.msra.mxu0 %v2559
        %2565 = vmatprep.subr.mxu0 0.0
        %2566 = vmatpush1.xpose.msra.mxu0 0.0
        %2567 = vmatprep.subr.mxu0 0.0
        %2568 = vmatpush1.xpose.msra.mxu0 0.0
        %2569 = vmatprep.subr.mxu0 0.0
        %2570 = vmatpush1.xpose.msra.mxu0 0.0
        %2571 = vmatprep.subr.mxu0 0.0
        %2572 = vmatpush1.xpose.msra.mxu0 0.0
        %2573 = vmatprep.subr.mxu0 0.0
        %2574 = vmatpush1.xpose.msra.mxu0 0.0
        %2575 = vmatprep.subr.mxu0 0.0
        %2576 = vmatpush1.xpose.msra.mxu0 0.0
        %2577 = vmatprep.subr.mxu0 0.0
        %2578 = vmatpush1.xpose.msra.mxu0 0.0
        %2579 = vmatprep.subr.mxu0 0.0
        %2580 = vmatpush1.xpose.msra.mxu0 0.0
        %2581 = vmatprep.subr.mxu0 0.0
        %2582 = vmatpush1.xpose.msra.mxu0 0.0
        %2583 = vmatprep.subr.mxu0 0.0
        %2584 = vmatpush1.xpose.msra.mxu0 0.0
        %2585 = vmatprep.subr.mxu0 0.0
        %2586 = vmatpush1.xpose.msra.mxu0 0.0
        %2587 = vmatprep.subr.mxu0 0.0
        %2588 = vmatpush1.xpose.msra.mxu0 0.0
        %2589 = vmatprep.subr.mxu0 0.0
        %2590 = vmatpush1.xpose.msra.mxu0 0.0
        %2591 = vmatprep.subr.mxu0 0.0
        %2592 = vmatpush1.xpose.msra.mxu0 0.0
        %2593 = vmatprep.subr.mxu0 0.0
        %2594 = vmatpush1.xpose.msra.mxu0 0.0
        %2595 = vmatprep.subr.mxu0 0.0
        %2596 = vmatpush1.xpose.msra.mxu0 0.0
        %2597 = vmatprep.subr.mxu0 0.0
        %2598 = vmatpush1.xpose.msra.mxu0 0.0
        %2599 = vmatprep.subr.mxu0 0.0
        %2600 = vmatpush1.xpose.msra.mxu0 0.0
        %2601 = vmatprep.subr.mxu0 0.0
        %2602 = vmatpush1.xpose.msra.mxu0 0.0
        %2603 = vmatprep.subr.mxu0 0.0
        %2604 = vmatpush1.xpose.msra.mxu0 0.0
        %2605 = vmatprep.subr.mxu0 0.0
        %2606 = vmatpush1.xpose.msra.mxu0 0.0
        %2607 = vmatprep.subr.mxu0 0.0
        %2608 = vmatpush1.xpose.msra.mxu0 0.0
        %2609 = vmatprep.subr.mxu0 0.0
        %2610 = vmatpush1.xpose.msra.mxu0 0.0
        %2611 = vmatprep.subr.mxu0 0.0
        %2612 = vmatpush1.xpose.msra.mxu0 0.0
        %2613 = vmatprep.subr.mxu0 0.0
        %2614 = vmatpush1.xpose.msra.mxu0 0.0
        %2615 = vmatprep.subr.mxu0 0.0
        %2616 = vmatpush1.xpose.msra.mxu0 0.0
        %2617 = vmatprep.subr.mxu0 0.0
        %2618 = vmatpush1.xpose.msra.mxu0 0.0
        %2619 = vmatprep.subr.mxu0 0.0
        %2620 = vmatpush1.xpose.msra.mxu0 0.0
        %2621 = vmatprep.subr.mxu0 0.0
        %2622 = vmatpush1.xpose.msra.mxu0 0.0
        %2623 = vmatprep.subr.mxu0 0.0
        %2624 = vmatpush1.xpose.msra.mxu0 0.0
        %2625 = vmatprep.mubr.f32.mxu0 0.0
        %2626 = vmatmul.mubr.f32.gmra.mrb[0].mxu0 %v2555
        %v2627 = vpop.f32.mrb[0].mxu0
        %v2628 = vadd.f32 0.0, %v2627
        %v2629 = vpop.f32.mrb[0].mxu0
        %2630 = vdwg.mxu0
        %v2631 = vmul.f32 %v2628, 0.35355338
        %v2632 = vsel %vm2136, %v2631, -inf
        %2633 = vmax.xlane.f32.xlu0 %v2632
        %v2634 = vpop.xlane.xlu0 %2633
        %v2635 = vsub.f32 %v2631, %v2634
        %v2636 = vmul.f32 %v2635, 1.442695
        %v2637 = vpow.pop %v2636
        %v2638 = vsel %vm2136, %v2637, 0.0
        %2639 = vadd.xlane.f32.xlu0 %v2638
        %v2640 = vpop.xlane.xlu0 %2639
        %v2641 = vrcp.pop %v2640
        %v2642 = vmul.f32 %v2637, %v2641
        %s2643 = scalar_lea.vmem %s763, 16 [#allocation2]
        %2644 = vst.msk [vmem:[%s2643] sm:$0xff] %vm2136, %v2642
        %2645 = vrot.lane.b32.xlu0 %v2043, 80
        %v2646 = vpop.permute.xlu0 %2645
        %2647 = vrot.lane.b32.xlu0 %v2048, 80
        %v2648 = vpop.permute.xlu0 %2647
        %v2652 = vsel %vm2136, %v2642, 0
        %2654 = vmatprep.subr.mxu0 0.0
        %2655 = vmatpush1.msra.mxu0 %v2646
        %2656 = vmatprep.subr.mxu0 0.0
        %2657 = vmatpush1.msra.mxu0 %v2648
        %2658 = vmatprep.subr.mxu0 0.0
        %2659 = vmatpush1.msra.mxu0 0.0
        %2660 = vmatprep.subr.mxu0 0.0
        %2661 = vmatpush1.msra.mxu0 0.0
        %2662 = vmatprep.subr.mxu0 0.0
        %2663 = vmatpush1.msra.mxu0 0.0
        %2664 = vmatprep.subr.mxu0 0.0
        %2665 = vmatpush1.msra.mxu0 0.0
        %2666 = vmatprep.subr.mxu0 0.0
        %2667 = vmatpush1.msra.mxu0 0.0
        %2668 = vmatprep.subr.mxu0 0.0
        %2669 = vmatpush1.msra.mxu0 0.0
        %2670 = vmatprep.subr.mxu0 0.0
        %2671 = vmatpush1.msra.mxu0 0.0
        %2672 = vmatprep.subr.mxu0 0.0
        %2673 = vmatpush1.msra.mxu0 0.0
        %2674 = vmatprep.subr.mxu0 0.0
        %2675 = vmatpush1.msra.mxu0 0.0
        %2676 = vmatprep.subr.mxu0 0.0
        %2677 = vmatpush1.msra.mxu0 0.0
        %2678 = vmatprep.subr.mxu0 0.0
        %2679 = vmatpush1.msra.mxu0 0.0
        %2680 = vmatprep.subr.mxu0 0.0
        %2681 = vmatpush1.msra.mxu0 0.0
        %2682 = vmatprep.subr.mxu0 0.0
        %2683 = vmatpush1.msra.mxu0 0.0
        %2684 = vmatprep.subr.mxu0 0.0
        %2685 = vmatpush1.msra.mxu0 0.0
        %2686 = vmatprep.subr.mxu0 0.0
        %2687 = vmatpush1.msra.mxu0 0.0
        %2688 = vmatprep.subr.mxu0 0.0
        %2689 = vmatpush1.msra.mxu0 0.0
        %2690 = vmatprep.subr.mxu0 0.0
        %2691 = vmatpush1.msra.mxu0 0.0
        %2692 = vmatprep.subr.mxu0 0.0
        %2693 = vmatpush1.msra.mxu0 0.0
        %2694 = vmatprep.subr.mxu0 0.0
        %2695 = vmatpush1.msra.mxu0 0.0
        %2696 = vmatprep.subr.mxu0 0.0
        %2697 = vmatpush1.msra.mxu0 0.0
        %2698 = vmatprep.subr.mxu0 0.0
        %2699 = vmatpush1.msra.mxu0 0.0
        %2700 = vmatprep.subr.mxu0 0.0
        %2701 = vmatpush1.msra.mxu0 0.0
        %2702 = vmatprep.subr.mxu0 0.0
        %2703 = vmatpush1.msra.mxu0 0.0
        %2704 = vmatprep.subr.mxu0 0.0
        %2705 = vmatpush1.msra.mxu0 0.0
        %2706 = vmatprep.subr.mxu0 0.0
        %2707 = vmatpush1.msra.mxu0 0.0
        %2708 = vmatprep.subr.mxu0 0.0
        %2709 = vmatpush1.msra.mxu0 0.0
        %2710 = vmatprep.subr.mxu0 0.0
        %2711 = vmatpush1.msra.mxu0 0.0
        %2712 = vmatprep.subr.mxu0 0.0
        %2713 = vmatpush1.msra.mxu0 0.0
        %2714 = vmatprep.subr.mxu0 0.0
        %2715 = vmatpush1.msra.mxu0 0.0
        %2716 = vmatprep.subr.mxu0 0.0
        %2717 = vmatpush1.msra.mxu0 0.0
        %2718 = vmatprep.mubr.f32.mxu0 0.0
        %2719 = vmatmul.mubr.f32.gmra.mrb[0].mxu0 %v2652
        %v2720 = vpop.f32.mrb[0].mxu0
        %v2721 = vadd.f32 0.0, %v2720
        %v2722 = vpop.f32.mrb[0].mxu0
        %2723 = vdwg.mxu0
        %v2725 = vsel %vm878, %v2721, 0
        %2727 = vmatprep.subr.mxu0 0.0
        %2728 = vmatpush1.msra.mxu0 %v2053
        %2729 = vmatprep.subr.mxu0 0.0
        %2730 = vmatpush1.msra.mxu0 0.0
        %2731 = vmatprep.subr.mxu0 0.0
        %2732 = vmatpush1.msra.mxu0 0.0
        %2733 = vmatprep.subr.mxu0 0.0
        %2734 = vmatpush1.msra.mxu0 0.0
        %2735 = vmatprep.subr.mxu0 0.0
        %2736 = vmatpush1.msra.mxu0 0.0
        %2737 = vmatprep.subr.mxu0 0.0
        %2738 = vmatpush1.msra.mxu0 0.0
        %2739 = vmatprep.subr.mxu0 0.0
        %2740 = vmatpush1.msra.mxu0 0.0
        %2741 = vmatprep.subr.mxu0 0.0
        %2742 = vmatpush1.msra.mxu0 0.0
        %2743 = vmatprep.subr.mxu0 0.0
        %2744 = vmatpush1.msra.mxu0 0.0
        %2745 = vmatprep.subr.mxu0 0.0
        %2746 = vmatpush1.msra.mxu0 0.0
        %2747 = vmatprep.subr.mxu0 0.0
        %2748 = vmatpush1.msra.mxu0 0.0
        %2749 = vmatprep.subr.mxu0 0.0
        %2750 = vmatpush1.msra.mxu0 0.0
        %2751 = vmatprep.subr.mxu0 0.0
        %2752 = vmatpush1.msra.mxu0 0.0
        %2753 = vmatprep.subr.mxu0 0.0
        %2754 = vmatpush1.msra.mxu0 0.0
        %2755 = vmatprep.subr.mxu0 0.0
        %2756 = vmatpush1.msra.mxu0 0.0
        %2757 = vmatprep.subr.mxu0 0.0
        %2758 = vmatpush1.msra.mxu0 0.0
        %2759 = vmatprep.subr.mxu0 0.0
        %2760 = vmatpush1.msra.mxu0 0.0
        %2761 = vmatprep.subr.mxu0 0.0
        %2762 = vmatpush1.msra.mxu0 0.0
        %2763 = vmatprep.subr.mxu0 0.0
        %2764 = vmatpush1.msra.mxu0 0.0
        %2765 = vmatprep.subr.mxu0 0.0
        %2766 = vmatpush1.msra.mxu0 0.0
        %2767 = vmatprep.subr.mxu0 0.0
        %2768 = vmatpush1.msra.mxu0 0.0
        %2769 = vmatprep.subr.mxu0 0.0
        %2770 = vmatpush1.msra.mxu0 0.0
        %2771 = vmatprep.subr.mxu0 0.0
        %2772 = vmatpush1.msra.mxu0 0.0
        %2773 = vmatprep.subr.mxu0 0.0
        %2774 = vmatpush1.msra.mxu0 0.0
        %2775 = vmatprep.subr.mxu0 0.0
        %2776 = vmatpush1.msra.mxu0 0.0
        %2777 = vmatprep.subr.mxu0 0.0
        %2778 = vmatpush1.msra.mxu0 0.0
        %2779 = vmatprep.subr.mxu0 0.0
        %2780 = vmatpush1.msra.mxu0 0.0
        %2781 = vmatprep.subr.mxu0 0.0
        %2782 = vmatpush1.msra.mxu0 0.0
        %2783 = vmatprep.subr.mxu0 0.0
        %2784 = vmatpush1.msra.mxu0 0.0
        %2785 = vmatprep.subr.mxu0 0.0
        %2786 = vmatpush1.msra.mxu0 0.0
        %2787 = vmatprep.subr.mxu0 0.0
        %2788 = vmatpush1.msra.mxu0 0.0
        %2789 = vmatprep.subr.mxu0 0.0
        %2790 = vmatpush1.msra.mxu0 0.0
        %2791 = vmatprep.mubr.f32.mxu0 0.0
        %2792 = vmatmul.mubr.f32.gmra.mrb[0].mxu0 %v2725
        %v2793 = vpop.f32.mrb[0].mxu0
        %v2794 = vadd.f32 0.0, %v2793
        %v2795 = vpop.f32.mrb[0].mxu0
        %2796 = vdwg.mxu0
        %v2797 = vadd.f32 %v2546, %v2794
        %2798 = vrot.lane.b32.xlu0 %v1956, 104
        %v2799 = vpop.permute.xlu0 %2798
        %2800 = vrot.lane.b32.xlu0 %v2043, 104
        %v2801 = vpop.permute.xlu0 %2800
        %2802 = vrot.lane.b32.xlu0 %v2048, 104
        %v2803 = vpop.permute.xlu0 %2802
        %v2804 = vsel %vm878, %v2799, 0
        %v2806 = vsel %vm878, %v2801, 0
        %v2808 = vsel %vm878, %v2803, 0
        %2810 = vmatprep.subr.mxu0 0.0
        %2811 = vmatpush1.xpose.msra.mxu0 %v2806
        %2812 = vmatprep.subr.mxu0 0.0
        %2813 = vmatpush1.xpose.msra.mxu0 %v2808
        %2814 = vmatprep.subr.mxu0 0.0
        %2815 = vmatpush1.xpose.msra.mxu0 0.0
        %2816 = vmatprep.subr.mxu0 0.0
        %2817 = vmatpush1.xpose.msra.mxu0 0.0
        %2818 = vmatprep.subr.mxu0 0.0
        %2819 = vmatpush1.xpose.msra.mxu0 0.0
        %2820 = vmatprep.subr.mxu0 0.0
        %2821 = vmatpush1.xpose.msra.mxu0 0.0
        %2822 = vmatprep.subr.mxu0 0.0
        %2823 = vmatpush1.xpose.msra.mxu0 0.0
        %2824 = vmatprep.subr.mxu0 0.0
        %2825 = vmatpush1.xpose.msra.mxu0 0.0
        %2826 = vmatprep.subr.mxu0 0.0
        %2827 = vmatpush1.xpose.msra.mxu0 0.0
        %2828 = vmatprep.subr.mxu0 0.0
        %2829 = vmatpush1.xpose.msra.mxu0 0.0
        %2830 = vmatprep.subr.mxu0 0.0
        %2831 = vmatpush1.xpose.msra.mxu0 0.0
        %2832 = vmatprep.subr.mxu0 0.0
        %2833 = vmatpush1.xpose.msra.mxu0 0.0
        %2834 = vmatprep.subr.mxu0 0.0
        %2835 = vmatpush1.xpose.msra.mxu0 0.0
        %2836 = vmatprep.subr.mxu0 0.0
        %2837 = vmatpush1.xpose.msra.mxu0 0.0
        %2838 = vmatprep.subr.mxu0 0.0
        %2839 = vmatpush1.xpose.msra.mxu0 0.0
        %2840 = vmatprep.subr.mxu0 0.0
        %2841 = vmatpush1.xpose.msra.mxu0 0.0
        %2842 = vmatprep.subr.mxu0 0.0
        %2843 = vmatpush1.xpose.msra.mxu0 0.0
        %2844 = vmatprep.subr.mxu0 0.0
        %2845 = vmatpush1.xpose.msra.mxu0 0.0
        %2846 = vmatprep.subr.mxu0 0.0
        %2847 = vmatpush1.xpose.msra.mxu0 0.0
        %2848 = vmatprep.subr.mxu0 0.0
        %2849 = vmatpush1.xpose.msra.mxu0 0.0
        %2850 = vmatprep.subr.mxu0 0.0
        %2851 = vmatpush1.xpose.msra.mxu0 0.0
        %2852 = vmatprep.subr.mxu0 0.0
        %2853 = vmatpush1.xpose.msra.mxu0 0.0
        %2854 = vmatprep.subr.mxu0 0.0
        %2855 = vmatpush1.xpose.msra.mxu0 0.0
        %2856 = vmatprep.subr.mxu0 0.0
        %2857 = vmatpush1.xpose.msra.mxu0 0.0
        %2858 = vmatprep.subr.mxu0 0.0
        %2859 = vmatpush1.xpose.msra.mxu0 0.0
        %2860 = vmatprep.subr.mxu0 0.0
        %2861 = vmatpush1.xpose.msra.mxu0 0.0
        %2862 = vmatprep.subr.mxu0 0.0
        %2863 = vmatpush1.xpose.msra.mxu0 0.0
        %2864 = vmatprep.subr.mxu0 0.0
        %2865 = vmatpush1.xpose.msra.mxu0 0.0
        %2866 = vmatprep.subr.mxu0 0.0
        %2867 = vmatpush1.xpose.msra.mxu0 0.0
        %2868 = vmatprep.subr.mxu0 0.0
        %2869 = vmatpush1.xpose.msra.mxu0 0.0
        %2870 = vmatprep.subr.mxu0 0.0
        %2871 = vmatpush1.xpose.msra.mxu0 0.0
        %2872 = vmatprep.subr.mxu0 0.0
        %2873 = vmatpush1.xpose.msra.mxu0 0.0
        %2874 = vmatprep.mubr.f32.mxu0 0.0
        %2875 = vmatmul.mubr.f32.gmra.mrb[0].mxu0 %v2804
        %v2876 = vpop.f32.mrb[0].mxu0
        %v2877 = vadd.f32 0.0, %v2876
        %v2878 = vpop.f32.mrb[0].mxu0
        %2879 = vdwg.mxu0
        %v2880 = vmul.f32 %v2877, 0.35355338
        %v2881 = vsel %vm2136, %v2880, -inf
        %2882 = vmax.xlane.f32.xlu0 %v2881
        %v2883 = vpop.xlane.xlu0 %2882
        %v2884 = vsub.f32 %v2880, %v2883
        %v2885 = vmul.f32 %v2884, 1.442695
        %v2886 = vpow.pop %v2885
        %v2887 = vsel %vm2136, %v2886, 0.0
        %2888 = vadd.xlane.f32.xlu0 %v2887
        %v2889 = vpop.xlane.xlu0 %2888
        %v2890 = vrcp.pop %v2889
        %v2891 = vmul.f32 %v2886, %v2890
        %s2892 = scalar_lea.vmem %s763, 24 [#allocation2]
        %2893 = vst.msk [vmem:[%s2892] sm:$0xff] %vm2136, %v2891
        %2894 = vrot.lane.b32.xlu0 %v2043, 72
        %v2895 = vpop.permute.xlu0 %2894
        %2896 = vrot.lane.b32.xlu0 %v2048, 72
        %v2897 = vpop.permute.xlu0 %2896
        %v2901 = vsel %vm2136, %v2891, 0
        %2903 = vmatprep.subr.mxu0 0.0
        %2904 = vmatpush1.msra.mxu0 %v2895
        %2905 = vmatprep.subr.mxu0 0.0
        %2906 = vmatpush1.msra.mxu0 %v2897
        %2907 = vmatprep.subr.mxu0 0.0
        %2908 = vmatpush1.msra.mxu0 0.0
        %2909 = vmatprep.subr.mxu0 0.0
        %2910 = vmatpush1.msra.mxu0 0.0
        %2911 = vmatprep.subr.mxu0 0.0
        %2912 = vmatpush1.msra.mxu0 0.0
        %2913 = vmatprep.subr.mxu0 0.0
        %2914 = vmatpush1.msra.mxu0 0.0
        %2915 = vmatprep.subr.mxu0 0.0
        %2916 = vmatpush1.msra.mxu0 0.0
        %2917 = vmatprep.subr.mxu0 0.0
        %2918 = vmatpush1.msra.mxu0 0.0
        %2919 = vmatprep.subr.mxu0 0.0
        %2920 = vmatpush1.msra.mxu0 0.0
        %2921 = vmatprep.subr.mxu0 0.0
        %2922 = vmatpush1.msra.mxu0 0.0
        %2923 = vmatprep.subr.mxu0 0.0
        %2924 = vmatpush1.msra.mxu0 0.0
        %2925 = vmatprep.subr.mxu0 0.0
        %2926 = vmatpush1.msra.mxu0 0.0
        %2927 = vmatprep.subr.mxu0 0.0
        %2928 = vmatpush1.msra.mxu0 0.0
        %2929 = vmatprep.subr.mxu0 0.0
        %2930 = vmatpush1.msra.mxu0 0.0
        %2931 = vmatprep.subr.mxu0 0.0
        %2932 = vmatpush1.msra.mxu0 0.0
        %2933 = vmatprep.subr.mxu0 0.0
        %2934 = vmatpush1.msra.mxu0 0.0
        %2935 = vmatprep.subr.mxu0 0.0
        %2936 = vmatpush1.msra.mxu0 0.0
        %2937 = vmatprep.subr.mxu0 0.0
        %2938 = vmatpush1.msra.mxu0 0.0
        %2939 = vmatprep.subr.mxu0 0.0
        %2940 = vmatpush1.msra.mxu0 0.0
        %2941 = vmatprep.subr.mxu0 0.0
        %2942 = vmatpush1.msra.mxu0 0.0
        %2943 = vmatprep.subr.mxu0 0.0
        %2944 = vmatpush1.msra.mxu0 0.0
        %2945 = vmatprep.subr.mxu0 0.0
        %2946 = vmatpush1.msra.mxu0 0.0
        %2947 = vmatprep.subr.mxu0 0.0
        %2948 = vmatpush1.msra.mxu0 0.0
        %2949 = vmatprep.subr.mxu0 0.0
        %2950 = vmatpush1.msra.mxu0 0.0
        %2951 = vmatprep.subr.mxu0 0.0
        %2952 = vmatpush1.msra.mxu0 0.0
        %2953 = vmatprep.subr.mxu0 0.0
        %2954 = vmatpush1.msra.mxu0 0.0
        %2955 = vmatprep.subr.mxu0 0.0
        %2956 = vmatpush1.msra.mxu0 0.0
        %2957 = vmatprep.subr.mxu0 0.0
        %2958 = vmatpush1.msra.mxu0 0.0
        %2959 = vmatprep.subr.mxu0 0.0
        %2960 = vmatpush1.msra.mxu0 0.0
        %2961 = vmatprep.subr.mxu0 0.0
        %2962 = vmatpush1.msra.mxu0 0.0
        %2963 = vmatprep.subr.mxu0 0.0
        %2964 = vmatpush1.msra.mxu0 0.0
        %2965 = vmatprep.subr.mxu0 0.0
        %2966 = vmatpush1.msra.mxu0 0.0
        %2967 = vmatprep.mubr.f32.mxu0 0.0
        %2968 = vmatmul.mubr.f32.gmra.mrb[0].mxu0 %v2901
        %v2969 = vpop.f32.mrb[0].mxu0
        %v2970 = vadd.f32 0.0, %v2969
        %v2971 = vpop.f32.mrb[0].mxu0
        %2972 = vdwg.mxu0
        %v2974 = vsel %vm878, %v2970, 0
        %2976 = vmatprep.subr.mxu0 0.0
        %2977 = vmatpush1.msra.mxu0 %v2054
        %2978 = vmatprep.subr.mxu0 0.0
        %2979 = vmatpush1.msra.mxu0 0.0
        %2980 = vmatprep.subr.mxu0 0.0
        %2981 = vmatpush1.msra.mxu0 0.0
        %2982 = vmatprep.subr.mxu0 0.0
        %2983 = vmatpush1.msra.mxu0 0.0
        %2984 = vmatprep.subr.mxu0 0.0
        %2985 = vmatpush1.msra.mxu0 0.0
        %2986 = vmatprep.subr.mxu0 0.0
        %2987 = vmatpush1.msra.mxu0 0.0
        %2988 = vmatprep.subr.mxu0 0.0
        %2989 = vmatpush1.msra.mxu0 0.0
        %2990 = vmatprep.subr.mxu0 0.0
        %2991 = vmatpush1.msra.mxu0 0.0
        %2992 = vmatprep.subr.mxu0 0.0
        %2993 = vmatpush1.msra.mxu0 0.0
        %2994 = vmatprep.subr.mxu0 0.0
        %2995 = vmatpush1.msra.mxu0 0.0
        %2996 = vmatprep.subr.mxu0 0.0
        %2997 = vmatpush1.msra.mxu0 0.0
        %2998 = vmatprep.subr.mxu0 0.0
        %2999 = vmatpush1.msra.mxu0 0.0
        %3000 = vmatprep.subr.mxu0 0.0
        %3001 = vmatpush1.msra.mxu0 0.0
        %3002 = vmatprep.subr.mxu0 0.0
        %3003 = vmatpush1.msra.mxu0 0.0
        %3004 = vmatprep.subr.mxu0 0.0
        %3005 = vmatpush1.msra.mxu0 0.0
        %3006 = vmatprep.subr.mxu0 0.0
        %3007 = vmatpush1.msra.mxu0 0.0
        %3008 = vmatprep.subr.mxu0 0.0
        %3009 = vmatpush1.msra.mxu0 0.0
        %3010 = vmatprep.subr.mxu0 0.0
        %3011 = vmatpush1.msra.mxu0 0.0
        %3012 = vmatprep.subr.mxu0 0.0
        %3013 = vmatpush1.msra.mxu0 0.0
        %3014 = vmatprep.subr.mxu0 0.0
        %3015 = vmatpush1.msra.mxu0 0.0
        %3016 = vmatprep.subr.mxu0 0.0
        %3017 = vmatpush1.msra.mxu0 0.0
        %3018 = vmatprep.subr.mxu0 0.0
        %3019 = vmatpush1.msra.mxu0 0.0
        %3020 = vmatprep.subr.mxu0 0.0
        %3021 = vmatpush1.msra.mxu0 0.0
        %3022 = vmatprep.subr.mxu0 0.0
        %3023 = vmatpush1.msra.mxu0 0.0
        %3024 = vmatprep.subr.mxu0 0.0
        %3025 = vmatpush1.msra.mxu0 0.0
        %3026 = vmatprep.subr.mxu0 0.0
        %3027 = vmatpush1.msra.mxu0 0.0
        %3028 = vmatprep.subr.mxu0 0.0
        %3029 = vmatpush1.msra.mxu0 0.0
        %3030 = vmatprep.subr.mxu0 0.0
        %3031 = vmatpush1.msra.mxu0 0.0
        %3032 = vmatprep.subr.mxu0 0.0
        %3033 = vmatpush1.msra.mxu0 0.0
        %3034 = vmatprep.subr.mxu0 0.0
        %3035 = vmatpush1.msra.mxu0 0.0
        %3036 = vmatprep.subr.mxu0 0.0
        %3037 = vmatpush1.msra.mxu0 0.0
        %3038 = vmatprep.subr.mxu0 0.0
        %3039 = vmatpush1.msra.mxu0 0.0
        %3040 = vmatprep.mubr.f32.mxu0 0.0
        %3041 = vmatmul.mubr.f32.gmra.mrb[0].mxu0 %v2974
        %v3042 = vpop.f32.mrb[0].mxu0
        %v3043 = vadd.f32 0.0, %v3042
        %v3044 = vpop.f32.mrb[0].mxu0
        %3045 = vdwg.mxu0
        %v3046 = vadd.f32 %v2797, %v3043
        %v3048 = vlaneseq
        %v3049 = vshrl.u32 %v3048, 7
        %v3050 = vsub.s32 0, %v3049
        %v3051 = vrot.slane %v2055, %v3050
        %v3053 = vadd.f32 %v3046, %v3051
        %v3054 = vadd.f32 %v1874, %v3053
        %v3055 = vld [vmem:[%s15] sm:$0x1]
        %v3056 = vld [vmem:[%s16] sm:$0x1]
        %v3057 = vsel %vm796, %v3054, 0.0
        %3058 = vadd.xlane.f32.xlu0 %v3057
        %v3059 = vpop.xlane.xlu0 %3058
        %v3060 = vmul.f32 %v3059, %v1850
        %v3061 = vsub.f32 %v3054, %v3060
        %v3062 = vmul.f32 %v3061, %v3061
        %v3063 = vsel %vm796, %v3062, 0.0
        %3064 = vadd.xlane.f32.xlu0 %v3063
        %v3065 = vpop.xlane.xlu0 %3064
        %v3066 = vmul.f32 %v3065, %v1850
        %v3067 = vadd.f32 %v3066, 1e-05
        %v3068 = vrsqrt.pop %v3067
        %v3069 = vmul.f32 %v3061, %v3068
        %v3071 = vlaneseq
        %v3072 = vshrl.u32 %v3071, 7
        %v3073 = vsub.s32 0, %v3072
        %v3074 = vrot.slane %v3055, %v3073
        %v3076 = vmul.f32 %v3069, %v3074
        %v3078 = vlaneseq
        %v3079 = vshrl.u32 %v3078, 7
        %v3080 = vsub.s32 0, %v3079
        %v3081 = vrot.slane %v3056, %v3080
        %v3083 = vadd.f32 %v3076, %v3081
        %v3084 = vld [vmem:[%s17] sm:$0xff]
        %v3085 = vld [vmem:[%s17 + $0x8] sm:$0xff]
        %v3086 = vld [vmem:[%s17 + $0x10] sm:$0xff]
        %v3087 = vld [vmem:[%s17 + $0x18] sm:$0xff]
        %v3088 = vld [vmem:[%s18] sm:$0x1]
        %v3090 = vlaneseq
        %v3091 = vshrl.u32 %v3090, 7
        %v3092 = vsub.s32 0, %v3091
        %v3093 = vrot.slane %v3088, %v3092
        %v3096 = vsel %vm796, %v3083, 0
        %3098 = vmatprep.subr.mxu0 0.0
        %3099 = vmatpush1.msra.mxu0 %v3084
        %3100 = vmatprep.subr.mxu0 0.0
        %3101 = vmatpush1.msra.mxu0 %v3085
        %3102 = vmatprep.subr.mxu0 0.0
        %3103 = vmatpush1.msra.mxu0 %v3086
        %3104 = vmatprep.subr.mxu0 0.0
        %3105 = vmatpush1.msra.mxu0 %v3087
        %3106 = vmatprep.subr.mxu0 0.0
        %3107 = vmatpush1.msra.mxu0 0.0
        %3108 = vmatprep.subr.mxu0 0.0
        %3109 = vmatpush1.msra.mxu0 0.0
        %3110 = vmatprep.subr.mxu0 0.0
        %3111 = vmatpush1.msra.mxu0 0.0
        %3112 = vmatprep.subr.mxu0 0.0
        %3113 = vmatpush1.msra.mxu0 0.0
        %3114 = vmatprep.subr.mxu0 0.0
        %3115 = vmatpush1.msra.mxu0 0.0
        %3116 = vmatprep.subr.mxu0 0.0
        %3117 = vmatpush1.msra.mxu0 0.0
        %3118 = vmatprep.subr.mxu0 0.0
        %3119 = vmatpush1.msra.mxu0 0.0
        %3120 = vmatprep.subr.mxu0 0.0
        %3121 = vmatpush1.msra.mxu0 0.0
        %3122 = vmatprep.subr.mxu0 0.0
        %3123 = vmatpush1.msra.mxu0 0.0
        %3124 = vmatprep.subr.mxu0 0.0
        %3125 = vmatpush1.msra.mxu0 0.0
        %3126 = vmatprep.subr.mxu0 0.0
        %3127 = vmatpush1.msra.mxu0 0.0
        %3128 = vmatprep.subr.mxu0 0.0
        %3129 = vmatpush1.msra.mxu0 0.0
        %3130 = vmatprep.subr.mxu0 0.0
        %3131 = vmatpush1.msra.mxu0 0.0
        %3132 = vmatprep.subr.mxu0 0.0
        %3133 = vmatpush1.msra.mxu0 0.0
        %3134 = vmatprep.subr.mxu0 0.0
        %3135 = vmatpush1.msra.mxu0 0.0
        %3136 = vmatprep.subr.mxu0 0.0
        %3137 = vmatpush1.msra.mxu0 0.0
        %3138 = vmatprep.subr.mxu0 0.0
        %3139 = vmatpush1.msra.mxu0 0.0
        %3140 = vmatprep.subr.mxu0 0.0
        %3141 = vmatpush1.msra.mxu0 0.0
        %3142 = vmatprep.subr.mxu0 0.0
        %3143 = vmatpush1.msra.mxu0 0.0
        %3144 = vmatprep.subr.mxu0 0.0
        %3145 = vmatpush1.msra.mxu0 0.0
        %3146 = vmatprep.subr.mxu0 0.0
        %3147 = vmatpush1.msra.mxu0 0.0
        %3148 = vmatprep.subr.mxu0 0.0
        %3149 = vmatpush1.msra.mxu0 0.0
        %3150 = vmatprep.subr.mxu0 0.0
        %3151 = vmatpush1.msra.mxu0 0.0
        %3152 = vmatprep.subr.mxu0 0.0
        %3153 = vmatpush1.msra.mxu0 0.0
        %3154 = vmatprep.subr.mxu0 0.0
        %3155 = vmatpush1.msra.mxu0 0.0
        %3156 = vmatprep.subr.mxu0 0.0
        %3157 = vmatpush1.msra.mxu0 0.0
        %3158 = vmatprep.subr.mxu0 0.0
        %3159 = vmatpush1.msra.mxu0 0.0
        %3160 = vmatprep.subr.mxu0 0.0
        %3161 = vmatpush1.msra.mxu0 0.0
        %3162 = vmatprep.mubr.f32.mxu0 0.0
        %3163 = vmatmul.mubr.f32.gmra.mrb[0].mxu0 %v3096
        %v3164 = vpop.f32.mrb[0].mxu0
        %v3165 = vadd.f32 %v3093, %v3164
        %v3166 = vpop.f32.mrb[0].mxu0
        %3167 = vdwg.mxu0
        %v3168 = vmax.f32 %v3165, 0.0
        %v3169 = vld [vmem:[%s19] sm:$0xff]
        %v3170 = vld [vmem:[%s19 + $0x8] sm:$0xff]
        %v3171 = vld [vmem:[%s19 + $0x10] sm:$0xff]
        %v3172 = vld [vmem:[%s19 + $0x18] sm:$0xff]
        %v3173 = vld [vmem:[%s19 + $0x20] sm:$0xff]
        %v3174 = vld [vmem:[%s19 + $0x28] sm:$0xff]
        %v3175 = vld [vmem:[%s19 + $0x30] sm:$0xff]
        %v3176 = vld [vmem:[%s19 + $0x38] sm:$0xff]
        %v3177 = vld [vmem:[%s20] sm:$0x1]
        %v3179 = vlaneseq
        %v3180 = vshrl.u32 %v3179, 7
        %v3181 = vsub.s32 0, %v3180
        %v3182 = vrot.slane %v3177, %v3181
        %vm3184 = vcmask 523264
        %v3186 = vsel %vm3184, %v3168, 0
        %3188 = vmatprep.subr.mxu0 0.0
        %3189 = vmatpush1.msra.mxu0 %v3169
        %3190 = vmatprep.subr.mxu0 0.0
        %3191 = vmatpush1.msra.mxu0 %v3170
        %3192 = vmatprep.subr.mxu0 0.0
        %3193 = vmatpush1.msra.mxu0 %v3171
        %3194 = vmatprep.subr.mxu0 0.0
        %3195 = vmatpush1.msra.mxu0 %v3172
        %3196 = vmatprep.subr.mxu0 0.0
        %3197 = vmatpush1.msra.mxu0 %v3173
        %3198 = vmatprep.subr.mxu0 0.0
        %3199 = vmatpush1.msra.mxu0 %v3174
        %3200 = vmatprep.subr.mxu0 0.0
        %3201 = vmatpush1.msra.mxu0 %v3175
        %3202 = vmatprep.subr.mxu0 0.0
        %3203 = vmatpush1.msra.mxu0 %v3176
        %3204 = vmatprep.subr.mxu0 0.0
        %3205 = vmatpush1.msra.mxu0 0.0
        %3206 = vmatprep.subr.mxu0 0.0
        %3207 = vmatpush1.msra.mxu0 0.0
        %3208 = vmatprep.subr.mxu0 0.0
        %3209 = vmatpush1.msra.mxu0 0.0
        %3210 = vmatprep.subr.mxu0 0.0
        %3211 = vmatpush1.msra.mxu0 0.0
        %3212 = vmatprep.subr.mxu0 0.0
        %3213 = vmatpush1.msra.mxu0 0.0
        %3214 = vmatprep.subr.mxu0 0.0
        %3215 = vmatpush1.msra.mxu0 0.0
        %3216 = vmatprep.subr.mxu0 0.0
        %3217 = vmatpush1.msra.mxu0 0.0
        %3218 = vmatprep.subr.mxu0 0.0
        %3219 = vmatpush1.msra.mxu0 0.0
        %3220 = vmatprep.subr.mxu0 0.0
        %3221 = vmatpush1.msra.mxu0 0.0
        %3222 = vmatprep.subr.mxu0 0.0
        %3223 = vmatpush1.msra.mxu0 0.0
        %3224 = vmatprep.subr.mxu0 0.0
        %3225 = vmatpush1.msra.mxu0 0.0
        %3226 = vmatprep.subr.mxu0 0.0
        %3227 = vmatpush1.msra.mxu0 0.0
        %3228 = vmatprep.subr.mxu0 0.0
        %3229 = vmatpush1.msra.mxu0 0.0
        %3230 = vmatprep.subr.mxu0 0.0
        %3231 = vmatpush1.msra.mxu0 0.0
        %3232 = vmatprep.subr.mxu0 0.0
        %3233 = vmatpush1.msra.mxu0 0.0
        %3234 = vmatprep.subr.mxu0 0.0
        %3235 = vmatpush1.msra.mxu0 0.0
        %3236 = vmatprep.subr.mxu0 0.0
        %3237 = vmatpush1.msra.mxu0 0.0
        %3238 = vmatprep.subr.mxu0 0.0
        %3239 = vmatpush1.msra.mxu0 0.0
        %3240 = vmatprep.subr.mxu0 0.0
        %3241 = vmatpush1.msra.mxu0 0.0
        %3242 = vmatprep.subr.mxu0 0.0
        %3243 = vmatpush1.msra.mxu0 0.0
        %3244 = vmatprep.subr.mxu0 0.0
        %3245 = vmatpush1.msra.mxu0 0.0
        %3246 = vmatprep.subr.mxu0 0.0
        %3247 = vmatpush1.msra.mxu0 0.0
        %3248 = vmatprep.subr.mxu0 0.0
        %3249 = vmatpush1.msra.mxu0 0.0
        %3250 = vmatprep.subr.mxu0 0.0
        %3251 = vmatpush1.msra.mxu0 0.0
        %3252 = vmatprep.mubr.f32.mxu0 0.0
        %3253 = vmatmul.mubr.f32.gmra.mrb[0].mxu0 %v3186
        %v3254 = vpop.f32.mrb[0].mxu0
        %v3255 = vadd.f32 %v3182, %v3254
        %v3256 = vpop.f32.mrb[0].mxu0
        %3257 = vdwg.mxu0
        %v3258 = vadd.f32 %v3083, %v3255
        %v3259 = vld [vmem:[%s21] sm:$0x1]
        %v3260 = vld [vmem:[%s22] sm:$0x1]
        %v3261 = vsel %vm796, %v3258, 0.0
        %3262 = vadd.xlane.f32.xlu0 %v3261
        %v3263 = vpop.xlane.xlu0 %3262
        %v3264 = vmul.f32 %v3263, %v1850
        %v3265 = vsub.f32 %v3258, %v3264
        %v3266 = vmul.f32 %v3265, %v3265
        %v3267 = vsel %vm796, %v3266, 0.0
        %3268 = vadd.xlane.f32.xlu0 %v3267
        %v3269 = vpop.xlane.xlu0 %3268
        %v3270 = vmul.f32 %v3269, %v1850
        %v3271 = vadd.f32 %v3270, 1e-05
        %v3272 = vrsqrt.pop %v3271
        %v3273 = vmul.f32 %v3265, %v3272
        %v3275 = vlaneseq
        %v3276 = vshrl.u32 %v3275, 7
        %v3277 = vsub.s32 0, %v3276
        %v3278 = vrot.slane %v3259, %v3277
        %v3280 = vmul.f32 %v3273, %v3278
        %v3282 = vlaneseq
        %v3283 = vshrl.u32 %v3282, 7
        %v3284 = vsub.s32 0, %v3283
        %v3285 = vrot.slane %v3260, %v3284
        %v3287 = vadd.f32 %v3280, %v3285
        %3288 = vst.msk [vmem:[%s780] sm:$0xff] %vm796, %v3287
        %p3289 = scmp.lt.s32.totalorder %s39, 1
        %s3290 = scalar_select %p3289, %s39, 1
        %s3291 = smul.addr %s3290, 8
        %s3292 = scalar_lea.vmem %s23, %s3291
        %s3293 = sand.u32 %s571, 1
        %s3294 = scalar_lea.sflag [#allocation3], %s3293
        %s3295 = sand.u32 %s571, 1
        %s3296 = smul.addr %s3295, 32
        %s3297 = scalar_lea.vmem [#allocation2], %s3296
        // Predicated region
        $region113: #{decoder_layer_forward.1} parent=111 // pred_check
          %p3298 = pneg %p555
        $region114: #{decoder_layer_forward.1} parent=111 // pred_check_branch
          %3300 = sbr.rel (%p3298) target = $region116
        $region115: #{decoder_layer_forward.1} parent=111 // pred_region
          _
        $region116: #{decoder_layer_forward.1} parent=111 // pred_fallthru
          _
        // Predicated region
        $region117: #{decoder_layer_forward.1} parent=111 // pred_check
          %p3301 = pneg %p581
        $region118: #{decoder_layer_forward.1} parent=111 // pred_check_branch
          %3303 = sbr.rel (%p3301) target = $region120
        $region119: #{decoder_layer_forward.1} parent=111 // pred_region
          %s3305 = ssub.s32 512, 512
          %3306 = vsyncadd %s3294, %s3305
          %s3307 = smul.addr %s39, 4
          %s3308 = smul.addr %s3307, 128
          %s3309 = scalar_lea.hbm %s24, %s3308
          %s3310 = sshll.u32 %s3297, 4
          %s3311 = int_to_ptr.vmem [resolvable:$true] %s3310
          %3316 = dma.vmem_to_hbm [thread:$0]  %s3311, 512, %s3309, %s3294, 128, 128, 8
        $region120: #{decoder_layer_forward.1} parent=111 // pred_fallthru
          _
      $region112: #{decoder_layer_forward.1} parent=5 // pred_fallthru
        _
      %p3317 = scmp.le.s32.totalorder 2, %s34
      // Predicated region
      $region121: #{decoder_layer_forward.1} parent=5 // pred_check
        %p3318 = pneg %p3317
      $region122: #{decoder_layer_forward.1} parent=5 // pred_check_branch
        %3320 = sbr.rel (%p3318) target = $region124
      $region123: #{decoder_layer_forward.1} parent=5 // pred_region
        %s3321 = ssub.s32 %s34, 2
        // Predicated region
        $region125: #{decoder_layer_forward.1} parent=123 // pred_check
          %p3322 = pneg %p561
        $region126: #{decoder_layer_forward.1} parent=123 // pred_check_branch
          %3324 = sbr.rel (%p3322) target = $region128
        $region127: #{decoder_layer_forward.1} parent=123 // pred_region
          %p3325 = scmp.lt.s32.totalorder %s40, 1
          %s3326 = scalar_select %p3325, %s40, 1
          %s3327 = smul.addr %s3326, 8
          %s3328 = scalar_lea.vmem %s23, %s3327
        $region128: #{decoder_layer_forward.1} parent=123 // pred_fallthru
          _
        // Predicated region
        $region129: #{decoder_layer_forward.1} parent=123 // pred_check
          %p3329 = pneg %p587
        $region130: #{decoder_layer_forward.1} parent=123 // pred_check_branch
          %3331 = sbr.rel (%p3329) target = $region132
        $region131: #{decoder_layer_forward.1} parent=123 // pred_region
          %s3332 = sand.u32 %s572, 1
          %s3333 = scalar_lea.sflag [#allocation3], %s3332
          %s3334 = sand.u32 %s572, 1
          %s3335 = smul.addr %s3334, 32
          %s3336 = scalar_lea.vmem [#allocation2], %s3335
          %3337 = dma.done %s3333, 512
        $region132: #{decoder_layer_forward.1} parent=123 // pred_fallthru
          _
      $region124: #{decoder_layer_forward.1} parent=5 // pred_fallthru
        _
    $region6: #{decoder_layer_forward.1} parent=1 // loop_footer
      %s38 = sadd.s32 1, %s34
    $region7: #{decoder_layer_forward.1} parent=1 // loop_footer_branch
      %33 = sbr.rel target = $region3
    $region8: #{decoder_layer_forward.1} parent=1 // loop_exit
      _
    %3338 = vsyncpa [#allocation3], 1
    %s3339 = scalar_lea.sflag [#allocation3], 1
    %3340 = vsyncpa %s3339, 1

</llo_original>
